<compile_context>
chip_gen: v6e
topology: v6e:2x2x1
jax: 0.10.0
libtpu: 0.0.40
codegen_flags: <defaults>
</compile_context>

<pallas_src>
import numpy as np
import jax
import jax.numpy as jnp
from jax.experimental import pallas as pl
from jax.experimental.pallas import tpu as pltpu

# ---------------------------------------------------------------------------
# Gather-operator slab layout (14 stacked [R, R] 0/1 matrices)
# ---------------------------------------------------------------------------
(OP_N2E, OP_E2E_L, OP_E2E_B, OP_E2N,
 OP_E2C5_L, OP_E2C5_B, OP_C55_L, OP_C55_B,
 OP_E2C6_L, OP_E2C6_B, OP_C66_L, OP_C66_B,
 OP_C2E_L, OP_C2E_B) = range(14)
N_OPS = 14


def _compiler_params():
    cp = getattr(pltpu, "CompilerParams", None) or getattr(pltpu, "TPUCompilerParams", None)
    return cp(dimension_semantics=("parallel",)) if cp is not None else None


# ---------------------------------------------------------------------------
# Fused ConvLayer kernel (single pallas_call, grid over the graph batch)
# ---------------------------------------------------------------------------
def make_conv_layer(H, R, B):
    H2 = 2 * H
    # W1 slab row offsets/lengths: [en_node(7H), en_edge(7H), ec_edge(11H), ec_cycle(5H)]
    w1_len = (7 * H, 7 * H, 11 * H, 5 * H)
    w1_off = (0, 7 * H, 14 * H, 25 * H)
    w1_rows = 30 * H          # 960
    w2_rows = 5 * H2          # 4 MLP second layers + final 2H->H layer

    def kernel(x_ref, ops_ref, w1_ref, w2_ref, b1_ref, b2_ref, out_ref):
        def mm(a, b):
            # bf16 MXU operands, f32 accumulation.
            return jnp.dot(a.astype(jnp.bfloat16), b.astype(jnp.bfloat16),
                           preferred_element_type=jnp.float32)

        def op(i):
            return ops_ref[i * R:(i + 1) * R, :]            # [R, R] bf16 (static slice)

        def g11(x, il, ib):
            # 1st->1st order gather: two linmaps (local / domain-broadcast) -> 2x width.
            return jnp.concatenate([mm(op(il), x), mm(op(ib), x)], axis=-1)

        def mlp2(x, idx):
            # Linear(no bias, BN scale pre-folded) + shift + ReLU, twice.
            w1 = w1_ref[w1_off[idx]:w1_off[idx] + w1_len[idx], :]
            h = jnp.maximum(mm(x, w1) + b1_ref[idx:idx + 1, :], 0.0)
            w2 = w2_ref[idx * H2:(idx + 1) * H2, :]
            return jnp.maximum(mm(h, w2) + b2_ref[idx:idx + 1, :], 0.0)

        x = x_ref[0]                                        # [3R, H] f32
        node = x[0:R, :]
        edge = x[R:2 * R, :]
        cyc = x[2 * R:3 * R, :]

        # ---------------- Edge_node ----------------
        node2edge = mm(op(OP_N2E), node)                    # 0th->1st       [R, H]
        node2edge = g11(node2edge, OP_E2E_L, OP_E2E_B)      # 1st->1st       [R, 2H]
        edge2edge = g11(edge, OP_E2E_L, OP_E2E_B)           #                [R, 2H]
        edge2edge = g11(edge2edge, OP_E2E_L, OP_E2E_B)      #                [R, 4H]
        edge2node = mm(op(OP_E2N),
                       jnp.concatenate([edge2edge, node2edge], -1))   # 1st->0th [R, 6H]

        en_edge_out = mlp2(jnp.concatenate([edge, edge2edge, node2edge], -1), 1)   # 7H -> H
        en_node_out = mlp2(jnp.concatenate([node, edge2node], -1), 0)              # 7H -> H
        # Dropout (eval) = identity.

        # ---------------- Edge_Cycle ----------------
        e2c5 = g11(g11(edge, OP_E2C5_L, OP_E2C5_B), OP_C55_L, OP_C55_B)   # [R, 4H] (cycle5 rows)
        e2c6 = g11(g11(edge, OP_E2C6_L, OP_E2C6_B), OP_C66_L, OP_C66_B)   # [R, 4H] (cycle6 rows)
        cycle_in = e2c5 + e2c6                              # row-cat of disjoint row supports
        cycle_new = jnp.concatenate([cycle_in, cyc], -1)    # cat_channels   [R, 5H]
        cycle2edge = g11(cycle_new, OP_C2E_L, OP_C2E_B)     #                [R, 10H]

        ec_edge_out = mlp2(jnp.concatenate([edge, cycle2edge], -1), 2)     # 11H -> H
        cycle_out = mlp2(cycle_new, 3)                                     # 5H -> H
        # Dropout (eval) = identity.

        # ---------------- ConvLayer tail: 2H->H MLP + residuals ----------------
        wf = w2_ref[4 * H2:5 * H2, :]
        edge_final = jnp.maximum(
            mm(jnp.concatenate([en_edge_out, ec_edge_out], -1), wf) + b2_ref[4:5, :], 0.0)

        out_ref[0] = jnp.concatenate(
            [node + en_node_out, edge + edge_final, cyc + cycle_out], axis=0)

    def run(x, ops, w1, w2, b1, b2):
        return pl.pallas_call(
            kernel,
            out_shape=jax.ShapeDtypeStruct((B, 3 * R, H), jnp.float32),
            grid=(B,),
            in_specs=[
                pl.BlockSpec((1, 3 * R, H), lambda b: (b, 0, 0)),      # per-graph activations
                pl.BlockSpec((N_OPS * R, R), lambda b: (0, 0)),        # gather-op slab (bf16)
                pl.BlockSpec((w1_rows, H2), lambda b: (0, 0)),         # W1 slab (bf16, BN folded)
                pl.BlockSpec((w2_rows, H), lambda b: (0, 0)),          # W2 + final slab (bf16)
                pl.BlockSpec((8, H2), lambda b: (0, 0)),               # layer-1 shifts (f32)
                pl.BlockSpec((8, H), lambda b: (0, 0)),                # layer-2 + final shifts
            ],
            out_specs=pl.BlockSpec((1, 3 * R, H), lambda b: (b, 0, 0)),
            compiler_params=_compiler_params(),
        )(x, ops, w1, w2, b1, b2)

    return run


# ---------------------------------------------------------------------------
# Synthetic ptens gather operators (0/1 matrices, built on the padded R-row layout)
# ---------------------------------------------------------------------------
def _op_1to1(src_rows, tgt_rows, tgt_domains, R):
    loc = np.zeros((R, R), np.float32)
    bc = np.zeros((R, R), np.float32)
    for (ri, ti, ai) in tgt_rows:
        dom = set(tgt_domains[ti])
        for (rj, _tj, aj) in src_rows:
            if aj == ai:
                loc[ri, rj] = 1.0
            if aj in dom:
                bc[ri, rj] = 1.0
    return loc, bc


def _op_0to1(tgt_rows, R):
    a = np.zeros((R, R), np.float32)
    for (ri, _ti, ai) in tgt_rows:
        a[ri, ai] = 1.0
    return a


def _op_1to0(src_rows, R):
    a = np.zeros((R, R), np.float32)
    for (rj, _tj, aj) in src_rows:
        a[aj, rj] = 1.0
    return a


def build_op_slab(edges, cycle5, cycle6, R):
    edge_rows = [(2 * e + k, e, atoms[k]) for e, atoms in enumerate(edges) for k in range(2)]
    c5_rows = [(i, 0, a) for i, a in enumerate(cycle5)]
    c6_rows = [(len(cycle5) + i, 1, a) for i, a in enumerate(cycle6)]
    cyc_rows = c5_rows + c6_rows
    edge_dom = [list(atoms) for atoms in edges]
    cyc_dom = [list(cycle5), list(cycle6)]

    mats = [_op_0to1(edge_rows, R)]                                    # n2e
    mats += list(_op_1to1(edge_rows, edge_rows, edge_dom, R))          # e2e loc/bc
    mats += [_op_1to0(edge_rows, R)]                                   # e2n
    mats += list(_op_1to1(edge_rows, c5_rows, cyc_dom, R))             # e2c5
    mats += list(_op_1to1(c5_rows, c5_rows, cyc_dom, R))               # c5->c5
    mats += list(_op_1to1(edge_rows, c6_rows, cyc_dom, R))             # e2c6
    mats += list(_op_1to1(c6_rows, c6_rows, cyc_dom, R))               # c6->c6
    mats += list(_op_1to1(cyc_rows, edge_rows, edge_dom, R))           # c2e
    assert len(mats) == N_OPS
    return jnp.asarray(np.concatenate(mats, axis=0), dtype=jnp.bfloat16)   # [14R, R]


# ---------------------------------------------------------------------------
# Parameters (deterministic synthetic init; eval-mode BN folded: scale into W, shift kept)
# ---------------------------------------------------------------------------
def make_bn(key, dim):
    k1, k2, k3, k4 = jax.random.split(key, 4)
    gamma = jax.random.uniform(k1, (dim,), minval=0.5, maxval=1.5)
    beta = 0.1 * jax.random.normal(k2, (dim,))
    mean = 0.1 * jax.random.normal(k3, (dim,))
    var = jax.random.uniform(k4, (dim,), minval=0.5, maxval=1.5)
    scale = gamma / jnp.sqrt(var + 1e-5)
    shift = beta - mean * scale
    return scale.astype(jnp.float32), shift.astype(jnp.float32)


def make_mlp2(key, in_dim, hid_dim, out_dim):
    k1, k2, k3, k4 = jax.random.split(key, 4)
    w1 = (jax.random.normal(k1, (in_dim, hid_dim)) / np.sqrt(in_dim)).astype(jnp.float32)
    s1, b1 = make_bn(k2, hid_dim)
    w2 = (jax.random.normal(k3, (hid_dim, out_dim)) / np.sqrt(hid_dim)).astype(jnp.float32)
    s2, b2 = make_bn(k4, out_dim)
    return dict(w1=(w1 * s1[None, :]).astype(jnp.bfloat16), b1=b1,
                w2=(w2 * s2[None, :]).astype(jnp.bfloat16), b2=b2)


# ---------------------------------------------------------------------------
if __name__ == "__main__":
    H = 32          # hidden_dim
    H2 = 2 * H
    R = 32          # padded rows per block (node / edge / cycle), multiple of 16 for bf16 packing
    B = 2           # batch of graphs (identical topology)
    N = 8           # atoms
    edges = [(0, 1), (1, 2), (2, 3), (3, 4), (4, 0),
             (4, 5), (5, 6), (6, 7), (7, 0), (2, 7)]
    cycle5 = [0, 1, 2, 3, 4]
    cycle6 = [2, 3, 4, 5, 6, 7]
    E2 = 2 * len(edges)                 # 20 edge rows (edge, endpoint)
    RC = len(cycle5) + len(cycle6)      # 11 cycle rows (cycle, atom)

    ops = build_op_slab([list(e) for e in edges], cycle5, cycle6, R)

    key = jax.random.PRNGKey(0)
    keys = jax.random.split(key, 9)
    en_node = make_mlp2(keys[0], 7 * H, H2, H)
    en_edge = make_mlp2(keys[1], 7 * H, H2, H)
    ec_edge = make_mlp2(keys[2], 11 * H, H2, H)
    ec_cycle = make_mlp2(keys[3], 5 * H, H2, H)
    mlp_w = (jax.random.normal(keys[4], (H2, H)) / np.sqrt(H2)).astype(jnp.float32)
    mlp_s, mlp_b = make_bn(keys[5], H)
    mlp_w = (mlp_w * mlp_s[None, :]).astype(jnp.bfloat16)
    # epsilon1 / epsilon2 parameters exist in the PyTorch module but are unused in forward.

    mlps = [en_node, en_edge, ec_edge, ec_cycle]
    w1_slab = jnp.concatenate([m["w1"] for m in mlps], axis=0)               # [960, 64] bf16
    w2_slab = jnp.concatenate([m["w2"] for m in mlps] + [mlp_w], axis=0)     # [320, 32] bf16
    b1_slab = np.zeros((8, H2), np.float32)
    b2_slab = np.zeros((8, H), np.float32)
    for i, m in enumerate(mlps):
        b1_slab[i] = np.asarray(m["b1"])
        b2_slab[i] = np.asarray(m["b2"])
    b2_slab[4] = np.asarray(mlp_b)
    b1_slab = jnp.asarray(b1_slab)
    b2_slab = jnp.asarray(b2_slab)

    node_rep = jax.random.normal(keys[6], (B, N, H), jnp.float32)
    edge_rep = jax.random.normal(keys[7], (B, E2, H), jnp.float32)
    cycle_rep = jax.random.normal(keys[8], (B, RC, H), jnp.float32)

    # Pack per-graph activations into one [3R, H] slab (node | edge | cycle), pad rows zero.
    x = jnp.zeros((B, 3 * R, H), jnp.float32)
    x = x.at[:, 0:N, :].set(node_rep)
    x = x.at[:, R:R + E2, :].set(edge_rep)
    x = x.at[:, 2 * R:2 * R + RC, :].set(cycle_rep)

    conv = make_conv_layer(H, R, B)

    @jax.jit
    def forward(x, ops, w1, w2, b1, b2):
        out = conv(x, ops, w1, w2, b1, b2)                 # [B, 3R, H]
        return (out[:, 0:N, :], out[:, R:R + E2, :], out[:, 2 * R:2 * R + RC, :])

    node_out, edge_out, cycle_out = forward(x, ops, w1_slab, w2_slab, b1_slab, b2_slab)
    jax.block_until_ready((node_out, edge_out, cycle_out))

    assert node_out.shape == (B, N, H)
    assert edge_out.shape == (B, E2, H)
    assert cycle_out.shape == (B, RC, H)
    assert all(bool(jnp.all(jnp.isfinite(t))) for t in (node_out, edge_out, cycle_out))
    print("KERNEL_OK")
</pallas_src>

<mosaic_0001>
module attributes {stable_mosaic.version = 11 : i64} {
  func.func @kernel(%arg0: i32, %arg1: memref<1x96x32xf32, #tpu.memory_space<vmem>>, %arg2: memref<448x32xbf16, #tpu.memory_space<vmem>>, %arg3: memref<960x64xbf16, #tpu.memory_space<vmem>>, %arg4: memref<320x32xbf16, #tpu.memory_space<vmem>>, %arg5: memref<8x64xf32, #tpu.memory_space<vmem>>, %arg6: memref<8x32xf32, #tpu.memory_space<vmem>>, %arg7: memref<1x96x32xf32, #tpu.memory_space<vmem>>) attributes {dimension_semantics = [#tpu.dimension_semantics<parallel>], iteration_bounds = array<i64: 2>, scalar_prefetch = 0 : i64, scratch_operands = 0 : i64, tpu.core_type = #tpu.core_type<tc>, window_params = [{transform_indices = @transform_0, window_bounds = array<i64: 1, 96, 32>}, {pipeline_mode = #tpu.pipeline_mode<synchronous>, transform_indices = @transform_1, window_bounds = array<i64: 448, 32>}, {pipeline_mode = #tpu.pipeline_mode<synchronous>, transform_indices = @transform_2, window_bounds = array<i64: 960, 64>}, {pipeline_mode = #tpu.pipeline_mode<synchronous>, transform_indices = @transform_3, window_bounds = array<i64: 320, 32>}, {pipeline_mode = #tpu.pipeline_mode<synchronous>, transform_indices = @transform_4, window_bounds = array<i64: 8, 64>}, {pipeline_mode = #tpu.pipeline_mode<synchronous>, transform_indices = @transform_5, window_bounds = array<i64: 8, 32>}, {transform_indices = @transform_6, window_bounds = array<i64: 1, 96, 32>}]} {
    %c0 = arith.constant 0 : index
    %c0_0 = arith.constant 0 : index
    %c0_1 = arith.constant 0 : index
    %0 = vector.load %arg1[%c0, %c0_0, %c0_1] : memref<1x96x32xf32, #tpu.memory_space<vmem>>, vector<1x96x32xf32>
    %1 = vector.shape_cast %0 : vector<1x96x32xf32> to vector<96x32xf32>
    %2 = vector.extract_strided_slice %1 {offsets = [0, 0], sizes = [32, 32], strides = [1, 1]} : vector<96x32xf32> to vector<32x32xf32>
    %3 = vector.extract_strided_slice %1 {offsets = [32, 0], sizes = [32, 32], strides = [1, 1]} : vector<96x32xf32> to vector<32x32xf32>
    %4 = vector.extract_strided_slice %1 {offsets = [64, 0], sizes = [32, 32], strides = [1, 1]} : vector<96x32xf32> to vector<32x32xf32>
    %c0_2 = arith.constant 0 : index
    %c0_3 = arith.constant 0 : index
    %5 = vector.load %arg2[%c0_2, %c0_3] : memref<448x32xbf16, #tpu.memory_space<vmem>>, vector<32x32xbf16>
    %6 = arith.truncf %2 : vector<32x32xf32> to vector<32x32xbf16>
    %cst = arith.constant dense<0.000000e+00> : vector<32x32xf32>
    %7 = tpu.matmul %5, %6, %cst {dimension_numbers = #tpu.dot_dimension_numbers<[1], [0], [0], [1], [0, 0, 1, 1], [], []>} : vector<32x32xbf16>, vector<32x32xbf16>, vector<32x32xf32> -> vector<32x32xf32>
    %c32 = arith.constant 32 : index
    %c0_4 = arith.constant 0 : index
    %8 = vector.load %arg2[%c32, %c0_4] : memref<448x32xbf16, #tpu.memory_space<vmem>>, vector<32x32xbf16>
    %9 = arith.truncf %7 : vector<32x32xf32> to vector<32x32xbf16>
    %cst_5 = arith.constant dense<0.000000e+00> : vector<32x32xf32>
    %10 = tpu.matmul %8, %9, %cst_5 {dimension_numbers = #tpu.dot_dimension_numbers<[1], [0], [0], [1], [0, 0, 1, 1], [], []>} : vector<32x32xbf16>, vector<32x32xbf16>, vector<32x32xf32> -> vector<32x32xf32>
    %c64 = arith.constant 64 : index
    %c0_6 = arith.constant 0 : index
    %11 = vector.load %arg2[%c64, %c0_6] : memref<448x32xbf16, #tpu.memory_space<vmem>>, vector<32x32xbf16>
    %12 = arith.truncf %7 : vector<32x32xf32> to vector<32x32xbf16>
    %cst_7 = arith.constant dense<0.000000e+00> : vector<32x32xf32>
    %13 = tpu.matmul %11, %12, %cst_7 {dimension_numbers = #tpu.dot_dimension_numbers<[1], [0], [0], [1], [0, 0, 1, 1], [], []>} : vector<32x32xbf16>, vector<32x32xbf16>, vector<32x32xf32> -> vector<32x32xf32>
    %14 = tpu.concatenate %10, %13 in 1 : vector<32x32xf32>, vector<32x32xf32> -> vector<32x64xf32>
    %c32_8 = arith.constant 32 : index
    %c0_9 = arith.constant 0 : index
    %15 = vector.load %arg2[%c32_8, %c0_9] : memref<448x32xbf16, #tpu.memory_space<vmem>>, vector<32x32xbf16>
    %16 = arith.truncf %3 : vector<32x32xf32> to vector<32x32xbf16>
    %cst_10 = arith.constant dense<0.000000e+00> : vector<32x32xf32>
    %17 = tpu.matmul %15, %16, %cst_10 {dimension_numbers = #tpu.dot_dimension_numbers<[1], [0], [0], [1], [0, 0, 1, 1], [], []>} : vector<32x32xbf16>, vector<32x32xbf16>, vector<32x32xf32> -> vector<32x32xf32>
    %c64_11 = arith.constant 64 : index
    %c0_12 = arith.constant 0 : index
    %18 = vector.load %arg2[%c64_11, %c0_12] : memref<448x32xbf16, #tpu.memory_space<vmem>>, vector<32x32xbf16>
    %19 = arith.truncf %3 : vector<32x32xf32> to vector<32x32xbf16>
    %cst_13 = arith.constant dense<0.000000e+00> : vector<32x32xf32>
    %20 = tpu.matmul %18, %19, %cst_13 {dimension_numbers = #tpu.dot_dimension_numbers<[1], [0], [0], [1], [0, 0, 1, 1], [], []>} : vector<32x32xbf16>, vector<32x32xbf16>, vector<32x32xf32> -> vector<32x32xf32>
    %21 = tpu.concatenate %17, %20 in 1 : vector<32x32xf32>, vector<32x32xf32> -> vector<32x64xf32>
    %c32_14 = arith.constant 32 : index
    %c0_15 = arith.constant 0 : index
    %22 = vector.load %arg2[%c32_14, %c0_15] : memref<448x32xbf16, #tpu.memory_space<vmem>>, vector<32x32xbf16>
    %23 = arith.truncf %21 : vector<32x64xf32> to vector<32x64xbf16>
    %cst_16 = arith.constant dense<0.000000e+00> : vector<32x64xf32>
    %24 = tpu.matmul %22, %23, %cst_16 {dimension_numbers = #tpu.dot_dimension_numbers<[1], [0], [0], [1], [0, 0, 1, 1], [], []>} : vector<32x32xbf16>, vector<32x64xbf16>, vector<32x64xf32> -> vector<32x64xf32>
    %c64_17 = arith.constant 64 : index
    %c0_18 = arith.constant 0 : index
    %25 = vector.load %arg2[%c64_17, %c0_18] : memref<448x32xbf16, #tpu.memory_space<vmem>>, vector<32x32xbf16>
    %26 = arith.truncf %21 : vector<32x64xf32> to vector<32x64xbf16>
    %cst_19 = arith.constant dense<0.000000e+00> : vector<32x64xf32>
    %27 = tpu.matmul %25, %26, %cst_19 {dimension_numbers = #tpu.dot_dimension_numbers<[1], [0], [0], [1], [0, 0, 1, 1], [], []>} : vector<32x32xbf16>, vector<32x64xbf16>, vector<32x64xf32> -> vector<32x64xf32>
    %28 = tpu.concatenate %24, %27 in 1 : vector<32x64xf32>, vector<32x64xf32> -> vector<32x128xf32>
    %c96 = arith.constant 96 : index
    %c0_20 = arith.constant 0 : index
    %29 = vector.load %arg2[%c96, %c0_20] : memref<448x32xbf16, #tpu.memory_space<vmem>>, vector<32x32xbf16>
    %30 = tpu.concatenate %28, %14 in 1 : vector<32x128xf32>, vector<32x64xf32> -> vector<32x192xf32>
    %31 = arith.truncf %30 : vector<32x192xf32> to vector<32x192xbf16>
    %cst_21 = arith.constant dense<0.000000e+00> : vector<32x192xf32>
    %32 = tpu.matmul %29, %31, %cst_21 {dimension_numbers = #tpu.dot_dimension_numbers<[1], [0], [0], [1], [0, 0, 1, 1], [], []>} : vector<32x32xbf16>, vector<32x192xbf16>, vector<32x192xf32> -> vector<32x192xf32>
    %33 = tpu.concatenate %3, %28, %14 in 1 : vector<32x32xf32>, vector<32x128xf32>, vector<32x64xf32> -> vector<32x224xf32>
    %c224 = arith.constant 224 : index
    %c0_22 = arith.constant 0 : index
    %34 = vector.load %arg3[%c224, %c0_22] : memref<960x64xbf16, #tpu.memory_space<vmem>>, vector<224x64xbf16>
    %35 = arith.truncf %33 : vector<32x224xf32> to vector<32x224xbf16>
    %cst_23 = arith.constant dense<0.000000e+00> : vector<32x64xf32>
    %36 = tpu.matmul %35, %34, %cst_23 {dimension_numbers = #tpu.dot_dimension_numbers<[1], [0], [0], [1], [0, 0, 1, 1], [], []>} : vector<32x224xbf16>, vector<224x64xbf16>, vector<32x64xf32> -> vector<32x64xf32>
    %c1 = arith.constant 1 : index
    %c0_24 = arith.constant 0 : index
    %37 = vector.load %arg5[%c1, %c0_24] : memref<8x64xf32, #tpu.memory_space<vmem>>, vector<1x64xf32>
    %38 = vector.broadcast %37 : vector<1x64xf32> to vector<32x64xf32>
    %39 = arith.addf %36, %38 : vector<32x64xf32>
    %cst_25 = arith.constant 0.000000e+00 : f32
    %40 = vector.broadcast %cst_25 : f32 to vector<32x64xf32>
    %41 = arith.maximumf %39, %40 : vector<32x64xf32>
    %c64_26 = arith.constant 64 : index
    %c0_27 = arith.constant 0 : index
    %42 = vector.load %arg4[%c64_26, %c0_27] : memref<320x32xbf16, #tpu.memory_space<vmem>>, vector<64x32xbf16>
    %43 = arith.truncf %41 : vector<32x64xf32> to vector<32x64xbf16>
    %cst_28 = arith.constant dense<0.000000e+00> : vector<32x32xf32>
    %44 = tpu.matmul %43, %42, %cst_28 {dimension_numbers = #tpu.dot_dimension_numbers<[1], [0], [0], [1], [0, 0, 1, 1], [], []>} : vector<32x64xbf16>, vector<64x32xbf16>, vector<32x32xf32> -> vector<32x32xf32>
    %c1_29 = arith.constant 1 : index
    %c0_30 = arith.constant 0 : index
    %45 = vector.load %arg6[%c1_29, %c0_30] : memref<8x32xf32, #tpu.memory_space<vmem>>, vector<1x32xf32>
    %46 = vector.broadcast %45 : vector<1x32xf32> to vector<32x32xf32>
    %47 = arith.addf %44, %46 : vector<32x32xf32>
    %cst_31 = arith.constant 0.000000e+00 : f32
    %48 = vector.broadcast %cst_31 : f32 to vector<32x32xf32>
    %49 = arith.maximumf %47, %48 : vector<32x32xf32>
    %50 = tpu.concatenate %2, %32 in 1 : vector<32x32xf32>, vector<32x192xf32> -> vector<32x224xf32>
    %c0_32 = arith.constant 0 : index
    %c0_33 = arith.constant 0 : index
    %51 = vector.load %arg3[%c0_32, %c0_33] : memref<960x64xbf16, #tpu.memory_space<vmem>>, vector<224x64xbf16>
    %52 = arith.truncf %50 : vector<32x224xf32> to vector<32x224xbf16>
    %cst_34 = arith.constant dense<0.000000e+00> : vector<32x64xf32>
    %53 = tpu.matmul %52, %51, %cst_34 {dimension_numbers = #tpu.dot_dimension_numbers<[1], [0], [0], [1], [0, 0, 1, 1], [], []>} : vector<32x224xbf16>, vector<224x64xbf16>, vector<32x64xf32> -> vector<32x64xf32>
    %c0_35 = arith.constant 0 : index
    %c0_36 = arith.constant 0 : index
    %54 = vector.load %arg5[%c0_35, %c0_36] : memref<8x64xf32, #tpu.memory_space<vmem>>, vector<1x64xf32>
    %55 = vector.broadcast %54 : vector<1x64xf32> to vector<32x64xf32>
    %56 = arith.addf %53, %55 : vector<32x64xf32>
    %cst_37 = arith.constant 0.000000e+00 : f32
    %57 = vector.broadcast %cst_37 : f32 to vector<32x64xf32>
    %58 = arith.maximumf %56, %57 : vector<32x64xf32>
    %c0_38 = arith.constant 0 : index
    %c0_39 = arith.constant 0 : index
    %59 = vector.load %arg4[%c0_38, %c0_39] : memref<320x32xbf16, #tpu.memory_space<vmem>>, vector<64x32xbf16>
    %60 = arith.truncf %58 : vector<32x64xf32> to vector<32x64xbf16>
    %cst_40 = arith.constant dense<0.000000e+00> : vector<32x32xf32>
    %61 = tpu.matmul %60, %59, %cst_40 {dimension_numbers = #tpu.dot_dimension_numbers<[1], [0], [0], [1], [0, 0, 1, 1], [], []>} : vector<32x64xbf16>, vector<64x32xbf16>, vector<32x32xf32> -> vector<32x32xf32>
    %c0_41 = arith.constant 0 : index
    %c0_42 = arith.constant 0 : index
    %62 = vector.load %arg6[%c0_41, %c0_42] : memref<8x32xf32, #tpu.memory_space<vmem>>, vector<1x32xf32>
    %63 = vector.broadcast %62 : vector<1x32xf32> to vector<32x32xf32>
    %64 = arith.addf %61, %63 : vector<32x32xf32>
    %cst_43 = arith.constant 0.000000e+00 : f32
    %65 = vector.broadcast %cst_43 : f32 to vector<32x32xf32>
    %66 = arith.maximumf %64, %65 : vector<32x32xf32>
    %c128 = arith.constant 128 : index
    %c0_44 = arith.constant 0 : index
    %67 = vector.load %arg2[%c128, %c0_44] : memref<448x32xbf16, #tpu.memory_space<vmem>>, vector<32x32xbf16>
    %68 = arith.truncf %3 : vector<32x32xf32> to vector<32x32xbf16>
    %cst_45 = arith.constant dense<0.000000e+00> : vector<32x32xf32>
    %69 = tpu.matmul %67, %68, %cst_45 {dimension_numbers = #tpu.dot_dimension_numbers<[1], [0], [0], [1], [0, 0, 1, 1], [], []>} : vector<32x32xbf16>, vector<32x32xbf16>, vector<32x32xf32> -> vector<32x32xf32>
    %c160 = arith.constant 160 : index
    %c0_46 = arith.constant 0 : index
    %70 = vector.load %arg2[%c160, %c0_46] : memref<448x32xbf16, #tpu.memory_space<vmem>>, vector<32x32xbf16>
    %71 = arith.truncf %3 : vector<32x32xf32> to vector<32x32xbf16>
    %cst_47 = arith.constant dense<0.000000e+00> : vector<32x32xf32>
    %72 = tpu.matmul %70, %71, %cst_47 {dimension_numbers = #tpu.dot_dimension_numbers<[1], [0], [0], [1], [0, 0, 1, 1], [], []>} : vector<32x32xbf16>, vector<32x32xbf16>, vector<32x32xf32> -> vector<32x32xf32>
    %73 = tpu.concatenate %69, %72 in 1 : vector<32x32xf32>, vector<32x32xf32> -> vector<32x64xf32>
    %c192 = arith.constant 192 : index
    %c0_48 = arith.constant 0 : index
    %74 = vector.load %arg2[%c192, %c0_48] : memref<448x32xbf16, #tpu.memory_space<vmem>>, vector<32x32xbf16>
    %75 = arith.truncf %73 : vector<32x64xf32> to vector<32x64xbf16>
    %cst_49 = arith.constant dense<0.000000e+00> : vector<32x64xf32>
    %76 = tpu.matmul %74, %75, %cst_49 {dimension_numbers = #tpu.dot_dimension_numbers<[1], [0], [0], [1], [0, 0, 1, 1], [], []>} : vector<32x32xbf16>, vector<32x64xbf16>, vector<32x64xf32> -> vector<32x64xf32>
    %c224_50 = arith.constant 224 : index
    %c0_51 = arith.constant 0 : index
    %77 = vector.load %arg2[%c224_50, %c0_51] : memref<448x32xbf16, #tpu.memory_space<vmem>>, vector<32x32xbf16>
    %78 = arith.truncf %73 : vector<32x64xf32> to vector<32x64xbf16>
    %cst_52 = arith.constant dense<0.000000e+00> : vector<32x64xf32>
    %79 = tpu.matmul %77, %78, %cst_52 {dimension_numbers = #tpu.dot_dimension_numbers<[1], [0], [0], [1], [0, 0, 1, 1], [], []>} : vector<32x32xbf16>, vector<32x64xbf16>, vector<32x64xf32> -> vector<32x64xf32>
    %80 = tpu.concatenate %76, %79 in 1 : vector<32x64xf32>, vector<32x64xf32> -> vector<32x128xf32>
    %c256 = arith.constant 256 : index
    %c0_53 = arith.constant 0 : index
    %81 = vector.load %arg2[%c256, %c0_53] : memref<448x32xbf16, #tpu.memory_space<vmem>>, vector<32x32xbf16>
    %82 = arith.truncf %3 : vector<32x32xf32> to vector<32x32xbf16>
    %cst_54 = arith.constant dense<0.000000e+00> : vector<32x32xf32>
    %83 = tpu.matmul %81, %82, %cst_54 {dimension_numbers = #tpu.dot_dimension_numbers<[1], [0], [0], [1], [0, 0, 1, 1], [], []>} : vector<32x32xbf16>, vector<32x32xbf16>, vector<32x32xf32> -> vector<32x32xf32>
    %c288 = arith.constant 288 : index
    %c0_55 = arith.constant 0 : index
    %84 = vector.load %arg2[%c288, %c0_55] : memref<448x32xbf16, #tpu.memory_space<vmem>>, vector<32x32xbf16>
    %85 = arith.truncf %3 : vector<32x32xf32> to vector<32x32xbf16>
    %cst_56 = arith.constant dense<0.000000e+00> : vector<32x32xf32>
    %86 = tpu.matmul %84, %85, %cst_56 {dimension_numbers = #tpu.dot_dimension_numbers<[1], [0], [0], [1], [0, 0, 1, 1], [], []>} : vector<32x32xbf16>, vector<32x32xbf16>, vector<32x32xf32> -> vector<32x32xf32>
    %87 = tpu.concatenate %83, %86 in 1 : vector<32x32xf32>, vector<32x32xf32> -> vector<32x64xf32>
    %c320 = arith.constant 320 : index
    %c0_57 = arith.constant 0 : index
    %88 = vector.load %arg2[%c320, %c0_57] : memref<448x32xbf16, #tpu.memory_space<vmem>>, vector<32x32xbf16>
    %89 = arith.truncf %87 : vector<32x64xf32> to vector<32x64xbf16>
    %cst_58 = arith.constant dense<0.000000e+00> : vector<32x64xf32>
    %90 = tpu.matmul %88, %89, %cst_58 {dimension_numbers = #tpu.dot_dimension_numbers<[1], [0], [0], [1], [0, 0, 1, 1], [], []>} : vector<32x32xbf16>, vector<32x64xbf16>, vector<32x64xf32> -> vector<32x64xf32>
    %c352 = arith.constant 352 : index
    %c0_59 = arith.constant 0 : index
    %91 = vector.load %arg2[%c352, %c0_59] : memref<448x32xbf16, #tpu.memory_space<vmem>>, vector<32x32xbf16>
    %92 = arith.truncf %87 : vector<32x64xf32> to vector<32x64xbf16>
    %cst_60 = arith.constant dense<0.000000e+00> : vector<32x64xf32>
    %93 = tpu.matmul %91, %92, %cst_60 {dimension_numbers = #tpu.dot_dimension_numbers<[1], [0], [0], [1], [0, 0, 1, 1], [], []>} : vector<32x32xbf16>, vector<32x64xbf16>, vector<32x64xf32> -> vector<32x64xf32>
    %94 = tpu.concatenate %90, %93 in 1 : vector<32x64xf32>, vector<32x64xf32> -> vector<32x128xf32>
    %95 = arith.addf %80, %94 : vector<32x128xf32>
    %96 = tpu.concatenate %95, %4 in 1 : vector<32x128xf32>, vector<32x32xf32> -> vector<32x160xf32>
    %c384 = arith.constant 384 : index
    %c0_61 = arith.constant 0 : index
    %97 = vector.load %arg2[%c384, %c0_61] : memref<448x32xbf16, #tpu.memory_space<vmem>>, vector<32x32xbf16>
    %98 = arith.truncf %96 : vector<32x160xf32> to vector<32x160xbf16>
    %cst_62 = arith.constant dense<0.000000e+00> : vector<32x160xf32>
    %99 = tpu.matmul %97, %98, %cst_62 {dimension_numbers = #tpu.dot_dimension_numbers<[1], [0], [0], [1], [0, 0, 1, 1], [], []>} : vector<32x32xbf16>, vector<32x160xbf16>, vector<32x160xf32> -> vector<32x160xf32>
    %c416 = arith.constant 416 : index
    %c0_63 = arith.constant 0 : index
    %100 = vector.load %arg2[%c416, %c0_63] : memref<448x32xbf16, #tpu.memory_space<vmem>>, vector<32x32xbf16>
    %101 = arith.truncf %96 : vector<32x160xf32> to vector<32x160xbf16>
    %cst_64 = arith.constant dense<0.000000e+00> : vector<32x160xf32>
    %102 = tpu.matmul %100, %101, %cst_64 {dimension_numbers = #tpu.dot_dimension_numbers<[1], [0], [0], [1], [0, 0, 1, 1], [], []>} : vector<32x32xbf16>, vector<32x160xbf16>, vector<32x160xf32> -> vector<32x160xf32>
    %103 = tpu.concatenate %99, %102 in 1 : vector<32x160xf32>, vector<32x160xf32> -> vector<32x320xf32>
    %104 = tpu.concatenate %3, %103 in 1 : vector<32x32xf32>, vector<32x320xf32> -> vector<32x352xf32>
    %c448 = arith.constant 448 : index
    %c0_65 = arith.constant 0 : index
    %105 = vector.load %arg3[%c448, %c0_65] : memref<960x64xbf16, #tpu.memory_space<vmem>>, vector<352x64xbf16>
    %106 = arith.truncf %104 : vector<32x352xf32> to vector<32x352xbf16>
    %cst_66 = arith.constant dense<0.000000e+00> : vector<32x64xf32>
    %107 = tpu.matmul %106, %105, %cst_66 {dimension_numbers = #tpu.dot_dimension_numbers<[1], [0], [0], [1], [0, 0, 1, 1], [], []>} : vector<32x352xbf16>, vector<352x64xbf16>, vector<32x64xf32> -> vector<32x64xf32>
    %c2 = arith.constant 2 : index
    %c0_67 = arith.constant 0 : index
    %108 = vector.load %arg5[%c2, %c0_67] : memref<8x64xf32, #tpu.memory_space<vmem>>, vector<1x64xf32>
    %109 = vector.broadcast %108 : vector<1x64xf32> to vector<32x64xf32>
    %110 = arith.addf %107, %109 : vector<32x64xf32>
    %cst_68 = arith.constant 0.000000e+00 : f32
    %111 = vector.broadcast %cst_68 : f32 to vector<32x64xf32>
    %112 = arith.maximumf %110, %111 : vector<32x64xf32>
    %c128_69 = arith.constant 128 : index
    %c0_70 = arith.constant 0 : index
    %113 = vector.load %arg4[%c128_69, %c0_70] : memref<320x32xbf16, #tpu.memory_space<vmem>>, vector<64x32xbf16>
    %114 = arith.truncf %112 : vector<32x64xf32> to vector<32x64xbf16>
    %cst_71 = arith.constant dense<0.000000e+00> : vector<32x32xf32>
    %115 = tpu.matmul %114, %113, %cst_71 {dimension_numbers = #tpu.dot_dimension_numbers<[1], [0], [0], [1], [0, 0, 1, 1], [], []>} : vector<32x64xbf16>, vector<64x32xbf16>, vector<32x32xf32> -> vector<32x32xf32>
    %c2_72 = arith.constant 2 : index
    %c0_73 = arith.constant 0 : index
    %116 = vector.load %arg6[%c2_72, %c0_73] : memref<8x32xf32, #tpu.memory_space<vmem>>, vector<1x32xf32>
    %117 = vector.broadcast %116 : vector<1x32xf32> to vector<32x32xf32>
    %118 = arith.addf %115, %117 : vector<32x32xf32>
    %cst_74 = arith.constant 0.000000e+00 : f32
    %119 = vector.broadcast %cst_74 : f32 to vector<32x32xf32>
    %120 = arith.maximumf %118, %119 : vector<32x32xf32>
    %c800 = arith.constant 800 : index
    %c0_75 = arith.constant 0 : index
    %121 = vector.load %arg3[%c800, %c0_75] : memref<960x64xbf16, #tpu.memory_space<vmem>>, vector<160x64xbf16>
    %122 = arith.truncf %96 : vector<32x160xf32> to vector<32x160xbf16>
    %cst_76 = arith.constant dense<0.000000e+00> : vector<32x64xf32>
    %123 = tpu.matmul %122, %121, %cst_76 {dimension_numbers = #tpu.dot_dimension_numbers<[1], [0], [0], [1], [0, 0, 1, 1], [], []>} : vector<32x160xbf16>, vector<160x64xbf16>, vector<32x64xf32> -> vector<32x64xf32>
    %c3 = arith.constant 3 : index
    %c0_77 = arith.constant 0 : index
    %124 = vector.load %arg5[%c3, %c0_77] : memref<8x64xf32, #tpu.memory_space<vmem>>, vector<1x64xf32>
    %125 = vector.broadcast %124 : vector<1x64xf32> to vector<32x64xf32>
    %126 = arith.addf %123, %125 : vector<32x64xf32>
    %cst_78 = arith.constant 0.000000e+00 : f32
    %127 = vector.broadcast %cst_78 : f32 to vector<32x64xf32>
    %128 = arith.maximumf %126, %127 : vector<32x64xf32>
    %c192_79 = arith.constant 192 : index
    %c0_80 = arith.constant 0 : index
    %129 = vector.load %arg4[%c192_79, %c0_80] : memref<320x32xbf16, #tpu.memory_space<vmem>>, vector<64x32xbf16>
    %130 = arith.truncf %128 : vector<32x64xf32> to vector<32x64xbf16>
    %cst_81 = arith.constant dense<0.000000e+00> : vector<32x32xf32>
    %131 = tpu.matmul %130, %129, %cst_81 {dimension_numbers = #tpu.dot_dimension_numbers<[1], [0], [0], [1], [0, 0, 1, 1], [], []>} : vector<32x64xbf16>, vector<64x32xbf16>, vector<32x32xf32> -> vector<32x32xf32>
    %c3_82 = arith.constant 3 : index
    %c0_83 = arith.constant 0 : index
    %132 = vector.load %arg6[%c3_82, %c0_83] : memref<8x32xf32, #tpu.memory_space<vmem>>, vector<1x32xf32>
    %133 = vector.broadcast %132 : vector<1x32xf32> to vector<32x32xf32>
    %134 = arith.addf %131, %133 : vector<32x32xf32>
    %cst_84 = arith.constant 0.000000e+00 : f32
    %135 = vector.broadcast %cst_84 : f32 to vector<32x32xf32>
    %136 = arith.maximumf %134, %135 : vector<32x32xf32>
    %c256_85 = arith.constant 256 : index
    %c0_86 = arith.constant 0 : index
    %137 = vector.load %arg4[%c256_85, %c0_86] : memref<320x32xbf16, #tpu.memory_space<vmem>>, vector<64x32xbf16>
    %138 = tpu.concatenate %49, %120 in 1 : vector<32x32xf32>, vector<32x32xf32> -> vector<32x64xf32>
    %139 = arith.truncf %138 : vector<32x64xf32> to vector<32x64xbf16>
    %cst_87 = arith.constant dense<0.000000e+00> : vector<32x32xf32>
    %140 = tpu.matmul %139, %137, %cst_87 {dimension_numbers = #tpu.dot_dimension_numbers<[1], [0], [0], [1], [0, 0, 1, 1], [], []>} : vector<32x64xbf16>, vector<64x32xbf16>, vector<32x32xf32> -> vector<32x32xf32>
    %c4 = arith.constant 4 : index
    %c0_88 = arith.constant 0 : index
    %141 = vector.load %arg6[%c4, %c0_88] : memref<8x32xf32, #tpu.memory_space<vmem>>, vector<1x32xf32>
    %142 = vector.broadcast %141 : vector<1x32xf32> to vector<32x32xf32>
    %143 = arith.addf %140, %142 : vector<32x32xf32>
    %cst_89 = arith.constant 0.000000e+00 : f32
    %144 = vector.broadcast %cst_89 : f32 to vector<32x32xf32>
    %145 = arith.maximumf %143, %144 : vector<32x32xf32>
    %146 = arith.addf %2, %66 : vector<32x32xf32>
    %147 = arith.addf %3, %145 : vector<32x32xf32>
    %148 = arith.addf %4, %136 : vector<32x32xf32>
    %149 = tpu.concatenate %146, %147, %148 in 0 : vector<32x32xf32>, vector<32x32xf32>, vector<32x32xf32> -> vector<96x32xf32>
    %c0_90 = arith.constant 0 : index
    %c0_91 = arith.constant 0 : index
    %c0_92 = arith.constant 0 : index
    %150 = vector.load %arg7[%c0_90, %c0_91, %c0_92] : memref<1x96x32xf32, #tpu.memory_space<vmem>>, vector<1x96x32xf32>
    %151 = vector.shape_cast %150 : vector<1x96x32xf32> to vector<96x32xf32>
    %152 = vector.shape_cast %149 : vector<96x32xf32> to vector<1x96x32xf32>
    tpu.vector_store %arg7[%c0_90, %c0_91, %c0_92], %152 {strides = array<i32>} : memref<1x96x32xf32, #tpu.memory_space<vmem>>, vector<1x96x32xf32>,
    return
  }
  func.func @transform_0(%arg0: i32) -> (i32, i32, i32) {
    %c0_i32 = arith.constant 0 : i32
    %c0_i32_0 = arith.constant 0 : i32
    %c0_i32_1 = arith.constant 0 : i32
    return %arg0, %c0_i32, %c0_i32_0 : i32, i32, i32
  }
  func.func @transform_1(%arg0: i32) -> (i32, i32) {
    %c0_i32 = arith.constant 0 : i32
    %c0_i32_0 = arith.constant 0 : i32
    %c0_i32_1 = arith.constant 0 : i32
    return %c0_i32, %c0_i32_0 : i32, i32
  }
  func.func @transform_2(%arg0: i32) -> (i32, i32) {
    %c0_i32 = arith.constant 0 : i32
    %c0_i32_0 = arith.constant 0 : i32
    %c0_i32_1 = arith.constant 0 : i32
    return %c0_i32, %c0_i32_0 : i32, i32
  }
  func.func @transform_3(%arg0: i32) -> (i32, i32) {
    %c0_i32 = arith.constant 0 : i32
    %c0_i32_0 = arith.constant 0 : i32
    %c0_i32_1 = arith.constant 0 : i32
    return %c0_i32, %c0_i32_0 : i32, i32
  }
  func.func @transform_4(%arg0: i32) -> (i32, i32) {
    %c0_i32 = arith.constant 0 : i32
    %c0_i32_0 = arith.constant 0 : i32
    %c0_i32_1 = arith.constant 0 : i32
    return %c0_i32, %c0_i32_0 : i32, i32
  }
  func.func @transform_5(%arg0: i32) -> (i32, i32) {
    %c0_i32 = arith.constant 0 : i32
    %c0_i32_0 = arith.constant 0 : i32
    %c0_i32_1 = arith.constant 0 : i32
    return %c0_i32, %c0_i32_0 : i32, i32
  }
  func.func @transform_6(%arg0: i32) -> (i32, i32, i32) {
    %c0_i32 = arith.constant 0 : i32
    %c0_i32_0 = arith.constant 0 : i32
    %c0_i32_1 = arith.constant 0 : i32
    return %arg0, %c0_i32, %c0_i32_0 : i32, i32, i32
  }
}

</mosaic_0001>

<llo_original>
// kernel: forward.1
$region0: #{forward.1}
  #allocation0 [shape = 'u32[]', space=smem, size = 0x4, offset = 0x4, fixed_abs, tag = 'smem constant byte address 0x4 - core index']
  #allocation1 [shape = 'u32[144,128]{1,0:T(1,128)}', space=vmem, size = 0x12000, scoped, tag = 'internal scratch']
  %s0 = inlined_call_operand.vmem [shape: f32[2,96,32], index: 0, kind: input, shape index: {}]
  %s1 = inlined_call_operand.vmem [shape: bf16[448,32], index: 1, kind: input, shape index: {}]
  %s2 = inlined_call_operand.vmem [shape: bf16[960,64], index: 2, kind: input, shape index: {}]
  %s3 = inlined_call_operand.vmem [shape: bf16[320,32], index: 3, kind: input, shape index: {}]
  %s4 = inlined_call_operand.vmem [shape: f32[8,64], index: 4, kind: input, shape index: {}]
  %s5 = inlined_call_operand.vmem [shape: f32[8,32], index: 5, kind: input, shape index: {}]
  %s6 = inlined_call_operand.vmem [shape: f32[2,96,32], index: 6, kind: output, shape index: {}]
  %s7 = sld [smem:[#allocation0]]
  $region57: #{forward.1} parent=0
    _
  %s9 = ssub.s32 1, %s7
  %s10 = scalar_select 0, %s9, %s7
  loop: start=0, step=1, limit=4
  $region2: #{forward.1} parent=0 // loop_pre_header
    _
  $region3: #{forward.1} parent=0 // loop_header
    %s12 = sphi 0, %s16
    %p13 = scmp.ge.s32.totalorder %s12, 4
    %s22 = sphi 0, %s24
    %s25 = sphi 0, %s22
    %s26 = sphi 0, %s25
    %s42 = sphi 0, %s26
    %s46 = sphi 0, %s46
    %s48 = sphi 0, %s46
    %s49 = sphi 0, %s48
    %s63 = sphi 0, %s49
    %s67 = sphi 0, %s67
    %s69 = sphi 0, %s67
    %s70 = sphi 0, %s69
    %s84 = sphi 0, %s70
    %s88 = sphi 0, %s88
    %s90 = sphi 0, %s88
    %s91 = sphi 0, %s90
    %s105 = sphi 0, %s91
    %s109 = sphi 0, %s109
    %s111 = sphi 0, %s109
    %s112 = sphi 0, %s111
    %s126 = sphi 0, %s112
    %s130 = sphi 0, %s130
    %s132 = sphi 0, %s130
    %s133 = sphi 0, %s132
    %s147 = sphi 0, %s133
    %s153 = sphi 0, %s155
    %s156 = sphi 0, %s153
    %s157 = sphi 0, %s156
    %s173 = sphi 0, %s157
  $region4: #{forward.1} parent=0 // loop_header_branch
    %15 = sbr.rel (%p13) target = $region8
  $region5: #{forward.1} parent=0 // loop_body
    %s17 = ssub.s32 %s12, 1
    %s18 = ssub.s32 %s12, 2
    %s19 = sadd.s32 %s12, 1
    %s20 = ssub.s32 %s12, %s19
    %p21 = scmp.eq.s32.totalorder %s20, 0
    %s23 = sadd.s32 %s22, 1
    %s24 = scalar_select %p21, %s22, %s23
    %p27 = pneg %p21
    %p28 = scmp.eq.s32.totalorder %s12, 1
    %p29 = por %p27, %p28
    %p30 = scmp.ne.s32.totalorder %s22, %s25
    %p31 = scmp.eq.s32.totalorder %s12, 0
    %p32 = por %p30, %p31
    %p33 = scmp.ne.s32.totalorder %s22, %s25
    %p34 = scmp.eq.s32.totalorder %s17, 1
    %p35 = por %p33, %p34
    %p36 = scmp.ne.s32.totalorder %s25, %s26
    %p37 = scmp.eq.s32.totalorder %s17, 0
    %p38 = por %p36, %p37
    %p39 = scmp.ne.s32.totalorder %s25, %s26
    %p40 = scmp.eq.s32.totalorder %s18, 1
    %p41 = por %p39, %p40
    %p43 = scmp.ne.s32.totalorder %s26, %s42
    %p44 = scmp.eq.s32.totalorder %s18, 0
    %p45 = por %p43, %p44
    %s47 = sadd.s32 %s46, 1
    %p50 = scmp.eq.s32.totalorder %s12, 1
    %p51 = scmp.ne.s32.totalorder %s46, %s48
    %p52 = scmp.eq.s32.totalorder %s12, 0
    %p53 = por %p51, %p52
    %p54 = scmp.ne.s32.totalorder %s46, %s48
    %p55 = scmp.eq.s32.totalorder %s17, 1
    %p56 = por %p54, %p55
    %p57 = scmp.ne.s32.totalorder %s48, %s49
    %p58 = scmp.eq.s32.totalorder %s17, 0
    %p59 = por %p57, %p58
    %p60 = scmp.ne.s32.totalorder %s48, %s49
    %p61 = scmp.eq.s32.totalorder %s18, 1
    %p62 = por %p60, %p61
    %p64 = scmp.ne.s32.totalorder %s49, %s63
    %p65 = scmp.eq.s32.totalorder %s18, 0
    %p66 = por %p64, %p65
    %s68 = sadd.s32 %s67, 1
    %p71 = scmp.eq.s32.totalorder %s12, 1
    %p72 = scmp.ne.s32.totalorder %s67, %s69
    %p73 = scmp.eq.s32.totalorder %s12, 0
    %p74 = por %p72, %p73
    %p75 = scmp.ne.s32.totalorder %s67, %s69
    %p76 = scmp.eq.s32.totalorder %s17, 1
    %p77 = por %p75, %p76
    %p78 = scmp.ne.s32.totalorder %s69, %s70
    %p79 = scmp.eq.s32.totalorder %s17, 0
    %p80 = por %p78, %p79
    %p81 = scmp.ne.s32.totalorder %s69, %s70
    %p82 = scmp.eq.s32.totalorder %s18, 1
    %p83 = por %p81, %p82
    %p85 = scmp.ne.s32.totalorder %s70, %s84
    %p86 = scmp.eq.s32.totalorder %s18, 0
    %p87 = por %p85, %p86
    %s89 = sadd.s32 %s88, 1
    %p92 = scmp.eq.s32.totalorder %s12, 1
    %p93 = scmp.ne.s32.totalorder %s88, %s90
    %p94 = scmp.eq.s32.totalorder %s12, 0
    %p95 = por %p93, %p94
    %p96 = scmp.ne.s32.totalorder %s88, %s90
    %p97 = scmp.eq.s32.totalorder %s17, 1
    %p98 = por %p96, %p97
    %p99 = scmp.ne.s32.totalorder %s90, %s91
    %p100 = scmp.eq.s32.totalorder %s17, 0
    %p101 = por %p99, %p100
    %p102 = scmp.ne.s32.totalorder %s90, %s91
    %p103 = scmp.eq.s32.totalorder %s18, 1
    %p104 = por %p102, %p103
    %p106 = scmp.ne.s32.totalorder %s91, %s105
    %p107 = scmp.eq.s32.totalorder %s18, 0
    %p108 = por %p106, %p107
    %s110 = sadd.s32 %s109, 1
    %p113 = scmp.eq.s32.totalorder %s12, 1
    %p114 = scmp.ne.s32.totalorder %s109, %s111
    %p115 = scmp.eq.s32.totalorder %s12, 0
    %p116 = por %p114, %p115
    %p117 = scmp.ne.s32.totalorder %s109, %s111
    %p118 = scmp.eq.s32.totalorder %s17, 1
    %p119 = por %p117, %p118
    %p120 = scmp.ne.s32.totalorder %s111, %s112
    %p121 = scmp.eq.s32.totalorder %s17, 0
    %p122 = por %p120, %p121
    %p123 = scmp.ne.s32.totalorder %s111, %s112
    %p124 = scmp.eq.s32.totalorder %s18, 1
    %p125 = por %p123, %p124
    %p127 = scmp.ne.s32.totalorder %s112, %s126
    %p128 = scmp.eq.s32.totalorder %s18, 0
    %p129 = por %p127, %p128
    %s131 = sadd.s32 %s130, 1
    %p134 = scmp.eq.s32.totalorder %s12, 1
    %p135 = scmp.ne.s32.totalorder %s130, %s132
    %p136 = scmp.eq.s32.totalorder %s12, 0
    %p137 = por %p135, %p136
    %p138 = scmp.ne.s32.totalorder %s130, %s132
    %p139 = scmp.eq.s32.totalorder %s17, 1
    %p140 = por %p138, %p139
    %p141 = scmp.ne.s32.totalorder %s132, %s133
    %p142 = scmp.eq.s32.totalorder %s17, 0
    %p143 = por %p141, %p142
    %p144 = scmp.ne.s32.totalorder %s132, %s133
    %p145 = scmp.eq.s32.totalorder %s18, 1
    %p146 = por %p144, %p145
    %p148 = scmp.ne.s32.totalorder %s133, %s147
    %p149 = scmp.eq.s32.totalorder %s18, 0
    %p150 = por %p148, %p149
    %s151 = ssub.s32 %s12, %s19
    %p152 = scmp.eq.s32.totalorder %s151, 0
    %s154 = sadd.s32 %s153, 1
    %s155 = scalar_select %p152, %s153, %s154
    %p158 = pneg %p152
    %p159 = scmp.eq.s32.totalorder %s12, 1
    %p160 = por %p158, %p159
    %p161 = scmp.ne.s32.totalorder %s153, %s156
    %p162 = scmp.eq.s32.totalorder %s12, 0
    %p163 = por %p161, %p162
    %p164 = scmp.ne.s32.totalorder %s153, %s156
    %p165 = scmp.eq.s32.totalorder %s17, 1
    %p166 = por %p164, %p165
    %p167 = scmp.ne.s32.totalorder %s156, %s157
    %p168 = scmp.eq.s32.totalorder %s17, 0
    %p169 = por %p167, %p168
    %p170 = scmp.ne.s32.totalorder %s156, %s157
    %p171 = scmp.eq.s32.totalorder %s18, 1
    %p172 = por %p170, %p171
    %p174 = scmp.ne.s32.totalorder %s157, %s173
    %p175 = scmp.eq.s32.totalorder %s18, 0
    %p176 = por %p174, %p175
    %p177 = scmp.le.s32.totalorder 1, %s12
    %p178 = scmp.lt.s32.totalorder %s12, 3
    %p179 = pnand %p177, %p178
    %p180 = pneg %p179
    // Predicated region
    $region9: #{forward.1} parent=5 // pred_check
      _
    $region10: #{forward.1} parent=5 // pred_check_branch
      %182 = sbr.rel (%p179) target = $region12
    $region11: #{forward.1} parent=5 // pred_region
      %s183 = ssub.s32 %s12, 1
      // Predicated region
      $region13: #{forward.1} parent=11 // pred_check
        %p184 = pneg %p59
      $region14: #{forward.1} parent=11 // pred_check_branch
        %186 = sbr.rel (%p184) target = $region16
      $region15: #{forward.1} parent=11 // pred_region
        _
      $region16: #{forward.1} parent=11 // pred_fallthru
        _
      // Predicated region
      $region17: #{forward.1} parent=11 // pred_check
        %p187 = pneg %p80
      $region18: #{forward.1} parent=11 // pred_check_branch
        %189 = sbr.rel (%p187) target = $region20
      $region19: #{forward.1} parent=11 // pred_region
        _
      $region20: #{forward.1} parent=11 // pred_fallthru
        _
      // Predicated region
      $region21: #{forward.1} parent=11 // pred_check
        %p190 = pneg %p101
      $region22: #{forward.1} parent=11 // pred_check_branch
        %192 = sbr.rel (%p190) target = $region24
      $region23: #{forward.1} parent=11 // pred_region
        _
      $region24: #{forward.1} parent=11 // pred_fallthru
        _
      // Predicated region
      $region25: #{forward.1} parent=11 // pred_check
        %p193 = pneg %p122
      $region26: #{forward.1} parent=11 // pred_check_branch
        %195 = sbr.rel (%p193) target = $region28
      $region27: #{forward.1} parent=11 // pred_region
        _
      $region28: #{forward.1} parent=11 // pred_fallthru
        _
      // Predicated region
      $region29: #{forward.1} parent=11 // pred_check
        %p196 = pneg %p143
      $region30: #{forward.1} parent=11 // pred_check_branch
        %198 = sbr.rel (%p196) target = $region32
      $region31: #{forward.1} parent=11 // pred_region
        _
      $region32: #{forward.1} parent=11 // pred_fallthru
        _
    $region12: #{forward.1} parent=5 // pred_fallthru
      _
    %p199 = scmp.lt.s32.totalorder %s12, 2
    // Predicated region
    $region33: #{forward.1} parent=5 // pred_check
      %p200 = pneg %p199
    $region34: #{forward.1} parent=5 // pred_check_branch
      %202 = sbr.rel (%p200) target = $region36
    $region35: #{forward.1} parent=5 // pred_region
      // Predicated region
      $region37: #{forward.1} parent=35 // pred_check
        %p203 = pneg %p32
      $region38: #{forward.1} parent=35 // pred_check_branch
        %205 = sbr.rel (%p203) target = $region40
      $region39: #{forward.1} parent=35 // pred_region
        %p206 = scmp.lt.s32.totalorder %s12, 1
        %s207 = scalar_select %p206, %s12, 1
        %s208 = smul.addr %s207, 12
        %s209 = smul.addr %s208, 8
        %s210 = scalar_lea.vmem %s0, %s209
      $region40: #{forward.1} parent=35 // pred_fallthru
        _
    $region36: #{forward.1} parent=5 // pred_fallthru
      _
    %p211 = scmp.le.s32.totalorder 1, %s12
    %p212 = scmp.lt.s32.totalorder %s12, 3
    %p213 = pnand %p211, %p212
    %p214 = pneg %p213
    // Predicated region
    $region41: #{forward.1} parent=5 // pred_check
      _
    $region42: #{forward.1} parent=5 // pred_check_branch
      %216 = sbr.rel (%p213) target = $region44
    $region43: #{forward.1} parent=5 // pred_region
      %s217 = ssub.s32 %s12, 1
      %p218 = scmp.lt.s32.totalorder %s17, 1
      %s219 = scalar_select %p218, %s17, 1
      %s220 = smul.addr %s219, 12
      %s221 = smul.addr %s220, 8
      %s222 = scalar_lea.vmem %s0, %s221
      %p223 = pneg %p38
      %p224 = pneg %p35
      %p225 = pneg %p59
      %p226 = pneg %p56
      %p227 = pneg %p80
      %p228 = pneg %p77
      %p229 = pneg %p101
      %p230 = pneg %p98
      %p231 = pneg %p122
      %p232 = pneg %p119
      %p233 = pneg %p143
      %p234 = pneg %p140
      %p235 = pneg %p169
      %p236 = pneg %p166
      %p237 = scmp.lt.s32.totalorder %s17, 1
      %s238 = scalar_select %p237, %s17, 1
      %s239 = smul.addr %s238, 12
      %s240 = smul.addr %s239, 8
      %s241 = scalar_lea.vmem %s6, %s240
      %p242 = scmp.lt.s32.totalorder %s17, 1
      %s243 = scalar_select %p242, %s17, 1
      %s244 = smul.addr %s243, 12
      %s245 = smul.addr %s244, 8
      %s246 = scalar_lea.vmem %s0, %s245
      %p247 = scmp.lt.s32.totalorder %s17, 1
      %s248 = scalar_select %p247, %s17, 1
      %s249 = smul.addr %s248, 12
      %s250 = smul.addr %s249, 8
      %s251 = scalar_lea.vmem %s6, %s250
      %v253 = vld [vmem:[%s246] sm:$0xff]
      %v254 = vld [vmem:[%s246 + $0x8] sm:$0xff]
      %v255 = vld [vmem:[%s246 + $0x10] sm:$0xff]
      %v256 = vld [vmem:[%s246 + $0x18] sm:$0xff]
      %v257 = vld [vmem:[%s246 + $0x20] sm:$0xff]
      %v258 = vld [vmem:[%s246 + $0x28] sm:$0xff]
      %v259 = vld [vmem:[%s246 + $0x30] sm:$0xff]
      %v260 = vld [vmem:[%s246 + $0x38] sm:$0xff]
      %v261 = vld [vmem:[%s246 + $0x40] sm:$0xff]
      %v262 = vld [vmem:[%s246 + $0x48] sm:$0xff]
      %v263 = vld [vmem:[%s246 + $0x50] sm:$0xff]
      %v264 = vld [vmem:[%s246 + $0x58] sm:$0xff]
      %v265 = vld [vmem:[%s1] sm:$0xf]
      %v266 = vld [vmem:[%s1 + $0x4] sm:$0xf]
      %v267 = vld [vmem:[%s1 + $0x8] sm:$0xf]
      %v268 = vld [vmem:[%s1 + $0xc] sm:$0xf]
      %v269 = vpack.c.bf16 %v254, %v253
      %v270 = vpack.c.bf16 %v256, %v255
      %v275 = vunpack.c.l.b16 %v265
      %v276 = vunpack.c.l.b16 %v266
      %v277 = vunpack.c.l.b16 %v267
      %v278 = vunpack.c.l.b16 %v268
      %v279 = vpack.c.b16 %v276, %v275
      %v280 = vpack.c.b16 %v278, %v277
      %vm281 = vcmask 261120
      %v283 = vsel %vm281, %v279, 0
      %v286 = vsel %vm281, %v280, 0
      %288 = vmatprep.subr.bf16.mxu0 0
      %289 = vmatpush1.bf16.msra.mxu0 0
      %290 = vmatprep.subr.bf16.mxu0 0
      %291 = vmatpush1.bf16.msra.mxu0 0
      %292 = vmatprep.subr.bf16.mxu0 0
      %293 = vmatpush1.bf16.msra.mxu0 0
      %294 = vmatprep.subr.bf16.mxu0 0
      %295 = vmatpush1.bf16.msra.mxu0 0
      %296 = vmatprep.subr.bf16.mxu0 0
      %297 = vmatpush1.bf16.msra.mxu0 0
      %298 = vmatprep.subr.bf16.mxu0 0
      %299 = vmatpush1.bf16.msra.mxu0 0
      %300 = vmatprep.subr.bf16.mxu0 0
      %301 = vmatpush1.bf16.msra.mxu0 %v270
      %302 = vmatprep.subr.bf16.mxu0 0
      %303 = vmatpush1.bf16.msra.mxu0 %v269
      %304 = vmatprep.subr.bf16.mxu0 0
      %305 = vmatpush2.bf16.msra.mxu0 0
      %306 = vmatprep.subr.bf16.mxu0 0
      %307 = vmatpush2.bf16.msra.mxu0 0
      %308 = vmatprep.subr.bf16.mxu0 0
      %309 = vmatpush2.bf16.msra.mxu0 0
      %310 = vmatprep.subr.bf16.mxu0 0
      %311 = vmatpush2.bf16.msra.mxu0 0
      %312 = vmatprep.subr.bf16.mxu0 0
      %313 = vmatpush2.bf16.msra.mxu0 0
      %314 = vmatprep.subr.bf16.mxu0 0
      %315 = vmatpush2.bf16.msra.mxu0 0
      %316 = vmatprep.subr.bf16.mxu0 0
      %317 = vmatpush2.bf16.msra.mxu0 0
      %318 = vmatprep.subr.bf16.mxu0 0
      %319 = vmatpush2.bf16.msra.mxu0 0
      %320 = vmatprep.mubr.bf16.mxu0 0
      %321 = vmatmul.mubr.bf16.gmra.mxu0 %v283
      %v322 = vpop.f32.mrf.mxu0
      %v323 = vadd.f32 0.0, %v322
      %v324 = vpop.f32.mrf.mxu0
      %v325 = vpop.f32.mrf.mxu0
      %v326 = vadd.f32 0.0, %v325
      %v327 = vpop.f32.mrf.mxu0
      %328 = vmatprep.mubr.bf16.mxu0 0
      %329 = vmatmul.mubr.bf16.gmra.mxu0 %v286
      %v330 = vpop.f32.mrf.mxu0
      %v331 = vadd.f32 0.0, %v330
      %v332 = vpop.f32.mrf.mxu0
      %v333 = vpop.f32.mrf.mxu0
      %v334 = vadd.f32 0.0, %v333
      %v335 = vpop.f32.mrf.mxu0
      %336 = vdwg.mxu0
      %v337 = vld [vmem:[%s1 + $0x10] sm:$0xf]
      %v338 = vld [vmem:[%s1 + $0x14] sm:$0xf]
      %v339 = vld [vmem:[%s1 + $0x18] sm:$0xf]
      %v340 = vld [vmem:[%s1 + $0x1c] sm:$0xf]
      %v341 = vpack.c.bf16 %v326, %v323
      %v342 = vpack.c.bf16 %v334, %v331
      %v347 = vunpack.c.l.b16 %v337
      %v348 = vunpack.c.l.b16 %v338
      %v349 = vunpack.c.l.b16 %v339
      %v350 = vunpack.c.l.b16 %v340
      %v351 = vpack.c.b16 %v348, %v347
      %v352 = vpack.c.b16 %v350, %v349
      %v354 = vsel %vm281, %v351, 0
      %v357 = vsel %vm281, %v352, 0
      %359 = vmatprep.subr.bf16.mxu0 0
      %360 = vmatpush1.bf16.msra.mxu0 0
      %361 = vmatprep.subr.bf16.mxu0 0
      %362 = vmatpush1.bf16.msra.mxu0 0
      %363 = vmatprep.subr.bf16.mxu0 0
      %364 = vmatpush1.bf16.msra.mxu0 0
      %365 = vmatprep.subr.bf16.mxu0 0
      %366 = vmatpush1.bf16.msra.mxu0 0
      %367 = vmatprep.subr.bf16.mxu0 0
      %368 = vmatpush1.bf16.msra.mxu0 0
      %369 = vmatprep.subr.bf16.mxu0 0
      %370 = vmatpush1.bf16.msra.mxu0 0
      %371 = vmatprep.subr.bf16.mxu0 0
      %372 = vmatpush1.bf16.msra.mxu0 %v342
      %373 = vmatprep.subr.bf16.mxu0 0
      %374 = vmatpush1.bf16.msra.mxu0 %v341
      %375 = vmatprep.subr.bf16.mxu0 0
      %376 = vmatpush2.bf16.msra.mxu0 0
      %377 = vmatprep.subr.bf16.mxu0 0
      %378 = vmatpush2.bf16.msra.mxu0 0
      %379 = vmatprep.subr.bf16.mxu0 0
      %380 = vmatpush2.bf16.msra.mxu0 0
      %381 = vmatprep.subr.bf16.mxu0 0
      %382 = vmatpush2.bf16.msra.mxu0 0
      %383 = vmatprep.subr.bf16.mxu0 0
      %384 = vmatpush2.bf16.msra.mxu0 0
      %385 = vmatprep.subr.bf16.mxu0 0
      %386 = vmatpush2.bf16.msra.mxu0 0
      %387 = vmatprep.subr.bf16.mxu0 0
      %388 = vmatpush2.bf16.msra.mxu0 0
      %389 = vmatprep.subr.bf16.mxu0 0
      %390 = vmatpush2.bf16.msra.mxu0 0
      %391 = vmatprep.mubr.bf16.mxu0 0
      %392 = vmatmul.mubr.bf16.gmra.mxu0 %v354
      %v393 = vpop.f32.mrf.mxu0
      %v394 = vadd.f32 0.0, %v393
      %v395 = vpop.f32.mrf.mxu0
      %v396 = vpop.f32.mrf.mxu0
      %v397 = vadd.f32 0.0, %v396
      %v398 = vpop.f32.mrf.mxu0
      %399 = vmatprep.mubr.bf16.mxu0 0
      %400 = vmatmul.mubr.bf16.gmra.mxu0 %v357
      %v401 = vpop.f32.mrf.mxu0
      %v402 = vadd.f32 0.0, %v401
      %v403 = vpop.f32.mrf.mxu0
      %v404 = vpop.f32.mrf.mxu0
      %v405 = vadd.f32 0.0, %v404
      %v406 = vpop.f32.mrf.mxu0
      %407 = vdwg.mxu0
      %v408 = vld [vmem:[%s1 + $0x20] sm:$0xf]
      %v409 = vld [vmem:[%s1 + $0x24] sm:$0xf]
      %v410 = vld [vmem:[%s1 + $0x28] sm:$0xf]
      %v411 = vld [vmem:[%s1 + $0x2c] sm:$0xf]
      %v416 = vunpack.c.l.b16 %v408
      %v417 = vunpack.c.l.b16 %v409
      %v418 = vunpack.c.l.b16 %v410
      %v419 = vunpack.c.l.b16 %v411
      %v420 = vpack.c.b16 %v417, %v416
      %v421 = vpack.c.b16 %v419, %v418
      %v423 = vsel %vm281, %v420, 0
      %v426 = vsel %vm281, %v421, 0
      %428 = vmatprep.subr.bf16.mxu0 0
      %429 = vmatpush1.bf16.msra.mxu0 0
      %430 = vmatprep.subr.bf16.mxu0 0
      %431 = vmatpush1.bf16.msra.mxu0 0
      %432 = vmatprep.subr.bf16.mxu0 0
      %433 = vmatpush1.bf16.msra.mxu0 0
      %434 = vmatprep.subr.bf16.mxu0 0
      %435 = vmatpush1.bf16.msra.mxu0 0
      %436 = vmatprep.subr.bf16.mxu0 0
      %437 = vmatpush1.bf16.msra.mxu0 0
      %438 = vmatprep.subr.bf16.mxu0 0
      %439 = vmatpush1.bf16.msra.mxu0 0
      %440 = vmatprep.subr.bf16.mxu0 0
      %441 = vmatpush1.bf16.msra.mxu0 %v342
      %442 = vmatprep.subr.bf16.mxu0 0
      %443 = vmatpush1.bf16.msra.mxu0 %v341
      %444 = vmatprep.subr.bf16.mxu0 0
      %445 = vmatpush2.bf16.msra.mxu0 0
      %446 = vmatprep.subr.bf16.mxu0 0
      %447 = vmatpush2.bf16.msra.mxu0 0
      %448 = vmatprep.subr.bf16.mxu0 0
      %449 = vmatpush2.bf16.msra.mxu0 0
      %450 = vmatprep.subr.bf16.mxu0 0
      %451 = vmatpush2.bf16.msra.mxu0 0
      %452 = vmatprep.subr.bf16.mxu0 0
      %453 = vmatpush2.bf16.msra.mxu0 0
      %454 = vmatprep.subr.bf16.mxu0 0
      %455 = vmatpush2.bf16.msra.mxu0 0
      %456 = vmatprep.subr.bf16.mxu0 0
      %457 = vmatpush2.bf16.msra.mxu0 0
      %458 = vmatprep.subr.bf16.mxu0 0
      %459 = vmatpush2.bf16.msra.mxu0 0
      %460 = vmatprep.mubr.bf16.mxu0 0
      %461 = vmatmul.mubr.bf16.gmra.mxu0 %v423
      %v462 = vpop.f32.mrf.mxu0
      %v463 = vadd.f32 0.0, %v462
      %v464 = vpop.f32.mrf.mxu0
      %v465 = vpop.f32.mrf.mxu0
      %v466 = vadd.f32 0.0, %v465
      %v467 = vpop.f32.mrf.mxu0
      %468 = vmatprep.mubr.bf16.mxu0 0
      %469 = vmatmul.mubr.bf16.gmra.mxu0 %v426
      %v470 = vpop.f32.mrf.mxu0
      %v471 = vadd.f32 0.0, %v470
      %v472 = vpop.f32.mrf.mxu0
      %v473 = vpop.f32.mrf.mxu0
      %v474 = vadd.f32 0.0, %v473
      %v475 = vpop.f32.mrf.mxu0
      %476 = vdwg.mxu0
      %481 = vrot.lane.b32.xlu0 %v463, 32
      %v482 = vpop.permute.xlu0 %481
      %483 = vrot.lane.b32.xlu0 %v466, 32
      %v484 = vpop.permute.xlu0 %483
      %485 = vrot.lane.b32.xlu0 %v471, 32
      %v486 = vpop.permute.xlu0 %485
      %487 = vrot.lane.b32.xlu0 %v474, 32
      %v488 = vpop.permute.xlu0 %487
      %v493 = vsel %vm281, %v394, %v482
      %v494 = vsel %vm281, %v397, %v484
      %v495 = vsel %vm281, %v402, %v486
      %v496 = vsel %vm281, %v405, %v488
      %v497 = vpack.c.bf16 %v258, %v257
      %v498 = vpack.c.bf16 %v260, %v259
      %499 = vmatprep.subr.bf16.mxu0 0
      %500 = vmatpush1.bf16.msra.mxu0 0
      %501 = vmatprep.subr.bf16.mxu0 0
      %502 = vmatpush1.bf16.msra.mxu0 0
      %503 = vmatprep.subr.bf16.mxu0 0
      %504 = vmatpush1.bf16.msra.mxu0 0
      %505 = vmatprep.subr.bf16.mxu0 0
      %506 = vmatpush1.bf16.msra.mxu0 0
      %507 = vmatprep.subr.bf16.mxu0 0
      %508 = vmatpush1.bf16.msra.mxu0 0
      %509 = vmatprep.subr.bf16.mxu0 0
      %510 = vmatpush1.bf16.msra.mxu0 0
      %511 = vmatprep.subr.bf16.mxu0 0
      %512 = vmatpush1.bf16.msra.mxu0 %v498
      %513 = vmatprep.subr.bf16.mxu0 0
      %514 = vmatpush1.bf16.msra.mxu0 %v497
      %515 = vmatprep.subr.bf16.mxu0 0
      %516 = vmatpush2.bf16.msra.mxu0 0
      %517 = vmatprep.subr.bf16.mxu0 0
      %518 = vmatpush2.bf16.msra.mxu0 0
      %519 = vmatprep.subr.bf16.mxu0 0
      %520 = vmatpush2.bf16.msra.mxu0 0
      %521 = vmatprep.subr.bf16.mxu0 0
      %522 = vmatpush2.bf16.msra.mxu0 0
      %523 = vmatprep.subr.bf16.mxu0 0
      %524 = vmatpush2.bf16.msra.mxu0 0
      %525 = vmatprep.subr.bf16.mxu0 0
      %526 = vmatpush2.bf16.msra.mxu0 0
      %527 = vmatprep.subr.bf16.mxu0 0
      %528 = vmatpush2.bf16.msra.mxu0 0
      %529 = vmatprep.subr.bf16.mxu0 0
      %530 = vmatpush2.bf16.msra.mxu0 0
      %531 = vmatprep.mubr.bf16.mxu0 0
      %532 = vmatmul.mubr.bf16.gmra.mxu0 %v354
      %v533 = vpop.f32.mrf.mxu0
      %v534 = vadd.f32 0.0, %v533
      %v535 = vpop.f32.mrf.mxu0
      %v536 = vpop.f32.mrf.mxu0
      %v537 = vadd.f32 0.0, %v536
      %v538 = vpop.f32.mrf.mxu0
      %539 = vmatprep.mubr.bf16.mxu0 0
      %540 = vmatmul.mubr.bf16.gmra.mxu0 %v357
      %v541 = vpop.f32.mrf.mxu0
      %v542 = vadd.f32 0.0, %v541
      %v543 = vpop.f32.mrf.mxu0
      %v544 = vpop.f32.mrf.mxu0
      %v545 = vadd.f32 0.0, %v544
      %v546 = vpop.f32.mrf.mxu0
      %547 = vdwg.mxu0
      %548 = vmatprep.subr.bf16.mxu0 0
      %549 = vmatpush1.bf16.msra.mxu0 0
      %550 = vmatprep.subr.bf16.mxu0 0
      %551 = vmatpush1.bf16.msra.mxu0 0
      %552 = vmatprep.subr.bf16.mxu0 0
      %553 = vmatpush1.bf16.msra.mxu0 0
      %554 = vmatprep.subr.bf16.mxu0 0
      %555 = vmatpush1.bf16.msra.mxu0 0
      %556 = vmatprep.subr.bf16.mxu0 0
      %557 = vmatpush1.bf16.msra.mxu0 0
      %558 = vmatprep.subr.bf16.mxu0 0
      %559 = vmatpush1.bf16.msra.mxu0 0
      %560 = vmatprep.subr.bf16.mxu0 0
      %561 = vmatpush1.bf16.msra.mxu0 %v498
      %562 = vmatprep.subr.bf16.mxu0 0
      %563 = vmatpush1.bf16.msra.mxu0 %v497
      %564 = vmatprep.subr.bf16.mxu0 0
      %565 = vmatpush2.bf16.msra.mxu0 0
      %566 = vmatprep.subr.bf16.mxu0 0
      %567 = vmatpush2.bf16.msra.mxu0 0
      %568 = vmatprep.subr.bf16.mxu0 0
      %569 = vmatpush2.bf16.msra.mxu0 0
      %570 = vmatprep.subr.bf16.mxu0 0
      %571 = vmatpush2.bf16.msra.mxu0 0
      %572 = vmatprep.subr.bf16.mxu0 0
      %573 = vmatpush2.bf16.msra.mxu0 0
      %574 = vmatprep.subr.bf16.mxu0 0
      %575 = vmatpush2.bf16.msra.mxu0 0
      %576 = vmatprep.subr.bf16.mxu0 0
      %577 = vmatpush2.bf16.msra.mxu0 0
      %578 = vmatprep.subr.bf16.mxu0 0
      %579 = vmatpush2.bf16.msra.mxu0 0
      %580 = vmatprep.mubr.bf16.mxu0 0
      %581 = vmatmul.mubr.bf16.gmra.mxu0 %v423
      %v582 = vpop.f32.mrf.mxu0
      %v583 = vadd.f32 0.0, %v582
      %v584 = vpop.f32.mrf.mxu0
      %v585 = vpop.f32.mrf.mxu0
      %v586 = vadd.f32 0.0, %v585
      %v587 = vpop.f32.mrf.mxu0
      %588 = vmatprep.mubr.bf16.mxu0 0
      %589 = vmatmul.mubr.bf16.gmra.mxu0 %v426
      %v590 = vpop.f32.mrf.mxu0
      %v591 = vadd.f32 0.0, %v590
      %v592 = vpop.f32.mrf.mxu0
      %v593 = vpop.f32.mrf.mxu0
      %v594 = vadd.f32 0.0, %v593
      %v595 = vpop.f32.mrf.mxu0
      %596 = vdwg.mxu0
      %601 = vrot.lane.b32.xlu0 %v583, 32
      %v602 = vpop.permute.xlu0 %601
      %603 = vrot.lane.b32.xlu0 %v586, 32
      %v604 = vpop.permute.xlu0 %603
      %605 = vrot.lane.b32.xlu0 %v591, 32
      %v606 = vpop.permute.xlu0 %605
      %607 = vrot.lane.b32.xlu0 %v594, 32
      %v608 = vpop.permute.xlu0 %607
      %v613 = vsel %vm281, %v534, %v602
      %v614 = vsel %vm281, %v537, %v604
      %v615 = vsel %vm281, %v542, %v606
      %v616 = vsel %vm281, %v545, %v608
      %v617 = vpack.c.bf16 %v614, %v613
      %v618 = vpack.c.bf16 %v616, %v615
      %619 = vmatprep.subr.bf16.mxu0 0
      %620 = vmatpush1.bf16.msra.mxu0 0
      %621 = vmatprep.subr.bf16.mxu0 0
      %622 = vmatpush1.bf16.msra.mxu0 0
      %623 = vmatprep.subr.bf16.mxu0 0
      %624 = vmatpush1.bf16.msra.mxu0 0
      %625 = vmatprep.subr.bf16.mxu0 0
      %626 = vmatpush1.bf16.msra.mxu0 0
      %627 = vmatprep.subr.bf16.mxu0 0
      %628 = vmatpush1.bf16.msra.mxu0 0
      %629 = vmatprep.subr.bf16.mxu0 0
      %630 = vmatpush1.bf16.msra.mxu0 0
      %631 = vmatprep.subr.bf16.mxu0 0
      %632 = vmatpush1.bf16.msra.mxu0 %v618
      %633 = vmatprep.subr.bf16.mxu0 0
      %634 = vmatpush1.bf16.msra.mxu0 %v617
      %635 = vmatprep.subr.bf16.mxu0 0
      %636 = vmatpush2.bf16.msra.mxu0 0
      %637 = vmatprep.subr.bf16.mxu0 0
      %638 = vmatpush2.bf16.msra.mxu0 0
      %639 = vmatprep.subr.bf16.mxu0 0
      %640 = vmatpush2.bf16.msra.mxu0 0
      %641 = vmatprep.subr.bf16.mxu0 0
      %642 = vmatpush2.bf16.msra.mxu0 0
      %643 = vmatprep.subr.bf16.mxu0 0
      %644 = vmatpush2.bf16.msra.mxu0 0
      %645 = vmatprep.subr.bf16.mxu0 0
      %646 = vmatpush2.bf16.msra.mxu0 0
      %647 = vmatprep.subr.bf16.mxu0 0
      %648 = vmatpush2.bf16.msra.mxu0 0
      %649 = vmatprep.subr.bf16.mxu0 0
      %650 = vmatpush2.bf16.msra.mxu0 0
      %651 = vmatprep.mubr.bf16.mxu0 0
      %652 = vmatmul.mubr.bf16.gmra.mxu0 %v354
      %v653 = vpop.f32.mrf.mxu0
      %v654 = vadd.f32 0.0, %v653
      %v655 = vpop.f32.mrf.mxu0
      %v656 = vpop.f32.mrf.mxu0
      %v657 = vadd.f32 0.0, %v656
      %v658 = vpop.f32.mrf.mxu0
      %659 = vmatprep.mubr.bf16.mxu0 0
      %660 = vmatmul.mubr.bf16.gmra.mxu0 %v357
      %v661 = vpop.f32.mrf.mxu0
      %v662 = vadd.f32 0.0, %v661
      %v663 = vpop.f32.mrf.mxu0
      %v664 = vpop.f32.mrf.mxu0
      %v665 = vadd.f32 0.0, %v664
      %v666 = vpop.f32.mrf.mxu0
      %667 = vdwg.mxu0
      %668 = vmatprep.subr.bf16.mxu0 0
      %669 = vmatpush1.bf16.msra.mxu0 0
      %670 = vmatprep.subr.bf16.mxu0 0
      %671 = vmatpush1.bf16.msra.mxu0 0
      %672 = vmatprep.subr.bf16.mxu0 0
      %673 = vmatpush1.bf16.msra.mxu0 0
      %674 = vmatprep.subr.bf16.mxu0 0
      %675 = vmatpush1.bf16.msra.mxu0 0
      %676 = vmatprep.subr.bf16.mxu0 0
      %677 = vmatpush1.bf16.msra.mxu0 0
      %678 = vmatprep.subr.bf16.mxu0 0
      %679 = vmatpush1.bf16.msra.mxu0 0
      %680 = vmatprep.subr.bf16.mxu0 0
      %681 = vmatpush1.bf16.msra.mxu0 %v618
      %682 = vmatprep.subr.bf16.mxu0 0
      %683 = vmatpush1.bf16.msra.mxu0 %v617
      %684 = vmatprep.subr.bf16.mxu0 0
      %685 = vmatpush2.bf16.msra.mxu0 0
      %686 = vmatprep.subr.bf16.mxu0 0
      %687 = vmatpush2.bf16.msra.mxu0 0
      %688 = vmatprep.subr.bf16.mxu0 0
      %689 = vmatpush2.bf16.msra.mxu0 0
      %690 = vmatprep.subr.bf16.mxu0 0
      %691 = vmatpush2.bf16.msra.mxu0 0
      %692 = vmatprep.subr.bf16.mxu0 0
      %693 = vmatpush2.bf16.msra.mxu0 0
      %694 = vmatprep.subr.bf16.mxu0 0
      %695 = vmatpush2.bf16.msra.mxu0 0
      %696 = vmatprep.subr.bf16.mxu0 0
      %697 = vmatpush2.bf16.msra.mxu0 0
      %698 = vmatprep.subr.bf16.mxu0 0
      %699 = vmatpush2.bf16.msra.mxu0 0
      %700 = vmatprep.mubr.bf16.mxu0 0
      %701 = vmatmul.mubr.bf16.gmra.mxu0 %v423
      %v702 = vpop.f32.mrf.mxu0
      %v703 = vadd.f32 0.0, %v702
      %v704 = vpop.f32.mrf.mxu0
      %v705 = vpop.f32.mrf.mxu0
      %v706 = vadd.f32 0.0, %v705
      %v707 = vpop.f32.mrf.mxu0
      %708 = vmatprep.mubr.bf16.mxu0 0
      %709 = vmatmul.mubr.bf16.gmra.mxu0 %v426
      %v710 = vpop.f32.mrf.mxu0
      %v711 = vadd.f32 0.0, %v710
      %v712 = vpop.f32.mrf.mxu0
      %v713 = vpop.f32.mrf.mxu0
      %v714 = vadd.f32 0.0, %v713
      %v715 = vpop.f32.mrf.mxu0
      %716 = vdwg.mxu0
      %721 = vrot.lane.b32.xlu0 %v703, 64
      %v722 = vpop.permute.xlu0 %721
      %723 = vrot.lane.b32.xlu0 %v706, 64
      %v724 = vpop.permute.xlu0 %723
      %725 = vrot.lane.b32.xlu0 %v711, 64
      %v726 = vpop.permute.xlu0 %725
      %727 = vrot.lane.b32.xlu0 %v714, 64
      %v728 = vpop.permute.xlu0 %727
      %vm733 = vcmask 523264
      %v734 = vsel %vm733, %v654, %v722
      %v735 = vsel %vm733, %v657, %v724
      %v736 = vsel %vm733, %v662, %v726
      %v737 = vsel %vm733, %v665, %v728
      %v738 = vld [vmem:[%s1 + $0x30] sm:$0xf]
      %v739 = vld [vmem:[%s1 + $0x34] sm:$0xf]
      %v740 = vld [vmem:[%s1 + $0x38] sm:$0xf]
      %v741 = vld [vmem:[%s1 + $0x3c] sm:$0xf]
      %v742 = vpack.c.bf16 %v735, %v734
      %v743 = vpack.c.bf16 %v494, %v493
      %v744 = vpack.c.bf16 %v737, %v736
      %v745 = vpack.c.bf16 %v496, %v495
      %v750 = vunpack.c.l.b16 %v738
      %v751 = vunpack.c.l.b16 %v739
      %v752 = vunpack.c.l.b16 %v740
      %v753 = vunpack.c.l.b16 %v741
      %v754 = vpack.c.b16 %v751, %v750
      %v755 = vpack.c.b16 %v753, %v752
      %v757 = vsel %vm281, %v754, 0
      %v760 = vsel %vm281, %v755, 0
      %762 = vmatprep.subr.bf16.mxu0 0
      %763 = vmatpush1.bf16.msra.mxu0 0
      %764 = vmatprep.subr.bf16.mxu0 0
      %765 = vmatpush1.bf16.msra.mxu0 0
      %766 = vmatprep.subr.bf16.mxu0 0
      %767 = vmatpush1.bf16.msra.mxu0 0
      %768 = vmatprep.subr.bf16.mxu0 0
      %769 = vmatpush1.bf16.msra.mxu0 0
      %770 = vmatprep.subr.bf16.mxu0 0
      %771 = vmatpush1.bf16.msra.mxu0 0
      %772 = vmatprep.subr.bf16.mxu0 0
      %773 = vmatpush1.bf16.msra.mxu0 0
      %774 = vmatprep.subr.bf16.mxu0 %v745
      %775 = vmatpush1.bf16.msra.mxu0 %v744
      %776 = vmatprep.subr.bf16.mxu0 %v743
      %777 = vmatpush1.bf16.msra.mxu0 %v742
      %778 = vmatprep.subr.bf16.mxu0 0
      %779 = vmatpush2.bf16.msra.mxu0 0
      %780 = vmatprep.subr.bf16.mxu0 0
      %781 = vmatpush2.bf16.msra.mxu0 0
      %782 = vmatprep.subr.bf16.mxu0 0
      %783 = vmatpush2.bf16.msra.mxu0 0
      %784 = vmatprep.subr.bf16.mxu0 0
      %785 = vmatpush2.bf16.msra.mxu0 0
      %786 = vmatprep.subr.bf16.mxu0 0
      %787 = vmatpush2.bf16.msra.mxu0 0
      %788 = vmatprep.subr.bf16.mxu0 0
      %789 = vmatpush2.bf16.msra.mxu0 0
      %790 = vmatprep.subr.bf16.mxu0 0
      %791 = vmatpush2.bf16.msra.mxu0 0
      %792 = vmatprep.subr.bf16.mxu0 0
      %793 = vmatpush2.bf16.msra.mxu0 0
      %794 = vmatprep.mubr.bf16.mxu0 0
      %795 = vmatmul.mubr.bf16.gmra.mxu0 %v757
      %v796 = vpop.f32.mrf.mxu0
      %v797 = vadd.f32 0.0, %v796
      %v798 = vpop.f32.mrf.mxu0
      %v799 = vadd.f32 0.0, %v798
      %v800 = vpop.f32.mrf.mxu0
      %v801 = vadd.f32 0.0, %v800
      %v802 = vpop.f32.mrf.mxu0
      %v803 = vadd.f32 0.0, %v802
      %804 = vmatprep.mubr.bf16.mxu0 0
      %805 = vmatmul.mubr.bf16.gmra.mxu0 %v760
      %v806 = vpop.f32.mrf.mxu0
      %v807 = vadd.f32 0.0, %v806
      %v808 = vpop.f32.mrf.mxu0
      %v809 = vadd.f32 0.0, %v808
      %v810 = vpop.f32.mrf.mxu0
      %v811 = vadd.f32 0.0, %v810
      %v812 = vpop.f32.mrf.mxu0
      %v813 = vadd.f32 0.0, %v812
      %814 = vdwg.mxu0
      %819 = vrot.lane.b32.xlu0 %v734, 32
      %v820 = vpop.permute.xlu0 %819
      %821 = vrot.lane.b32.xlu0 %v735, 32
      %v822 = vpop.permute.xlu0 %821
      %823 = vrot.lane.b32.xlu0 %v736, 32
      %v824 = vpop.permute.xlu0 %823
      %825 = vrot.lane.b32.xlu0 %v737, 32
      %v826 = vpop.permute.xlu0 %825
      %835 = vrot.lane.b32.xlu0 %v493, 32
      %v836 = vpop.permute.xlu0 %835
      %837 = vrot.lane.b32.xlu0 %v494, 32
      %v838 = vpop.permute.xlu0 %837
      %839 = vrot.lane.b32.xlu0 %v495, 32
      %v840 = vpop.permute.xlu0 %839
      %841 = vrot.lane.b32.xlu0 %v496, 32
      %v842 = vpop.permute.xlu0 %841
      %v847 = vsel %vm281, %v257, %v820
      %v848 = vsel %vm281, %v258, %v822
      %v849 = vsel %vm281, %v259, %v824
      %v850 = vsel %vm281, %v260, %v826
      %v851 = vsel %vm281, %v820, %v836
      %v852 = vsel %vm281, %v822, %v838
      %v853 = vsel %vm281, %v824, %v840
      %v854 = vsel %vm281, %v826, %v842
      %v855 = vld [vmem:[%s2 + $0x70] sm:$0xf]
      %v856 = vld [vmem:[%s2 + $0x74] sm:$0xf]
      %v857 = vld [vmem:[%s2 + $0x78] sm:$0xf]
      %v858 = vld [vmem:[%s2 + $0x7c] sm:$0xf]
      %v859 = vld [vmem:[%s2 + $0x80] sm:$0xf]
      %v860 = vld [vmem:[%s2 + $0x84] sm:$0xf]
      %v861 = vld [vmem:[%s2 + $0x88] sm:$0xf]
      %v862 = vld [vmem:[%s2 + $0x8c] sm:$0xf]
      %v863 = vld [vmem:[%s2 + $0x90] sm:$0xf]
      %v864 = vld [vmem:[%s2 + $0x94] sm:$0xf]
      %v865 = vld [vmem:[%s2 + $0x98] sm:$0xf]
      %v866 = vld [vmem:[%s2 + $0x9c] sm:$0xf]
      %v867 = vld [vmem:[%s2 + $0xa0] sm:$0xf]
      %v868 = vld [vmem:[%s2 + $0xa4] sm:$0xf]
      %v869 = vld [vmem:[%s2 + $0xa8] sm:$0xf]
      %v870 = vld [vmem:[%s2 + $0xac] sm:$0xf]
      %v871 = vld [vmem:[%s2 + $0xb0] sm:$0xf]
      %v872 = vld [vmem:[%s2 + $0xb4] sm:$0xf]
      %v873 = vld [vmem:[%s2 + $0xb8] sm:$0xf]
      %v874 = vld [vmem:[%s2 + $0xbc] sm:$0xf]
      %v875 = vld [vmem:[%s2 + $0xc0] sm:$0xf]
      %v876 = vld [vmem:[%s2 + $0xc4] sm:$0xf]
      %v877 = vld [vmem:[%s2 + $0xc8] sm:$0xf]
      %v878 = vld [vmem:[%s2 + $0xcc] sm:$0xf]
      %v879 = vld [vmem:[%s2 + $0xd0] sm:$0xf]
      %v880 = vld [vmem:[%s2 + $0xd4] sm:$0xf]
      %v881 = vld [vmem:[%s2 + $0xd8] sm:$0xf]
      %v882 = vld [vmem:[%s2 + $0xdc] sm:$0xf]
      %v883 = vpack.c.bf16 %v848, %v847
      %v884 = vpack.c.bf16 %v852, %v851
      %v885 = vpack.c.bf16 %v850, %v849
      %v886 = vpack.c.bf16 %v854, %v853
      %v887 = vld [vmem:[%s4 + $0x1] sm:$0x1]
      %v888 = vlaneseq
      %v889 = vshrl.u32 %v888, 7
      %v890 = vsub.s32 0, %v889
      %v891 = vrot.slane %v887, %v890
      %v920 = vunpack.c.l.b16 %v855
      %v921 = vunpack.c.l.b16 %v856
      %v922 = vunpack.c.l.b16 %v857
      %v923 = vunpack.c.l.b16 %v858
      %v924 = vunpack.c.l.b16 %v859
      %v925 = vunpack.c.l.b16 %v860
      %v926 = vunpack.c.l.b16 %v861
      %v927 = vunpack.c.l.b16 %v862
      %v928 = vunpack.c.l.b16 %v863
      %v929 = vunpack.c.l.b16 %v864
      %v930 = vunpack.c.l.b16 %v865
      %v931 = vunpack.c.l.b16 %v866
      %v932 = vunpack.c.l.b16 %v867
      %v933 = vunpack.c.l.b16 %v868
      %v934 = vunpack.c.l.b16 %v869
      %v935 = vunpack.c.l.b16 %v870
      %v936 = vunpack.c.l.b16 %v871
      %v937 = vunpack.c.l.b16 %v872
      %v938 = vunpack.c.l.b16 %v873
      %v939 = vunpack.c.l.b16 %v874
      %v940 = vunpack.c.l.b16 %v875
      %v941 = vunpack.c.l.b16 %v876
      %v942 = vunpack.c.l.b16 %v877
      %v943 = vunpack.c.l.b16 %v878
      %v944 = vunpack.c.l.b16 %v879
      %v945 = vunpack.c.l.b16 %v880
      %v946 = vunpack.c.l.b16 %v881
      %v947 = vunpack.c.l.b16 %v882
      %v948 = vpack.c.b16 %v921, %v920
      %v949 = vpack.c.b16 %v923, %v922
      %v950 = vpack.c.b16 %v925, %v924
      %v951 = vpack.c.b16 %v927, %v926
      %v952 = vpack.c.b16 %v929, %v928
      %v953 = vpack.c.b16 %v931, %v930
      %v954 = vpack.c.b16 %v933, %v932
      %v955 = vpack.c.b16 %v935, %v934
      %v956 = vpack.c.b16 %v937, %v936
      %v957 = vpack.c.b16 %v939, %v938
      %v958 = vpack.c.b16 %v941, %v940
      %v959 = vpack.c.b16 %v943, %v942
      %v960 = vpack.c.b16 %v945, %v944
      %v961 = vpack.c.b16 %v947, %v946
      %vm976 = vcmask 785408
      %v978 = vsel %vm976, %v884, 0
      %v981 = vsel %vm976, %v886, 0
      %983 = vmatprep.subr.bf16.mxu0 0
      %984 = vmatpush1.bf16.msra.mxu0 %v955
      %985 = vmatprep.subr.bf16.mxu0 0
      %986 = vmatpush1.bf16.msra.mxu0 %v954
      %987 = vmatprep.subr.bf16.mxu0 0
      %988 = vmatpush1.bf16.msra.mxu0 %v953
      %989 = vmatprep.subr.bf16.mxu0 0
      %990 = vmatpush1.bf16.msra.mxu0 %v952
      %991 = vmatprep.subr.bf16.mxu0 0
      %992 = vmatpush1.bf16.msra.mxu0 %v951
      %993 = vmatprep.subr.bf16.mxu0 0
      %994 = vmatpush1.bf16.msra.mxu0 %v950
      %995 = vmatprep.subr.bf16.mxu0 0
      %996 = vmatpush1.bf16.msra.mxu0 %v949
      %997 = vmatprep.subr.bf16.mxu0 0
      %998 = vmatpush1.bf16.msra.mxu0 %v948
      %999 = vmatprep.subr.bf16.mxu0 0
      %1000 = vmatpush2.bf16.msra.mxu0 0
      %1001 = vmatprep.subr.bf16.mxu0 0
      %1002 = vmatpush2.bf16.msra.mxu0 0
      %1003 = vmatprep.subr.bf16.mxu0 0
      %1004 = vmatpush2.bf16.msra.mxu0 %v961
      %1005 = vmatprep.subr.bf16.mxu0 0
      %1006 = vmatpush2.bf16.msra.mxu0 %v960
      %1007 = vmatprep.subr.bf16.mxu0 0
      %1008 = vmatpush2.bf16.msra.mxu0 %v959
      %1009 = vmatprep.subr.bf16.mxu0 0
      %1010 = vmatpush2.bf16.msra.mxu0 %v958
      %1011 = vmatprep.subr.bf16.mxu0 0
      %1012 = vmatpush2.bf16.msra.mxu0 %v957
      %1013 = vmatprep.subr.bf16.mxu0 0
      %1014 = vmatpush2.bf16.msra.mxu0 %v956
      %1015 = vmatprep.mubr.bf16.mxu0 %v978
      %1016 = vmatmul.mubr.bf16.gmra.mxu0 %v883
      %v1017 = vpop.f32.mrf.mxu0
      %v1018 = vadd.f32 %v891, %v1017
      %v1019 = vpop.f32.mrf.mxu0
      %v1020 = vpop.f32.mrf.mxu0
      %v1021 = vadd.f32 %v891, %v1020
      %v1022 = vpop.f32.mrf.mxu0
      %1023 = vmatprep.mubr.bf16.mxu0 %v981
      %1024 = vmatmul.mubr.bf16.gmra.mxu0 %v885
      %v1025 = vpop.f32.mrf.mxu0
      %v1026 = vadd.f32 %v891, %v1025
      %v1027 = vpop.f32.mrf.mxu0
      %v1028 = vpop.f32.mrf.mxu0
      %v1029 = vadd.f32 %v891, %v1028
      %v1030 = vpop.f32.mrf.mxu0
      %1031 = vdwg.mxu0
      %v1032 = vmax.f32 %v1018, 0.0
      %v1033 = vmax.f32 %v1021, 0.0
      %v1034 = vmax.f32 %v1026, 0.0
      %v1035 = vmax.f32 %v1029, 0.0
      %v1036 = vld [vmem:[%s3 + $0x20] sm:$0xf]
      %v1037 = vld [vmem:[%s3 + $0x24] sm:$0xf]
      %v1038 = vld [vmem:[%s3 + $0x28] sm:$0xf]
      %v1039 = vld [vmem:[%s3 + $0x2c] sm:$0xf]
      %v1040 = vld [vmem:[%s3 + $0x30] sm:$0xf]
      %v1041 = vld [vmem:[%s3 + $0x34] sm:$0xf]
      %v1042 = vld [vmem:[%s3 + $0x38] sm:$0xf]
      %v1043 = vld [vmem:[%s3 + $0x3c] sm:$0xf]
      %v1044 = vpack.c.bf16 %v1033, %v1032
      %v1045 = vpack.c.bf16 %v1035, %v1034
      %v1046 = vld [vmem:[%s5 + $0x1] sm:$0x1]
      %v1047 = vlaneseq
      %v1048 = vshrl.u32 %v1047, 7
      %v1049 = vsub.s32 0, %v1048
      %v1050 = vrot.slane %v1046, %v1049
      %v1059 = vunpack.c.l.b16 %v1036
      %v1060 = vunpack.c.l.b16 %v1037
      %v1061 = vunpack.c.l.b16 %v1038
      %v1062 = vunpack.c.l.b16 %v1039
      %v1063 = vunpack.c.l.b16 %v1040
      %v1064 = vunpack.c.l.b16 %v1041
      %v1065 = vunpack.c.l.b16 %v1042
      %v1066 = vunpack.c.l.b16 %v1043
      %v1067 = vpack.c.b16 %v1060, %v1059
      %v1068 = vpack.c.b16 %v1062, %v1061
      %v1069 = vpack.c.b16 %v1064, %v1063
      %v1070 = vpack.c.b16 %v1066, %v1065
      %v1076 = vsel %vm733, %v1044, 0
      %v1079 = vsel %vm733, %v1045, 0
      %1081 = vmatprep.subr.bf16.mxu0 0
      %1082 = vmatpush1.bf16.msra.mxu0 0
      %1083 = vmatprep.subr.bf16.mxu0 0
      %1084 = vmatpush1.bf16.msra.mxu0 0
      %1085 = vmatprep.subr.bf16.mxu0 0
      %1086 = vmatpush1.bf16.msra.mxu0 0
      %1087 = vmatprep.subr.bf16.mxu0 0
      %1088 = vmatpush1.bf16.msra.mxu0 0
      %1089 = vmatprep.subr.bf16.mxu0 0
      %1090 = vmatpush1.bf16.msra.mxu0 %v1070
      %1091 = vmatprep.subr.bf16.mxu0 0
      %1092 = vmatpush1.bf16.msra.mxu0 %v1069
      %1093 = vmatprep.subr.bf16.mxu0 0
      %1094 = vmatpush1.bf16.msra.mxu0 %v1068
      %1095 = vmatprep.subr.bf16.mxu0 0
      %1096 = vmatpush1.bf16.msra.mxu0 %v1067
      %1097 = vmatprep.subr.bf16.mxu0 0
      %1098 = vmatpush2.bf16.msra.mxu0 0
      %1099 = vmatprep.subr.bf16.mxu0 0
      %1100 = vmatpush2.bf16.msra.mxu0 0
      %1101 = vmatprep.subr.bf16.mxu0 0
      %1102 = vmatpush2.bf16.msra.mxu0 0
      %1103 = vmatprep.subr.bf16.mxu0 0
      %1104 = vmatpush2.bf16.msra.mxu0 0
      %1105 = vmatprep.subr.bf16.mxu0 0
      %1106 = vmatpush2.bf16.msra.mxu0 0
      %1107 = vmatprep.subr.bf16.mxu0 0
      %1108 = vmatpush2.bf16.msra.mxu0 0
      %1109 = vmatprep.subr.bf16.mxu0 0
      %1110 = vmatpush2.bf16.msra.mxu0 0
      %1111 = vmatprep.subr.bf16.mxu0 0
      %1112 = vmatpush2.bf16.msra.mxu0 0
      %1113 = vmatprep.mubr.bf16.mxu0 0
      %1114 = vmatmul.mubr.bf16.gmra.mxu0 %v1076
      %v1115 = vpop.f32.mrf.mxu0
      %v1116 = vadd.f32 %v1050, %v1115
      %v1117 = vpop.f32.mrf.mxu0
      %v1118 = vpop.f32.mrf.mxu0
      %v1119 = vadd.f32 %v1050, %v1118
      %v1120 = vpop.f32.mrf.mxu0
      %1121 = vmatprep.mubr.bf16.mxu0 0
      %1122 = vmatmul.mubr.bf16.gmra.mxu0 %v1079
      %v1123 = vpop.f32.mrf.mxu0
      %v1124 = vadd.f32 %v1050, %v1123
      %v1125 = vpop.f32.mrf.mxu0
      %v1126 = vpop.f32.mrf.mxu0
      %v1127 = vadd.f32 %v1050, %v1126
      %v1128 = vpop.f32.mrf.mxu0
      %1129 = vdwg.mxu0
      %v1130 = vmax.f32 %v1116, 0.0
      %v1131 = vmax.f32 %v1119, 0.0
      %v1132 = vmax.f32 %v1124, 0.0
      %v1133 = vmax.f32 %v1127, 0.0
      %1142 = vrot.lane.b32.xlu0 %v797, 32
      %v1143 = vpop.permute.xlu0 %1142
      %1144 = vrot.lane.b32.xlu0 %v799, 32
      %v1145 = vpop.permute.xlu0 %1144
      %1146 = vrot.lane.b32.xlu0 %v801, 32
      %v1147 = vpop.permute.xlu0 %1146
      %1148 = vrot.lane.b32.xlu0 %v803, 32
      %v1149 = vpop.permute.xlu0 %1148
      %1150 = vrot.lane.b32.xlu0 %v807, 32
      %v1151 = vpop.permute.xlu0 %1150
      %1152 = vrot.lane.b32.xlu0 %v809, 32
      %v1153 = vpop.permute.xlu0 %1152
      %1154 = vrot.lane.b32.xlu0 %v811, 32
      %v1155 = vpop.permute.xlu0 %1154
      %1156 = vrot.lane.b32.xlu0 %v813, 32
      %v1157 = vpop.permute.xlu0 %1156
      %v1158 = vsel %vm281, %v1143, %v1145
      %v1159 = vsel %vm281, %v1147, %v1149
      %v1160 = vsel %vm281, %v1151, %v1153
      %v1161 = vsel %vm281, %v1155, %v1157
      %v1170 = vsel %vm281, %v253, %v1143
      %v1171 = vsel %vm281, %v254, %v1147
      %v1172 = vsel %vm281, %v255, %v1151
      %v1173 = vsel %vm281, %v256, %v1155
      %v1174 = vld [vmem:[%s2] sm:$0xf]
      %v1175 = vld [vmem:[%s2 + $0x4] sm:$0xf]
      %v1176 = vld [vmem:[%s2 + $0x8] sm:$0xf]
      %v1177 = vld [vmem:[%s2 + $0xc] sm:$0xf]
      %v1178 = vld [vmem:[%s2 + $0x10] sm:$0xf]
      %v1179 = vld [vmem:[%s2 + $0x14] sm:$0xf]
      %v1180 = vld [vmem:[%s2 + $0x18] sm:$0xf]
      %v1181 = vld [vmem:[%s2 + $0x1c] sm:$0xf]
      %v1182 = vld [vmem:[%s2 + $0x20] sm:$0xf]
      %v1183 = vld [vmem:[%s2 + $0x24] sm:$0xf]
      %v1184 = vld [vmem:[%s2 + $0x28] sm:$0xf]
      %v1185 = vld [vmem:[%s2 + $0x2c] sm:$0xf]
      %v1186 = vld [vmem:[%s2 + $0x30] sm:$0xf]
      %v1187 = vld [vmem:[%s2 + $0x34] sm:$0xf]
      %v1188 = vld [vmem:[%s2 + $0x38] sm:$0xf]
      %v1189 = vld [vmem:[%s2 + $0x3c] sm:$0xf]
      %v1190 = vld [vmem:[%s2 + $0x40] sm:$0xf]
      %v1191 = vld [vmem:[%s2 + $0x44] sm:$0xf]
      %v1192 = vld [vmem:[%s2 + $0x48] sm:$0xf]
      %v1193 = vld [vmem:[%s2 + $0x4c] sm:$0xf]
      %v1194 = vld [vmem:[%s2 + $0x50] sm:$0xf]
      %v1195 = vld [vmem:[%s2 + $0x54] sm:$0xf]
      %v1196 = vld [vmem:[%s2 + $0x58] sm:$0xf]
      %v1197 = vld [vmem:[%s2 + $0x5c] sm:$0xf]
      %v1198 = vld [vmem:[%s2 + $0x60] sm:$0xf]
      %v1199 = vld [vmem:[%s2 + $0x64] sm:$0xf]
      %v1200 = vld [vmem:[%s2 + $0x68] sm:$0xf]
      %v1201 = vld [vmem:[%s2 + $0x6c] sm:$0xf]
      %v1202 = vpack.c.bf16 %v1171, %v1170
      %v1203 = vpack.c.bf16 %v1159, %v1158
      %v1204 = vpack.c.bf16 %v1173, %v1172
      %v1205 = vpack.c.bf16 %v1161, %v1160
      %v1206 = vld [vmem:[%s4] sm:$0x1]
      %v1207 = vlaneseq
      %v1208 = vshrl.u32 %v1207, 7
      %v1209 = vsub.s32 0, %v1208
      %v1210 = vrot.slane %v1206, %v1209
      %v1239 = vunpack.c.l.b16 %v1174
      %v1240 = vunpack.c.l.b16 %v1175
      %v1241 = vunpack.c.l.b16 %v1176
      %v1242 = vunpack.c.l.b16 %v1177
      %v1243 = vunpack.c.l.b16 %v1178
      %v1244 = vunpack.c.l.b16 %v1179
      %v1245 = vunpack.c.l.b16 %v1180
      %v1246 = vunpack.c.l.b16 %v1181
      %v1247 = vunpack.c.l.b16 %v1182
      %v1248 = vunpack.c.l.b16 %v1183
      %v1249 = vunpack.c.l.b16 %v1184
      %v1250 = vunpack.c.l.b16 %v1185
      %v1251 = vunpack.c.l.b16 %v1186
      %v1252 = vunpack.c.l.b16 %v1187
      %v1253 = vunpack.c.l.b16 %v1188
      %v1254 = vunpack.c.l.b16 %v1189
      %v1255 = vunpack.c.l.b16 %v1190
      %v1256 = vunpack.c.l.b16 %v1191
      %v1257 = vunpack.c.l.b16 %v1192
      %v1258 = vunpack.c.l.b16 %v1193
      %v1259 = vunpack.c.l.b16 %v1194
      %v1260 = vunpack.c.l.b16 %v1195
      %v1261 = vunpack.c.l.b16 %v1196
      %v1262 = vunpack.c.l.b16 %v1197
      %v1263 = vunpack.c.l.b16 %v1198
      %v1264 = vunpack.c.l.b16 %v1199
      %v1265 = vunpack.c.l.b16 %v1200
      %v1266 = vunpack.c.l.b16 %v1201
      %v1267 = vpack.c.b16 %v1240, %v1239
      %v1268 = vpack.c.b16 %v1242, %v1241
      %v1269 = vpack.c.b16 %v1244, %v1243
      %v1270 = vpack.c.b16 %v1246, %v1245
      %v1271 = vpack.c.b16 %v1248, %v1247
      %v1272 = vpack.c.b16 %v1250, %v1249
      %v1273 = vpack.c.b16 %v1252, %v1251
      %v1274 = vpack.c.b16 %v1254, %v1253
      %v1275 = vpack.c.b16 %v1256, %v1255
      %v1276 = vpack.c.b16 %v1258, %v1257
      %v1277 = vpack.c.b16 %v1260, %v1259
      %v1278 = vpack.c.b16 %v1262, %v1261
      %v1279 = vpack.c.b16 %v1264, %v1263
      %v1280 = vpack.c.b16 %v1266, %v1265
      %v1296 = vsel %vm976, %v1203, 0
      %v1299 = vsel %vm976, %v1205, 0
      %1301 = vmatprep.subr.bf16.mxu0 0
      %1302 = vmatpush1.bf16.msra.mxu0 %v1274
      %1303 = vmatprep.subr.bf16.mxu0 0
      %1304 = vmatpush1.bf16.msra.mxu0 %v1273
      %1305 = vmatprep.subr.bf16.mxu0 0
      %1306 = vmatpush1.bf16.msra.mxu0 %v1272
      %1307 = vmatprep.subr.bf16.mxu0 0
      %1308 = vmatpush1.bf16.msra.mxu0 %v1271
      %1309 = vmatprep.subr.bf16.mxu0 0
      %1310 = vmatpush1.bf16.msra.mxu0 %v1270
      %1311 = vmatprep.subr.bf16.mxu0 0
      %1312 = vmatpush1.bf16.msra.mxu0 %v1269
      %1313 = vmatprep.subr.bf16.mxu0 0
      %1314 = vmatpush1.bf16.msra.mxu0 %v1268
      %1315 = vmatprep.subr.bf16.mxu0 0
      %1316 = vmatpush1.bf16.msra.mxu0 %v1267
      %1317 = vmatprep.subr.bf16.mxu0 0
      %1318 = vmatpush2.bf16.msra.mxu0 0
      %1319 = vmatprep.subr.bf16.mxu0 0
      %1320 = vmatpush2.bf16.msra.mxu0 0
      %1321 = vmatprep.subr.bf16.mxu0 0
      %1322 = vmatpush2.bf16.msra.mxu0 %v1280
      %1323 = vmatprep.subr.bf16.mxu0 0
      %1324 = vmatpush2.bf16.msra.mxu0 %v1279
      %1325 = vmatprep.subr.bf16.mxu0 0
      %1326 = vmatpush2.bf16.msra.mxu0 %v1278
      %1327 = vmatprep.subr.bf16.mxu0 0
      %1328 = vmatpush2.bf16.msra.mxu0 %v1277
      %1329 = vmatprep.subr.bf16.mxu0 0
      %1330 = vmatpush2.bf16.msra.mxu0 %v1276
      %1331 = vmatprep.subr.bf16.mxu0 0
      %1332 = vmatpush2.bf16.msra.mxu0 %v1275
      %1333 = vmatprep.mubr.bf16.mxu0 %v1296
      %1334 = vmatmul.mubr.bf16.gmra.mxu0 %v1202
      %v1335 = vpop.f32.mrf.mxu0
      %v1336 = vadd.f32 %v1210, %v1335
      %v1337 = vpop.f32.mrf.mxu0
      %v1338 = vpop.f32.mrf.mxu0
      %v1339 = vadd.f32 %v1210, %v1338
      %v1340 = vpop.f32.mrf.mxu0
      %1341 = vmatprep.mubr.bf16.mxu0 %v1299
      %1342 = vmatmul.mubr.bf16.gmra.mxu0 %v1204
      %v1343 = vpop.f32.mrf.mxu0
      %v1344 = vadd.f32 %v1210, %v1343
      %v1345 = vpop.f32.mrf.mxu0
      %v1346 = vpop.f32.mrf.mxu0
      %v1347 = vadd.f32 %v1210, %v1346
      %v1348 = vpop.f32.mrf.mxu0
      %1349 = vdwg.mxu0
      %v1350 = vmax.f32 %v1336, 0.0
      %v1351 = vmax.f32 %v1339, 0.0
      %v1352 = vmax.f32 %v1344, 0.0
      %v1353 = vmax.f32 %v1347, 0.0
      %v1354 = vld [vmem:[%s3] sm:$0xf]
      %v1355 = vld [vmem:[%s3 + $0x4] sm:$0xf]
      %v1356 = vld [vmem:[%s3 + $0x8] sm:$0xf]
      %v1357 = vld [vmem:[%s3 + $0xc] sm:$0xf]
      %v1358 = vld [vmem:[%s3 + $0x10] sm:$0xf]
      %v1359 = vld [vmem:[%s3 + $0x14] sm:$0xf]
      %v1360 = vld [vmem:[%s3 + $0x18] sm:$0xf]
      %v1361 = vld [vmem:[%s3 + $0x1c] sm:$0xf]
      %v1362 = vpack.c.bf16 %v1351, %v1350
      %v1363 = vpack.c.bf16 %v1353, %v1352
      %v1364 = vld [vmem:[%s5] sm:$0x1]
      %v1365 = vlaneseq
      %v1366 = vshrl.u32 %v1365, 7
      %v1367 = vsub.s32 0, %v1366
      %v1368 = vrot.slane %v1364, %v1367
      %v1377 = vunpack.c.l.b16 %v1354
      %v1378 = vunpack.c.l.b16 %v1355
      %v1379 = vunpack.c.l.b16 %v1356
      %v1380 = vunpack.c.l.b16 %v1357
      %v1381 = vunpack.c.l.b16 %v1358
      %v1382 = vunpack.c.l.b16 %v1359
      %v1383 = vunpack.c.l.b16 %v1360
      %v1384 = vunpack.c.l.b16 %v1361
      %v1385 = vpack.c.b16 %v1378, %v1377
      %v1386 = vpack.c.b16 %v1380, %v1379
      %v1387 = vpack.c.b16 %v1382, %v1381
      %v1388 = vpack.c.b16 %v1384, %v1383
      %v1394 = vsel %vm733, %v1362, 0
      %v1397 = vsel %vm733, %v1363, 0
      %1399 = vmatprep.subr.bf16.mxu0 0
      %1400 = vmatpush1.bf16.msra.mxu0 0
      %1401 = vmatprep.subr.bf16.mxu0 0
      %1402 = vmatpush1.bf16.msra.mxu0 0
      %1403 = vmatprep.subr.bf16.mxu0 0
      %1404 = vmatpush1.bf16.msra.mxu0 0
      %1405 = vmatprep.subr.bf16.mxu0 0
      %1406 = vmatpush1.bf16.msra.mxu0 0
      %1407 = vmatprep.subr.bf16.mxu0 0
      %1408 = vmatpush1.bf16.msra.mxu0 %v1388
      %1409 = vmatprep.subr.bf16.mxu0 0
      %1410 = vmatpush1.bf16.msra.mxu0 %v1387
      %1411 = vmatprep.subr.bf16.mxu0 0
      %1412 = vmatpush1.bf16.msra.mxu0 %v1386
      %1413 = vmatprep.subr.bf16.mxu0 0
      %1414 = vmatpush1.bf16.msra.mxu0 %v1385
      %1415 = vmatprep.subr.bf16.mxu0 0
      %1416 = vmatpush2.bf16.msra.mxu0 0
      %1417 = vmatprep.subr.bf16.mxu0 0
      %1418 = vmatpush2.bf16.msra.mxu0 0
      %1419 = vmatprep.subr.bf16.mxu0 0
      %1420 = vmatpush2.bf16.msra.mxu0 0
      %1421 = vmatprep.subr.bf16.mxu0 0
      %1422 = vmatpush2.bf16.msra.mxu0 0
      %1423 = vmatprep.subr.bf16.mxu0 0
      %1424 = vmatpush2.bf16.msra.mxu0 0
      %1425 = vmatprep.subr.bf16.mxu0 0
      %1426 = vmatpush2.bf16.msra.mxu0 0
      %1427 = vmatprep.subr.bf16.mxu0 0
      %1428 = vmatpush2.bf16.msra.mxu0 0
      %1429 = vmatprep.subr.bf16.mxu0 0
      %1430 = vmatpush2.bf16.msra.mxu0 0
      %1431 = vmatprep.mubr.bf16.mxu0 0
      %1432 = vmatmul.mubr.bf16.gmra.mxu0 %v1394
      %v1433 = vpop.f32.mrf.mxu0
      %v1434 = vadd.f32 %v1368, %v1433
      %v1435 = vpop.f32.mrf.mxu0
      %v1436 = vpop.f32.mrf.mxu0
      %v1437 = vadd.f32 %v1368, %v1436
      %v1438 = vpop.f32.mrf.mxu0
      %1439 = vmatprep.mubr.bf16.mxu0 0
      %1440 = vmatmul.mubr.bf16.gmra.mxu0 %v1397
      %v1441 = vpop.f32.mrf.mxu0
      %v1442 = vadd.f32 %v1368, %v1441
      %v1443 = vpop.f32.mrf.mxu0
      %v1444 = vpop.f32.mrf.mxu0
      %v1445 = vadd.f32 %v1368, %v1444
      %v1446 = vpop.f32.mrf.mxu0
      %1447 = vdwg.mxu0
      %v1448 = vmax.f32 %v1434, 0.0
      %v1449 = vmax.f32 %v1437, 0.0
      %v1450 = vmax.f32 %v1442, 0.0
      %v1451 = vmax.f32 %v1445, 0.0
      %v1452 = vld [vmem:[%s1 + $0x40] sm:$0xf]
      %v1453 = vld [vmem:[%s1 + $0x44] sm:$0xf]
      %v1454 = vld [vmem:[%s1 + $0x48] sm:$0xf]
      %v1455 = vld [vmem:[%s1 + $0x4c] sm:$0xf]
      %v1460 = vunpack.c.l.b16 %v1452
      %v1461 = vunpack.c.l.b16 %v1453
      %v1462 = vunpack.c.l.b16 %v1454
      %v1463 = vunpack.c.l.b16 %v1455
      %v1464 = vpack.c.b16 %v1461, %v1460
      %v1465 = vpack.c.b16 %v1463, %v1462
      %v1467 = vsel %vm281, %v1464, 0
      %v1470 = vsel %vm281, %v1465, 0
      %1472 = vmatprep.subr.bf16.mxu0 0
      %1473 = vmatpush1.bf16.msra.mxu0 0
      %1474 = vmatprep.subr.bf16.mxu0 0
      %1475 = vmatpush1.bf16.msra.mxu0 0
      %1476 = vmatprep.subr.bf16.mxu0 0
      %1477 = vmatpush1.bf16.msra.mxu0 0
      %1478 = vmatprep.subr.bf16.mxu0 0
      %1479 = vmatpush1.bf16.msra.mxu0 0
      %1480 = vmatprep.subr.bf16.mxu0 0
      %1481 = vmatpush1.bf16.msra.mxu0 0
      %1482 = vmatprep.subr.bf16.mxu0 0
      %1483 = vmatpush1.bf16.msra.mxu0 0
      %1484 = vmatprep.subr.bf16.mxu0 0
      %1485 = vmatpush1.bf16.msra.mxu0 %v498
      %1486 = vmatprep.subr.bf16.mxu0 0
      %1487 = vmatpush1.bf16.msra.mxu0 %v497
      %1488 = vmatprep.subr.bf16.mxu0 0
      %1489 = vmatpush2.bf16.msra.mxu0 0
      %1490 = vmatprep.subr.bf16.mxu0 0
      %1491 = vmatpush2.bf16.msra.mxu0 0
      %1492 = vmatprep.subr.bf16.mxu0 0
      %1493 = vmatpush2.bf16.msra.mxu0 0
      %1494 = vmatprep.subr.bf16.mxu0 0
      %1495 = vmatpush2.bf16.msra.mxu0 0
      %1496 = vmatprep.subr.bf16.mxu0 0
      %1497 = vmatpush2.bf16.msra.mxu0 0
      %1498 = vmatprep.subr.bf16.mxu0 0
      %1499 = vmatpush2.bf16.msra.mxu0 0
      %1500 = vmatprep.subr.bf16.mxu0 0
      %1501 = vmatpush2.bf16.msra.mxu0 0
      %1502 = vmatprep.subr.bf16.mxu0 0
      %1503 = vmatpush2.bf16.msra.mxu0 0
      %1504 = vmatprep.mubr.bf16.mxu0 0
      %1505 = vmatmul.mubr.bf16.gmra.mxu0 %v1467
      %v1506 = vpop.f32.mrf.mxu0
      %v1507 = vadd.f32 0.0, %v1506
      %v1508 = vpop.f32.mrf.mxu0
      %v1509 = vpop.f32.mrf.mxu0
      %v1510 = vadd.f32 0.0, %v1509
      %v1511 = vpop.f32.mrf.mxu0
      %1512 = vmatprep.mubr.bf16.mxu0 0
      %1513 = vmatmul.mubr.bf16.gmra.mxu0 %v1470
      %v1514 = vpop.f32.mrf.mxu0
      %v1515 = vadd.f32 0.0, %v1514
      %v1516 = vpop.f32.mrf.mxu0
      %v1517 = vpop.f32.mrf.mxu0
      %v1518 = vadd.f32 0.0, %v1517
      %v1519 = vpop.f32.mrf.mxu0
      %1520 = vdwg.mxu0
      %v1521 = vld [vmem:[%s1 + $0x50] sm:$0xf]
      %v1522 = vld [vmem:[%s1 + $0x54] sm:$0xf]
      %v1523 = vld [vmem:[%s1 + $0x58] sm:$0xf]
      %v1524 = vld [vmem:[%s1 + $0x5c] sm:$0xf]
      %v1529 = vunpack.c.l.b16 %v1521
      %v1530 = vunpack.c.l.b16 %v1522
      %v1531 = vunpack.c.l.b16 %v1523
      %v1532 = vunpack.c.l.b16 %v1524
      %v1533 = vpack.c.b16 %v1530, %v1529
      %v1534 = vpack.c.b16 %v1532, %v1531
      %v1536 = vsel %vm281, %v1533, 0
      %v1539 = vsel %vm281, %v1534, 0
      %1541 = vmatprep.subr.bf16.mxu0 0
      %1542 = vmatpush1.bf16.msra.mxu0 0
      %1543 = vmatprep.subr.bf16.mxu0 0
      %1544 = vmatpush1.bf16.msra.mxu0 0
      %1545 = vmatprep.subr.bf16.mxu0 0
      %1546 = vmatpush1.bf16.msra.mxu0 0
      %1547 = vmatprep.subr.bf16.mxu0 0
      %1548 = vmatpush1.bf16.msra.mxu0 0
      %1549 = vmatprep.subr.bf16.mxu0 0
      %1550 = vmatpush1.bf16.msra.mxu0 0
      %1551 = vmatprep.subr.bf16.mxu0 0
      %1552 = vmatpush1.bf16.msra.mxu0 0
      %1553 = vmatprep.subr.bf16.mxu0 0
      %1554 = vmatpush1.bf16.msra.mxu0 %v498
      %1555 = vmatprep.subr.bf16.mxu0 0
      %1556 = vmatpush1.bf16.msra.mxu0 %v497
      %1557 = vmatprep.subr.bf16.mxu0 0
      %1558 = vmatpush2.bf16.msra.mxu0 0
      %1559 = vmatprep.subr.bf16.mxu0 0
      %1560 = vmatpush2.bf16.msra.mxu0 0
      %1561 = vmatprep.subr.bf16.mxu0 0
      %1562 = vmatpush2.bf16.msra.mxu0 0
      %1563 = vmatprep.subr.bf16.mxu0 0
      %1564 = vmatpush2.bf16.msra.mxu0 0
      %1565 = vmatprep.subr.bf16.mxu0 0
      %1566 = vmatpush2.bf16.msra.mxu0 0
      %1567 = vmatprep.subr.bf16.mxu0 0
      %1568 = vmatpush2.bf16.msra.mxu0 0
      %1569 = vmatprep.subr.bf16.mxu0 0
      %1570 = vmatpush2.bf16.msra.mxu0 0
      %1571 = vmatprep.subr.bf16.mxu0 0
      %1572 = vmatpush2.bf16.msra.mxu0 0
      %1573 = vmatprep.mubr.bf16.mxu0 0
      %1574 = vmatmul.mubr.bf16.gmra.mxu0 %v1536
      %v1575 = vpop.f32.mrf.mxu0
      %v1576 = vadd.f32 0.0, %v1575
      %v1577 = vpop.f32.mrf.mxu0
      %v1578 = vpop.f32.mrf.mxu0
      %v1579 = vadd.f32 0.0, %v1578
      %v1580 = vpop.f32.mrf.mxu0
      %1581 = vmatprep.mubr.bf16.mxu0 0
      %1582 = vmatmul.mubr.bf16.gmra.mxu0 %v1539
      %v1583 = vpop.f32.mrf.mxu0
      %v1584 = vadd.f32 0.0, %v1583
      %v1585 = vpop.f32.mrf.mxu0
      %v1586 = vpop.f32.mrf.mxu0
      %v1587 = vadd.f32 0.0, %v1586
      %v1588 = vpop.f32.mrf.mxu0
      %1589 = vdwg.mxu0
      %1594 = vrot.lane.b32.xlu0 %v1576, 32
      %v1595 = vpop.permute.xlu0 %1594
      %1596 = vrot.lane.b32.xlu0 %v1579, 32
      %v1597 = vpop.permute.xlu0 %1596
      %1598 = vrot.lane.b32.xlu0 %v1584, 32
      %v1599 = vpop.permute.xlu0 %1598
      %1600 = vrot.lane.b32.xlu0 %v1587, 32
      %v1601 = vpop.permute.xlu0 %1600
      %v1606 = vsel %vm281, %v1507, %v1595
      %v1607 = vsel %vm281, %v1510, %v1597
      %v1608 = vsel %vm281, %v1515, %v1599
      %v1609 = vsel %vm281, %v1518, %v1601
      %v1610 = vld [vmem:[%s1 + $0x60] sm:$0xf]
      %v1611 = vld [vmem:[%s1 + $0x64] sm:$0xf]
      %v1612 = vld [vmem:[%s1 + $0x68] sm:$0xf]
      %v1613 = vld [vmem:[%s1 + $0x6c] sm:$0xf]
      %v1614 = vpack.c.bf16 %v1607, %v1606
      %v1615 = vpack.c.bf16 %v1609, %v1608
      %v1620 = vunpack.c.l.b16 %v1610
      %v1621 = vunpack.c.l.b16 %v1611
      %v1622 = vunpack.c.l.b16 %v1612
      %v1623 = vunpack.c.l.b16 %v1613
      %v1624 = vpack.c.b16 %v1621, %v1620
      %v1625 = vpack.c.b16 %v1623, %v1622
      %v1627 = vsel %vm281, %v1624, 0
      %v1630 = vsel %vm281, %v1625, 0
      %1632 = vmatprep.subr.bf16.mxu0 0
      %1633 = vmatpush1.bf16.msra.mxu0 0
      %1634 = vmatprep.subr.bf16.mxu0 0
      %1635 = vmatpush1.bf16.msra.mxu0 0
      %1636 = vmatprep.subr.bf16.mxu0 0
      %1637 = vmatpush1.bf16.msra.mxu0 0
      %1638 = vmatprep.subr.bf16.mxu0 0
      %1639 = vmatpush1.bf16.msra.mxu0 0
      %1640 = vmatprep.subr.bf16.mxu0 0
      %1641 = vmatpush1.bf16.msra.mxu0 0
      %1642 = vmatprep.subr.bf16.mxu0 0
      %1643 = vmatpush1.bf16.msra.mxu0 0
      %1644 = vmatprep.subr.bf16.mxu0 0
      %1645 = vmatpush1.bf16.msra.mxu0 %v1615
      %1646 = vmatprep.subr.bf16.mxu0 0
      %1647 = vmatpush1.bf16.msra.mxu0 %v1614
      %1648 = vmatprep.subr.bf16.mxu0 0
      %1649 = vmatpush2.bf16.msra.mxu0 0
      %1650 = vmatprep.subr.bf16.mxu0 0
      %1651 = vmatpush2.bf16.msra.mxu0 0
      %1652 = vmatprep.subr.bf16.mxu0 0
      %1653 = vmatpush2.bf16.msra.mxu0 0
      %1654 = vmatprep.subr.bf16.mxu0 0
      %1655 = vmatpush2.bf16.msra.mxu0 0
      %1656 = vmatprep.subr.bf16.mxu0 0
      %1657 = vmatpush2.bf16.msra.mxu0 0
      %1658 = vmatprep.subr.bf16.mxu0 0
      %1659 = vmatpush2.bf16.msra.mxu0 0
      %1660 = vmatprep.subr.bf16.mxu0 0
      %1661 = vmatpush2.bf16.msra.mxu0 0
      %1662 = vmatprep.subr.bf16.mxu0 0
      %1663 = vmatpush2.bf16.msra.mxu0 0
      %1664 = vmatprep.mubr.bf16.mxu0 0
      %1665 = vmatmul.mubr.bf16.gmra.mxu0 %v1627
      %v1666 = vpop.f32.mrf.mxu0
      %v1667 = vadd.f32 0.0, %v1666
      %v1668 = vpop.f32.mrf.mxu0
      %v1669 = vpop.f32.mrf.mxu0
      %v1670 = vadd.f32 0.0, %v1669
      %v1671 = vpop.f32.mrf.mxu0
      %1672 = vmatprep.mubr.bf16.mxu0 0
      %1673 = vmatmul.mubr.bf16.gmra.mxu0 %v1630
      %v1674 = vpop.f32.mrf.mxu0
      %v1675 = vadd.f32 0.0, %v1674
      %v1676 = vpop.f32.mrf.mxu0
      %v1677 = vpop.f32.mrf.mxu0
      %v1678 = vadd.f32 0.0, %v1677
      %v1679 = vpop.f32.mrf.mxu0
      %1680 = vdwg.mxu0
      %v1681 = vld [vmem:[%s1 + $0x70] sm:$0xf]
      %v1682 = vld [vmem:[%s1 + $0x74] sm:$0xf]
      %v1683 = vld [vmem:[%s1 + $0x78] sm:$0xf]
      %v1684 = vld [vmem:[%s1 + $0x7c] sm:$0xf]
      %v1689 = vunpack.c.l.b16 %v1681
      %v1690 = vunpack.c.l.b16 %v1682
      %v1691 = vunpack.c.l.b16 %v1683
      %v1692 = vunpack.c.l.b16 %v1684
      %v1693 = vpack.c.b16 %v1690, %v1689
      %v1694 = vpack.c.b16 %v1692, %v1691
      %v1696 = vsel %vm281, %v1693, 0
      %v1699 = vsel %vm281, %v1694, 0
      %1701 = vmatprep.subr.bf16.mxu0 0
      %1702 = vmatpush1.bf16.msra.mxu0 0
      %1703 = vmatprep.subr.bf16.mxu0 0
      %1704 = vmatpush1.bf16.msra.mxu0 0
      %1705 = vmatprep.subr.bf16.mxu0 0
      %1706 = vmatpush1.bf16.msra.mxu0 0
      %1707 = vmatprep.subr.bf16.mxu0 0
      %1708 = vmatpush1.bf16.msra.mxu0 0
      %1709 = vmatprep.subr.bf16.mxu0 0
      %1710 = vmatpush1.bf16.msra.mxu0 0
      %1711 = vmatprep.subr.bf16.mxu0 0
      %1712 = vmatpush1.bf16.msra.mxu0 0
      %1713 = vmatprep.subr.bf16.mxu0 0
      %1714 = vmatpush1.bf16.msra.mxu0 %v1615
      %1715 = vmatprep.subr.bf16.mxu0 0
      %1716 = vmatpush1.bf16.msra.mxu0 %v1614
      %1717 = vmatprep.subr.bf16.mxu0 0
      %1718 = vmatpush2.bf16.msra.mxu0 0
      %1719 = vmatprep.subr.bf16.mxu0 0
      %1720 = vmatpush2.bf16.msra.mxu0 0
      %1721 = vmatprep.subr.bf16.mxu0 0
      %1722 = vmatpush2.bf16.msra.mxu0 0
      %1723 = vmatprep.subr.bf16.mxu0 0
      %1724 = vmatpush2.bf16.msra.mxu0 0
      %1725 = vmatprep.subr.bf16.mxu0 0
      %1726 = vmatpush2.bf16.msra.mxu0 0
      %1727 = vmatprep.subr.bf16.mxu0 0
      %1728 = vmatpush2.bf16.msra.mxu0 0
      %1729 = vmatprep.subr.bf16.mxu0 0
      %1730 = vmatpush2.bf16.msra.mxu0 0
      %1731 = vmatprep.subr.bf16.mxu0 0
      %1732 = vmatpush2.bf16.msra.mxu0 0
      %1733 = vmatprep.mubr.bf16.mxu0 0
      %1734 = vmatmul.mubr.bf16.gmra.mxu0 %v1696
      %v1735 = vpop.f32.mrf.mxu0
      %v1736 = vadd.f32 0.0, %v1735
      %v1737 = vpop.f32.mrf.mxu0
      %v1738 = vpop.f32.mrf.mxu0
      %v1739 = vadd.f32 0.0, %v1738
      %v1740 = vpop.f32.mrf.mxu0
      %1741 = vmatprep.mubr.bf16.mxu0 0
      %1742 = vmatmul.mubr.bf16.gmra.mxu0 %v1699
      %v1743 = vpop.f32.mrf.mxu0
      %v1744 = vadd.f32 0.0, %v1743
      %v1745 = vpop.f32.mrf.mxu0
      %v1746 = vpop.f32.mrf.mxu0
      %v1747 = vadd.f32 0.0, %v1746
      %v1748 = vpop.f32.mrf.mxu0
      %1749 = vdwg.mxu0
      %1754 = vrot.lane.b32.xlu0 %v1736, 64
      %v1755 = vpop.permute.xlu0 %1754
      %1756 = vrot.lane.b32.xlu0 %v1739, 64
      %v1757 = vpop.permute.xlu0 %1756
      %1758 = vrot.lane.b32.xlu0 %v1744, 64
      %v1759 = vpop.permute.xlu0 %1758
      %1760 = vrot.lane.b32.xlu0 %v1747, 64
      %v1761 = vpop.permute.xlu0 %1760
      %v1766 = vsel %vm733, %v1667, %v1755
      %v1767 = vsel %vm733, %v1670, %v1757
      %v1768 = vsel %vm733, %v1675, %v1759
      %v1769 = vsel %vm733, %v1678, %v1761
      %v1770 = vld [vmem:[%s1 + $0x80] sm:$0xf]
      %v1771 = vld [vmem:[%s1 + $0x84] sm:$0xf]
      %v1772 = vld [vmem:[%s1 + $0x88] sm:$0xf]
      %v1773 = vld [vmem:[%s1 + $0x8c] sm:$0xf]
      %v1778 = vunpack.c.l.b16 %v1770
      %v1779 = vunpack.c.l.b16 %v1771
      %v1780 = vunpack.c.l.b16 %v1772
      %v1781 = vunpack.c.l.b16 %v1773
      %v1782 = vpack.c.b16 %v1779, %v1778
      %v1783 = vpack.c.b16 %v1781, %v1780
      %v1785 = vsel %vm281, %v1782, 0
      %v1788 = vsel %vm281, %v1783, 0
      %1790 = vmatprep.subr.bf16.mxu0 0
      %1791 = vmatpush1.bf16.msra.mxu0 0
      %1792 = vmatprep.subr.bf16.mxu0 0
      %1793 = vmatpush1.bf16.msra.mxu0 0
      %1794 = vmatprep.subr.bf16.mxu0 0
      %1795 = vmatpush1.bf16.msra.mxu0 0
      %1796 = vmatprep.subr.bf16.mxu0 0
      %1797 = vmatpush1.bf16.msra.mxu0 0
      %1798 = vmatprep.subr.bf16.mxu0 0
      %1799 = vmatpush1.bf16.msra.mxu0 0
      %1800 = vmatprep.subr.bf16.mxu0 0
      %1801 = vmatpush1.bf16.msra.mxu0 0
      %1802 = vmatprep.subr.bf16.mxu0 0
      %1803 = vmatpush1.bf16.msra.mxu0 %v498
      %1804 = vmatprep.subr.bf16.mxu0 0
      %1805 = vmatpush1.bf16.msra.mxu0 %v497
      %1806 = vmatprep.subr.bf16.mxu0 0
      %1807 = vmatpush2.bf16.msra.mxu0 0
      %1808 = vmatprep.subr.bf16.mxu0 0
      %1809 = vmatpush2.bf16.msra.mxu0 0
      %1810 = vmatprep.subr.bf16.mxu0 0
      %1811 = vmatpush2.bf16.msra.mxu0 0
      %1812 = vmatprep.subr.bf16.mxu0 0
      %1813 = vmatpush2.bf16.msra.mxu0 0
      %1814 = vmatprep.subr.bf16.mxu0 0
      %1815 = vmatpush2.bf16.msra.mxu0 0
      %1816 = vmatprep.subr.bf16.mxu0 0
      %1817 = vmatpush2.bf16.msra.mxu0 0
      %1818 = vmatprep.subr.bf16.mxu0 0
      %1819 = vmatpush2.bf16.msra.mxu0 0
      %1820 = vmatprep.subr.bf16.mxu0 0
      %1821 = vmatpush2.bf16.msra.mxu0 0
      %1822 = vmatprep.mubr.bf16.mxu0 0
      %1823 = vmatmul.mubr.bf16.gmra.mxu0 %v1785
      %v1824 = vpop.f32.mrf.mxu0
      %v1825 = vadd.f32 0.0, %v1824
      %v1826 = vpop.f32.mrf.mxu0
      %v1827 = vpop.f32.mrf.mxu0
      %v1828 = vadd.f32 0.0, %v1827
      %v1829 = vpop.f32.mrf.mxu0
      %1830 = vmatprep.mubr.bf16.mxu0 0
      %1831 = vmatmul.mubr.bf16.gmra.mxu0 %v1788
      %v1832 = vpop.f32.mrf.mxu0
      %v1833 = vadd.f32 0.0, %v1832
      %v1834 = vpop.f32.mrf.mxu0
      %v1835 = vpop.f32.mrf.mxu0
      %v1836 = vadd.f32 0.0, %v1835
      %v1837 = vpop.f32.mrf.mxu0
      %1838 = vdwg.mxu0
      %v1839 = vld [vmem:[%s1 + $0x90] sm:$0xf]
      %v1840 = vld [vmem:[%s1 + $0x94] sm:$0xf]
      %v1841 = vld [vmem:[%s1 + $0x98] sm:$0xf]
      %v1842 = vld [vmem:[%s1 + $0x9c] sm:$0xf]
      %v1847 = vunpack.c.l.b16 %v1839
      %v1848 = vunpack.c.l.b16 %v1840
      %v1849 = vunpack.c.l.b16 %v1841
      %v1850 = vunpack.c.l.b16 %v1842
      %v1851 = vpack.c.b16 %v1848, %v1847
      %v1852 = vpack.c.b16 %v1850, %v1849
      %v1854 = vsel %vm281, %v1851, 0
      %v1857 = vsel %vm281, %v1852, 0
      %1859 = vmatprep.subr.bf16.mxu0 0
      %1860 = vmatpush1.bf16.msra.mxu0 0
      %1861 = vmatprep.subr.bf16.mxu0 0
      %1862 = vmatpush1.bf16.msra.mxu0 0
      %1863 = vmatprep.subr.bf16.mxu0 0
      %1864 = vmatpush1.bf16.msra.mxu0 0
      %1865 = vmatprep.subr.bf16.mxu0 0
      %1866 = vmatpush1.bf16.msra.mxu0 0
      %1867 = vmatprep.subr.bf16.mxu0 0
      %1868 = vmatpush1.bf16.msra.mxu0 0
      %1869 = vmatprep.subr.bf16.mxu0 0
      %1870 = vmatpush1.bf16.msra.mxu0 0
      %1871 = vmatprep.subr.bf16.mxu0 0
      %1872 = vmatpush1.bf16.msra.mxu0 %v498
      %1873 = vmatprep.subr.bf16.mxu0 0
      %1874 = vmatpush1.bf16.msra.mxu0 %v497
      %1875 = vmatprep.subr.bf16.mxu0 0
      %1876 = vmatpush2.bf16.msra.mxu0 0
      %1877 = vmatprep.subr.bf16.mxu0 0
      %1878 = vmatpush2.bf16.msra.mxu0 0
      %1879 = vmatprep.subr.bf16.mxu0 0
      %1880 = vmatpush2.bf16.msra.mxu0 0
      %1881 = vmatprep.subr.bf16.mxu0 0
      %1882 = vmatpush2.bf16.msra.mxu0 0
      %1883 = vmatprep.subr.bf16.mxu0 0
      %1884 = vmatpush2.bf16.msra.mxu0 0
      %1885 = vmatprep.subr.bf16.mxu0 0
      %1886 = vmatpush2.bf16.msra.mxu0 0
      %1887 = vmatprep.subr.bf16.mxu0 0
      %1888 = vmatpush2.bf16.msra.mxu0 0
      %1889 = vmatprep.subr.bf16.mxu0 0
      %1890 = vmatpush2.bf16.msra.mxu0 0
      %1891 = vmatprep.mubr.bf16.mxu0 0
      %1892 = vmatmul.mubr.bf16.gmra.mxu0 %v1854
      %v1893 = vpop.f32.mrf.mxu0
      %v1894 = vadd.f32 0.0, %v1893
      %v1895 = vpop.f32.mrf.mxu0
      %v1896 = vpop.f32.mrf.mxu0
      %v1897 = vadd.f32 0.0, %v1896
      %v1898 = vpop.f32.mrf.mxu0
      %1899 = vmatprep.mubr.bf16.mxu0 0
      %1900 = vmatmul.mubr.bf16.gmra.mxu0 %v1857
      %v1901 = vpop.f32.mrf.mxu0
      %v1902 = vadd.f32 0.0, %v1901
      %v1903 = vpop.f32.mrf.mxu0
      %v1904 = vpop.f32.mrf.mxu0
      %v1905 = vadd.f32 0.0, %v1904
      %v1906 = vpop.f32.mrf.mxu0
      %1907 = vdwg.mxu0
      %1912 = vrot.lane.b32.xlu0 %v1894, 32
      %v1913 = vpop.permute.xlu0 %1912
      %1914 = vrot.lane.b32.xlu0 %v1897, 32
      %v1915 = vpop.permute.xlu0 %1914
      %1916 = vrot.lane.b32.xlu0 %v1902, 32
      %v1917 = vpop.permute.xlu0 %1916
      %1918 = vrot.lane.b32.xlu0 %v1905, 32
      %v1919 = vpop.permute.xlu0 %1918
      %v1924 = vsel %vm281, %v1825, %v1913
      %v1925 = vsel %vm281, %v1828, %v1915
      %v1926 = vsel %vm281, %v1833, %v1917
      %v1927 = vsel %vm281, %v1836, %v1919
      %v1928 = vld [vmem:[%s1 + $0xa0] sm:$0xf]
      %v1929 = vld [vmem:[%s1 + $0xa4] sm:$0xf]
      %v1930 = vld [vmem:[%s1 + $0xa8] sm:$0xf]
      %v1931 = vld [vmem:[%s1 + $0xac] sm:$0xf]
      %v1932 = vpack.c.bf16 %v1925, %v1924
      %v1933 = vpack.c.bf16 %v1927, %v1926
      %v1938 = vunpack.c.l.b16 %v1928
      %v1939 = vunpack.c.l.b16 %v1929
      %v1940 = vunpack.c.l.b16 %v1930
      %v1941 = vunpack.c.l.b16 %v1931
      %v1942 = vpack.c.b16 %v1939, %v1938
      %v1943 = vpack.c.b16 %v1941, %v1940
      %v1945 = vsel %vm281, %v1942, 0
      %v1948 = vsel %vm281, %v1943, 0
      %1950 = vmatprep.subr.bf16.mxu0 0
      %1951 = vmatpush1.bf16.msra.mxu0 0
      %1952 = vmatprep.subr.bf16.mxu0 0
      %1953 = vmatpush1.bf16.msra.mxu0 0
      %1954 = vmatprep.subr.bf16.mxu0 0
      %1955 = vmatpush1.bf16.msra.mxu0 0
      %1956 = vmatprep.subr.bf16.mxu0 0
      %1957 = vmatpush1.bf16.msra.mxu0 0
      %1958 = vmatprep.subr.bf16.mxu0 0
      %1959 = vmatpush1.bf16.msra.mxu0 0
      %1960 = vmatprep.subr.bf16.mxu0 0
      %1961 = vmatpush1.bf16.msra.mxu0 0
      %1962 = vmatprep.subr.bf16.mxu0 0
      %1963 = vmatpush1.bf16.msra.mxu0 %v1933
      %1964 = vmatprep.subr.bf16.mxu0 0
      %1965 = vmatpush1.bf16.msra.mxu0 %v1932
      %1966 = vmatprep.subr.bf16.mxu0 0
      %1967 = vmatpush2.bf16.msra.mxu0 0
      %1968 = vmatprep.subr.bf16.mxu0 0
      %1969 = vmatpush2.bf16.msra.mxu0 0
      %1970 = vmatprep.subr.bf16.mxu0 0
      %1971 = vmatpush2.bf16.msra.mxu0 0
      %1972 = vmatprep.subr.bf16.mxu0 0
      %1973 = vmatpush2.bf16.msra.mxu0 0
      %1974 = vmatprep.subr.bf16.mxu0 0
      %1975 = vmatpush2.bf16.msra.mxu0 0
      %1976 = vmatprep.subr.bf16.mxu0 0
      %1977 = vmatpush2.bf16.msra.mxu0 0
      %1978 = vmatprep.subr.bf16.mxu0 0
      %1979 = vmatpush2.bf16.msra.mxu0 0
      %1980 = vmatprep.subr.bf16.mxu0 0
      %1981 = vmatpush2.bf16.msra.mxu0 0
      %1982 = vmatprep.mubr.bf16.mxu0 0
      %1983 = vmatmul.mubr.bf16.gmra.mxu0 %v1945
      %v1984 = vpop.f32.mrf.mxu0
      %v1985 = vadd.f32 0.0, %v1984
      %v1986 = vpop.f32.mrf.mxu0
      %v1987 = vpop.f32.mrf.mxu0
      %v1988 = vadd.f32 0.0, %v1987
      %v1989 = vpop.f32.mrf.mxu0
      %1990 = vmatprep.mubr.bf16.mxu0 0
      %1991 = vmatmul.mubr.bf16.gmra.mxu0 %v1948
      %v1992 = vpop.f32.mrf.mxu0
      %v1993 = vadd.f32 0.0, %v1992
      %v1994 = vpop.f32.mrf.mxu0
      %v1995 = vpop.f32.mrf.mxu0
      %v1996 = vadd.f32 0.0, %v1995
      %v1997 = vpop.f32.mrf.mxu0
      %1998 = vdwg.mxu0
      %v1999 = vld [vmem:[%s1 + $0xb0] sm:$0xf]
      %v2000 = vld [vmem:[%s1 + $0xb4] sm:$0xf]
      %v2001 = vld [vmem:[%s1 + $0xb8] sm:$0xf]
      %v2002 = vld [vmem:[%s1 + $0xbc] sm:$0xf]
      %v2007 = vunpack.c.l.b16 %v1999
      %v2008 = vunpack.c.l.b16 %v2000
      %v2009 = vunpack.c.l.b16 %v2001
      %v2010 = vunpack.c.l.b16 %v2002
      %v2011 = vpack.c.b16 %v2008, %v2007
      %v2012 = vpack.c.b16 %v2010, %v2009
      %v2014 = vsel %vm281, %v2011, 0
      %v2017 = vsel %vm281, %v2012, 0
      %2019 = vmatprep.subr.bf16.mxu0 0
      %2020 = vmatpush1.bf16.msra.mxu0 0
      %2021 = vmatprep.subr.bf16.mxu0 0
      %2022 = vmatpush1.bf16.msra.mxu0 0
      %2023 = vmatprep.subr.bf16.mxu0 0
      %2024 = vmatpush1.bf16.msra.mxu0 0
      %2025 = vmatprep.subr.bf16.mxu0 0
      %2026 = vmatpush1.bf16.msra.mxu0 0
      %2027 = vmatprep.subr.bf16.mxu0 0
      %2028 = vmatpush1.bf16.msra.mxu0 0
      %2029 = vmatprep.subr.bf16.mxu0 0
      %2030 = vmatpush1.bf16.msra.mxu0 0
      %2031 = vmatprep.subr.bf16.mxu0 0
      %2032 = vmatpush1.bf16.msra.mxu0 %v1933
      %2033 = vmatprep.subr.bf16.mxu0 0
      %2034 = vmatpush1.bf16.msra.mxu0 %v1932
      %2035 = vmatprep.subr.bf16.mxu0 0
      %2036 = vmatpush2.bf16.msra.mxu0 0
      %2037 = vmatprep.subr.bf16.mxu0 0
      %2038 = vmatpush2.bf16.msra.mxu0 0
      %2039 = vmatprep.subr.bf16.mxu0 0
      %2040 = vmatpush2.bf16.msra.mxu0 0
      %2041 = vmatprep.subr.bf16.mxu0 0
      %2042 = vmatpush2.bf16.msra.mxu0 0
      %2043 = vmatprep.subr.bf16.mxu0 0
      %2044 = vmatpush2.bf16.msra.mxu0 0
      %2045 = vmatprep.subr.bf16.mxu0 0
      %2046 = vmatpush2.bf16.msra.mxu0 0
      %2047 = vmatprep.subr.bf16.mxu0 0
      %2048 = vmatpush2.bf16.msra.mxu0 0
      %2049 = vmatprep.subr.bf16.mxu0 0
      %2050 = vmatpush2.bf16.msra.mxu0 0
      %2051 = vmatprep.mubr.bf16.mxu0 0
      %2052 = vmatmul.mubr.bf16.gmra.mxu0 %v2014
      %v2053 = vpop.f32.mrf.mxu0
      %v2054 = vadd.f32 0.0, %v2053
      %v2055 = vpop.f32.mrf.mxu0
      %v2056 = vpop.f32.mrf.mxu0
      %v2057 = vadd.f32 0.0, %v2056
      %v2058 = vpop.f32.mrf.mxu0
      %2059 = vmatprep.mubr.bf16.mxu0 0
      %2060 = vmatmul.mubr.bf16.gmra.mxu0 %v2017
      %v2061 = vpop.f32.mrf.mxu0
      %v2062 = vadd.f32 0.0, %v2061
      %v2063 = vpop.f32.mrf.mxu0
      %v2064 = vpop.f32.mrf.mxu0
      %v2065 = vadd.f32 0.0, %v2064
      %v2066 = vpop.f32.mrf.mxu0
      %2067 = vdwg.mxu0
      %2072 = vrot.lane.b32.xlu0 %v2054, 64
      %v2073 = vpop.permute.xlu0 %2072
      %2074 = vrot.lane.b32.xlu0 %v2057, 64
      %v2075 = vpop.permute.xlu0 %2074
      %2076 = vrot.lane.b32.xlu0 %v2062, 64
      %v2077 = vpop.permute.xlu0 %2076
      %2078 = vrot.lane.b32.xlu0 %v2065, 64
      %v2079 = vpop.permute.xlu0 %2078
      %v2084 = vsel %vm733, %v1985, %v2073
      %v2085 = vsel %vm733, %v1988, %v2075
      %v2086 = vsel %vm733, %v1993, %v2077
      %v2087 = vsel %vm733, %v1996, %v2079
      %v2088 = vadd.f32 %v1766, %v2084
      %v2089 = vadd.f32 %v1767, %v2085
      %v2090 = vadd.f32 %v1768, %v2086
      %v2091 = vadd.f32 %v1769, %v2087
      %v2092 = vld [vmem:[%s1 + $0xc0] sm:$0xf]
      %v2093 = vld [vmem:[%s1 + $0xc4] sm:$0xf]
      %v2094 = vld [vmem:[%s1 + $0xc8] sm:$0xf]
      %v2095 = vld [vmem:[%s1 + $0xcc] sm:$0xf]
      %v2096 = vpack.c.bf16 %v2089, %v2088
      %v2097 = vpack.c.bf16 %v262, %v261
      %v2098 = vpack.c.bf16 %v2091, %v2090
      %v2099 = vpack.c.bf16 %v264, %v263
      %v2104 = vunpack.c.l.b16 %v2092
      %v2105 = vunpack.c.l.b16 %v2093
      %v2106 = vunpack.c.l.b16 %v2094
      %v2107 = vunpack.c.l.b16 %v2095
      %v2108 = vpack.c.b16 %v2105, %v2104
      %v2109 = vpack.c.b16 %v2107, %v2106
      %v2111 = vsel %vm281, %v2108, 0
      %v2114 = vsel %vm281, %v2109, 0
      %2116 = vmatprep.subr.bf16.mxu0 0
      %2117 = vmatpush1.bf16.msra.mxu0 0
      %2118 = vmatprep.subr.bf16.mxu0 0
      %2119 = vmatpush1.bf16.msra.mxu0 0
      %2120 = vmatprep.subr.bf16.mxu0 0
      %2121 = vmatpush1.bf16.msra.mxu0 0
      %2122 = vmatprep.subr.bf16.mxu0 0
      %2123 = vmatpush1.bf16.msra.mxu0 0
      %2124 = vmatprep.subr.bf16.mxu0 0
      %2125 = vmatpush1.bf16.msra.mxu0 0
      %2126 = vmatprep.subr.bf16.mxu0 0
      %2127 = vmatpush1.bf16.msra.mxu0 0
      %2128 = vmatprep.subr.bf16.mxu0 %v2099
      %2129 = vmatpush1.bf16.msra.mxu0 %v2098
      %2130 = vmatprep.subr.bf16.mxu0 %v2097
      %2131 = vmatpush1.bf16.msra.mxu0 %v2096
      %2132 = vmatprep.subr.bf16.mxu0 0
      %2133 = vmatpush2.bf16.msra.mxu0 0
      %2134 = vmatprep.subr.bf16.mxu0 0
      %2135 = vmatpush2.bf16.msra.mxu0 0
      %2136 = vmatprep.subr.bf16.mxu0 0
      %2137 = vmatpush2.bf16.msra.mxu0 0
      %2138 = vmatprep.subr.bf16.mxu0 0
      %2139 = vmatpush2.bf16.msra.mxu0 0
      %2140 = vmatprep.subr.bf16.mxu0 0
      %2141 = vmatpush2.bf16.msra.mxu0 0
      %2142 = vmatprep.subr.bf16.mxu0 0
      %2143 = vmatpush2.bf16.msra.mxu0 0
      %2144 = vmatprep.subr.bf16.mxu0 0
      %2145 = vmatpush2.bf16.msra.mxu0 0
      %2146 = vmatprep.subr.bf16.mxu0 0
      %2147 = vmatpush2.bf16.msra.mxu0 0
      %2148 = vmatprep.mubr.bf16.mxu0 0
      %2149 = vmatmul.mubr.bf16.gmra.mxu0 %v2111
      %v2150 = vpop.f32.mrf.mxu0
      %v2151 = vadd.f32 0.0, %v2150
      %v2152 = vpop.f32.mrf.mxu0
      %v2153 = vadd.f32 0.0, %v2152
      %v2154 = vpop.f32.mrf.mxu0
      %v2155 = vadd.f32 0.0, %v2154
      %v2156 = vpop.f32.mrf.mxu0
      %v2157 = vadd.f32 0.0, %v2156
      %2158 = vmatprep.mubr.bf16.mxu0 0
      %2159 = vmatmul.mubr.bf16.gmra.mxu0 %v2114
      %v2160 = vpop.f32.mrf.mxu0
      %v2161 = vadd.f32 0.0, %v2160
      %v2162 = vpop.f32.mrf.mxu0
      %v2163 = vadd.f32 0.0, %v2162
      %v2164 = vpop.f32.mrf.mxu0
      %v2165 = vadd.f32 0.0, %v2164
      %v2166 = vpop.f32.mrf.mxu0
      %v2167 = vadd.f32 0.0, %v2166
      %2168 = vdwg.mxu0
      %v2169 = vld [vmem:[%s1 + $0xd0] sm:$0xf]
      %v2170 = vld [vmem:[%s1 + $0xd4] sm:$0xf]
      %v2171 = vld [vmem:[%s1 + $0xd8] sm:$0xf]
      %v2172 = vld [vmem:[%s1 + $0xdc] sm:$0xf]
      %v2177 = vunpack.c.l.b16 %v2169
      %v2178 = vunpack.c.l.b16 %v2170
      %v2179 = vunpack.c.l.b16 %v2171
      %v2180 = vunpack.c.l.b16 %v2172
      %v2181 = vpack.c.b16 %v2178, %v2177
      %v2182 = vpack.c.b16 %v2180, %v2179
      %v2184 = vsel %vm281, %v2181, 0
      %v2187 = vsel %vm281, %v2182, 0
      %2189 = vmatprep.subr.bf16.mxu0 0
      %2190 = vmatpush1.bf16.msra.mxu0 0
      %2191 = vmatprep.subr.bf16.mxu0 0
      %2192 = vmatpush1.bf16.msra.mxu0 0
      %2193 = vmatprep.subr.bf16.mxu0 0
      %2194 = vmatpush1.bf16.msra.mxu0 0
      %2195 = vmatprep.subr.bf16.mxu0 0
      %2196 = vmatpush1.bf16.msra.mxu0 0
      %2197 = vmatprep.subr.bf16.mxu0 0
      %2198 = vmatpush1.bf16.msra.mxu0 0
      %2199 = vmatprep.subr.bf16.mxu0 0
      %2200 = vmatpush1.bf16.msra.mxu0 0
      %2201 = vmatprep.subr.bf16.mxu0 %v2099
      %2202 = vmatpush1.bf16.msra.mxu0 %v2098
      %2203 = vmatprep.subr.bf16.mxu0 %v2097
      %2204 = vmatpush1.bf16.msra.mxu0 %v2096
      %2205 = vmatprep.subr.bf16.mxu0 0
      %2206 = vmatpush2.bf16.msra.mxu0 0
      %2207 = vmatprep.subr.bf16.mxu0 0
      %2208 = vmatpush2.bf16.msra.mxu0 0
      %2209 = vmatprep.subr.bf16.mxu0 0
      %2210 = vmatpush2.bf16.msra.mxu0 0
      %2211 = vmatprep.subr.bf16.mxu0 0
      %2212 = vmatpush2.bf16.msra.mxu0 0
      %2213 = vmatprep.subr.bf16.mxu0 0
      %2214 = vmatpush2.bf16.msra.mxu0 0
      %2215 = vmatprep.subr.bf16.mxu0 0
      %2216 = vmatpush2.bf16.msra.mxu0 0
      %2217 = vmatprep.subr.bf16.mxu0 0
      %2218 = vmatpush2.bf16.msra.mxu0 0
      %2219 = vmatprep.subr.bf16.mxu0 0
      %2220 = vmatpush2.bf16.msra.mxu0 0
      %2221 = vmatprep.mubr.bf16.mxu0 0
      %2222 = vmatmul.mubr.bf16.gmra.mxu0 %v2184
      %v2223 = vpop.f32.mrf.mxu0
      %v2224 = vadd.f32 0.0, %v2223
      %v2225 = vpop.f32.mrf.mxu0
      %v2226 = vadd.f32 0.0, %v2225
      %v2227 = vpop.f32.mrf.mxu0
      %v2228 = vadd.f32 0.0, %v2227
      %v2229 = vpop.f32.mrf.mxu0
      %v2230 = vadd.f32 0.0, %v2229
      %2231 = vmatprep.mubr.bf16.mxu0 0
      %2232 = vmatmul.mubr.bf16.gmra.mxu0 %v2187
      %v2233 = vpop.f32.mrf.mxu0
      %v2234 = vadd.f32 0.0, %v2233
      %v2235 = vpop.f32.mrf.mxu0
      %v2236 = vadd.f32 0.0, %v2235
      %v2237 = vpop.f32.mrf.mxu0
      %v2238 = vadd.f32 0.0, %v2237
      %v2239 = vpop.f32.mrf.mxu0
      %v2240 = vadd.f32 0.0, %v2239
      %2241 = vdwg.mxu0
      %2250 = vrot.lane.b32.xlu0 %v2224, 32
      %v2251 = vpop.permute.xlu0 %2250
      %2252 = vrot.lane.b32.xlu0 %v2226, 32
      %v2253 = vpop.permute.xlu0 %2252
      %2254 = vrot.lane.b32.xlu0 %v2228, 32
      %v2255 = vpop.permute.xlu0 %2254
      %2256 = vrot.lane.b32.xlu0 %v2230, 32
      %v2257 = vpop.permute.xlu0 %2256
      %2258 = vrot.lane.b32.xlu0 %v2234, 32
      %v2259 = vpop.permute.xlu0 %2258
      %2260 = vrot.lane.b32.xlu0 %v2236, 32
      %v2261 = vpop.permute.xlu0 %2260
      %2262 = vrot.lane.b32.xlu0 %v2238, 32
      %v2263 = vpop.permute.xlu0 %2262
      %2264 = vrot.lane.b32.xlu0 %v2240, 32
      %v2265 = vpop.permute.xlu0 %2264
      %v2266 = vsel %vm281, %v2251, %v2253
      %v2267 = vsel %vm281, %v2255, %v2257
      %v2268 = vsel %vm281, %v2259, %v2261
      %v2269 = vsel %vm281, %v2263, %v2265
      %v2274 = vsel %vm281, %v2153, %v2251
      %v2275 = vsel %vm281, %v2157, %v2255
      %v2276 = vsel %vm281, %v2163, %v2259
      %v2277 = vsel %vm281, %v2167, %v2263
      %2286 = vrot.lane.b32.xlu0 %v2151, 32
      %v2287 = vpop.permute.xlu0 %2286
      %2288 = vrot.lane.b32.xlu0 %v2274, 32
      %v2289 = vpop.permute.xlu0 %2288
      %2290 = vrot.lane.b32.xlu0 %v2266, 32
      %v2291 = vpop.permute.xlu0 %2290
      %2292 = vrot.lane.b32.xlu0 %v2155, 32
      %v2293 = vpop.permute.xlu0 %2292
      %2294 = vrot.lane.b32.xlu0 %v2275, 32
      %v2295 = vpop.permute.xlu0 %2294
      %2296 = vrot.lane.b32.xlu0 %v2267, 32
      %v2297 = vpop.permute.xlu0 %2296
      %2298 = vrot.lane.b32.xlu0 %v2161, 32
      %v2299 = vpop.permute.xlu0 %2298
      %2300 = vrot.lane.b32.xlu0 %v2276, 32
      %v2301 = vpop.permute.xlu0 %2300
      %2302 = vrot.lane.b32.xlu0 %v2268, 32
      %v2303 = vpop.permute.xlu0 %2302
      %2304 = vrot.lane.b32.xlu0 %v2165, 32
      %v2305 = vpop.permute.xlu0 %2304
      %2306 = vrot.lane.b32.xlu0 %v2277, 32
      %v2307 = vpop.permute.xlu0 %2306
      %2308 = vrot.lane.b32.xlu0 %v2269, 32
      %v2309 = vpop.permute.xlu0 %2308
      %v2310 = vsel %vm281, %v2287, %v2289
      %v2311 = vsel %vm281, %v2289, %v2291
      %v2312 = vsel %vm281, %v2293, %v2295
      %v2313 = vsel %vm281, %v2295, %v2297
      %v2314 = vsel %vm281, %v2299, %v2301
      %v2315 = vsel %vm281, %v2301, %v2303
      %v2316 = vsel %vm281, %v2305, %v2307
      %v2317 = vsel %vm281, %v2307, %v2309
      %v2330 = vsel %vm281, %v257, %v2287
      %v2331 = vsel %vm281, %v258, %v2293
      %v2332 = vsel %vm281, %v259, %v2299
      %v2333 = vsel %vm281, %v260, %v2305
      %v2334 = vld [vmem:[%s2 + $0xe0] sm:$0xf]
      %v2335 = vld [vmem:[%s2 + $0xe4] sm:$0xf]
      %v2336 = vld [vmem:[%s2 + $0xe8] sm:$0xf]
      %v2337 = vld [vmem:[%s2 + $0xec] sm:$0xf]
      %v2338 = vld [vmem:[%s2 + $0xf0] sm:$0xf]
      %v2339 = vld [vmem:[%s2 + $0xf4] sm:$0xf]
      %v2340 = vld [vmem:[%s2 + $0xf8] sm:$0xf]
      %v2341 = vld [vmem:[%s2 + $0xfc] sm:$0xf]
      %v2342 = vld [vmem:[%s2 + $0x100] sm:$0xf]
      %v2343 = vld [vmem:[%s2 + $0x104] sm:$0xf]
      %v2344 = vld [vmem:[%s2 + $0x108] sm:$0xf]
      %v2345 = vld [vmem:[%s2 + $0x10c] sm:$0xf]
      %v2346 = vld [vmem:[%s2 + $0x110] sm:$0xf]
      %v2347 = vld [vmem:[%s2 + $0x114] sm:$0xf]
      %v2348 = vld [vmem:[%s2 + $0x118] sm:$0xf]
      %v2349 = vld [vmem:[%s2 + $0x11c] sm:$0xf]
      %v2350 = vld [vmem:[%s2 + $0x120] sm:$0xf]
      %v2351 = vld [vmem:[%s2 + $0x124] sm:$0xf]
      %v2352 = vld [vmem:[%s2 + $0x128] sm:$0xf]
      %v2353 = vld [vmem:[%s2 + $0x12c] sm:$0xf]
      %v2354 = vld [vmem:[%s2 + $0x130] sm:$0xf]
      %v2355 = vld [vmem:[%s2 + $0x134] sm:$0xf]
      %v2356 = vld [vmem:[%s2 + $0x138] sm:$0xf]
      %v2357 = vld [vmem:[%s2 + $0x13c] sm:$0xf]
      %v2358 = vld [vmem:[%s2 + $0x140] sm:$0xf]
      %v2359 = vld [vmem:[%s2 + $0x144] sm:$0xf]
      %v2360 = vld [vmem:[%s2 + $0x148] sm:$0xf]
      %v2361 = vld [vmem:[%s2 + $0x14c] sm:$0xf]
      %v2362 = vld [vmem:[%s2 + $0x150] sm:$0xf]
      %v2363 = vld [vmem:[%s2 + $0x154] sm:$0xf]
      %v2364 = vld [vmem:[%s2 + $0x158] sm:$0xf]
      %v2365 = vld [vmem:[%s2 + $0x15c] sm:$0xf]
      %v2366 = vld [vmem:[%s2 + $0x160] sm:$0xf]
      %v2367 = vld [vmem:[%s2 + $0x164] sm:$0xf]
      %v2368 = vld [vmem:[%s2 + $0x168] sm:$0xf]
      %v2369 = vld [vmem:[%s2 + $0x16c] sm:$0xf]
      %v2370 = vld [vmem:[%s2 + $0x170] sm:$0xf]
      %v2371 = vld [vmem:[%s2 + $0x174] sm:$0xf]
      %v2372 = vld [vmem:[%s2 + $0x178] sm:$0xf]
      %v2373 = vld [vmem:[%s2 + $0x17c] sm:$0xf]
      %v2374 = vld [vmem:[%s2 + $0x180] sm:$0xf]
      %v2375 = vld [vmem:[%s2 + $0x184] sm:$0xf]
      %v2376 = vld [vmem:[%s2 + $0x188] sm:$0xf]
      %v2377 = vld [vmem:[%s2 + $0x18c] sm:$0xf]
      %v2378 = vpack.c.bf16 %v2331, %v2330
      %v2379 = vpack.c.bf16 %v2312, %v2310
      %v2380 = vpack.c.bf16 %v2313, %v2311
      %v2381 = vpack.c.bf16 %v2333, %v2332
      %v2382 = vpack.c.bf16 %v2316, %v2314
      %v2383 = vpack.c.bf16 %v2317, %v2315
      %v2384 = vld [vmem:[%s4 + $0x2] sm:$0x1]
      %v2385 = vlaneseq
      %v2386 = vshrl.u32 %v2385, 7
      %v2387 = vsub.s32 0, %v2386
      %v2388 = vrot.slane %v2384, %v2387
      %v2433 = vunpack.c.l.b16 %v2334
      %v2434 = vunpack.c.l.b16 %v2335
      %v2435 = vunpack.c.l.b16 %v2336
      %v2436 = vunpack.c.l.b16 %v2337
      %v2437 = vunpack.c.l.b16 %v2338
      %v2438 = vunpack.c.l.b16 %v2339
      %v2439 = vunpack.c.l.b16 %v2340
      %v2440 = vunpack.c.l.b16 %v2341
      %v2441 = vunpack.c.l.b16 %v2342
      %v2442 = vunpack.c.l.b16 %v2343
      %v2443 = vunpack.c.l.b16 %v2344
      %v2444 = vunpack.c.l.b16 %v2345
      %v2445 = vunpack.c.l.b16 %v2346
      %v2446 = vunpack.c.l.b16 %v2347
      %v2447 = vunpack.c.l.b16 %v2348
      %v2448 = vunpack.c.l.b16 %v2349
      %v2449 = vunpack.c.l.b16 %v2350
      %v2450 = vunpack.c.l.b16 %v2351
      %v2451 = vunpack.c.l.b16 %v2352
      %v2452 = vunpack.c.l.b16 %v2353
      %v2453 = vunpack.c.l.b16 %v2354
      %v2454 = vunpack.c.l.b16 %v2355
      %v2455 = vunpack.c.l.b16 %v2356
      %v2456 = vunpack.c.l.b16 %v2357
      %v2457 = vunpack.c.l.b16 %v2358
      %v2458 = vunpack.c.l.b16 %v2359
      %v2459 = vunpack.c.l.b16 %v2360
      %v2460 = vunpack.c.l.b16 %v2361
      %v2461 = vunpack.c.l.b16 %v2362
      %v2462 = vunpack.c.l.b16 %v2363
      %v2463 = vunpack.c.l.b16 %v2364
      %v2464 = vunpack.c.l.b16 %v2365
      %v2465 = vunpack.c.l.b16 %v2366
      %v2466 = vunpack.c.l.b16 %v2367
      %v2467 = vunpack.c.l.b16 %v2368
      %v2468 = vunpack.c.l.b16 %v2369
      %v2469 = vunpack.c.l.b16 %v2370
      %v2470 = vunpack.c.l.b16 %v2371
      %v2471 = vunpack.c.l.b16 %v2372
      %v2472 = vunpack.c.l.b16 %v2373
      %v2473 = vunpack.c.l.b16 %v2374
      %v2474 = vunpack.c.l.b16 %v2375
      %v2475 = vunpack.c.l.b16 %v2376
      %v2476 = vunpack.c.l.b16 %v2377
      %v2477 = vpack.c.b16 %v2434, %v2433
      %v2478 = vpack.c.b16 %v2436, %v2435
      %v2479 = vpack.c.b16 %v2438, %v2437
      %v2480 = vpack.c.b16 %v2440, %v2439
      %v2481 = vpack.c.b16 %v2442, %v2441
      %v2482 = vpack.c.b16 %v2444, %v2443
      %v2483 = vpack.c.b16 %v2446, %v2445
      %v2484 = vpack.c.b16 %v2448, %v2447
      %v2485 = vpack.c.b16 %v2450, %v2449
      %v2486 = vpack.c.b16 %v2452, %v2451
      %v2487 = vpack.c.b16 %v2454, %v2453
      %v2488 = vpack.c.b16 %v2456, %v2455
      %v2489 = vpack.c.b16 %v2458, %v2457
      %v2490 = vpack.c.b16 %v2460, %v2459
      %v2491 = vpack.c.b16 %v2462, %v2461
      %v2492 = vpack.c.b16 %v2464, %v2463
      %v2493 = vpack.c.b16 %v2466, %v2465
      %v2494 = vpack.c.b16 %v2468, %v2467
      %v2495 = vpack.c.b16 %v2470, %v2469
      %v2496 = vpack.c.b16 %v2472, %v2471
      %v2497 = vpack.c.b16 %v2474, %v2473
      %v2498 = vpack.c.b16 %v2476, %v2475
      %v2522 = vsel %vm976, %v2380, 0
      %v2525 = vsel %vm976, %v2383, 0
      %2527 = vmatprep.subr.bf16.mxu0 0
      %2528 = vmatpush1.bf16.msra.mxu0 %v2484
      %2529 = vmatprep.subr.bf16.mxu0 0
      %2530 = vmatpush1.bf16.msra.mxu0 %v2483
      %2531 = vmatprep.subr.bf16.mxu0 0
      %2532 = vmatpush1.bf16.msra.mxu0 %v2482
      %2533 = vmatprep.subr.bf16.mxu0 0
      %2534 = vmatpush1.bf16.msra.mxu0 %v2481
      %2535 = vmatprep.subr.bf16.mxu0 0
      %2536 = vmatpush1.bf16.msra.mxu0 %v2480
      %2537 = vmatprep.subr.bf16.mxu0 0
      %2538 = vmatpush1.bf16.msra.mxu0 %v2479
      %2539 = vmatprep.subr.bf16.mxu0 0
      %2540 = vmatpush1.bf16.msra.mxu0 %v2478
      %2541 = vmatprep.subr.bf16.mxu0 0
      %2542 = vmatpush1.bf16.msra.mxu0 %v2477
      %2543 = vmatprep.subr.bf16.mxu0 0
      %2544 = vmatpush2.bf16.msra.mxu0 %v2492
      %2545 = vmatprep.subr.bf16.mxu0 0
      %2546 = vmatpush2.bf16.msra.mxu0 %v2491
      %2547 = vmatprep.subr.bf16.mxu0 0
      %2548 = vmatpush2.bf16.msra.mxu0 %v2490
      %2549 = vmatprep.subr.bf16.mxu0 0
      %2550 = vmatpush2.bf16.msra.mxu0 %v2489
      %2551 = vmatprep.subr.bf16.mxu0 0
      %2552 = vmatpush2.bf16.msra.mxu0 %v2488
      %2553 = vmatprep.subr.bf16.mxu0 0
      %2554 = vmatpush2.bf16.msra.mxu0 %v2487
      %2555 = vmatprep.subr.bf16.mxu0 0
      %2556 = vmatpush2.bf16.msra.mxu0 %v2486
      %2557 = vmatprep.subr.bf16.mxu0 0
      %2558 = vmatpush2.bf16.msra.mxu0 %v2485
      %2559 = vmatprep.mubr.bf16.mxu0 %v2379
      %2560 = vmatmul.mubr.bf16.gmra.mxu0 %v2378
      %v2561 = vpop.f32.mrf.mxu0
      %v2562 = vadd.f32 %v2388, %v2561
      %v2563 = vpop.f32.mrf.mxu0
      %v2564 = vpop.f32.mrf.mxu0
      %v2565 = vadd.f32 %v2388, %v2564
      %v2566 = vpop.f32.mrf.mxu0
      %2567 = vmatprep.mubr.bf16.mxu0 %v2382
      %2568 = vmatmul.mubr.bf16.gmra.mxu0 %v2381
      %v2569 = vpop.f32.mrf.mxu0
      %v2570 = vadd.f32 %v2388, %v2569
      %v2571 = vpop.f32.mrf.mxu0
      %v2572 = vpop.f32.mrf.mxu0
      %v2573 = vadd.f32 %v2388, %v2572
      %v2574 = vpop.f32.mrf.mxu0
      %2575 = vdwg.mxu0
      %2576 = vmatprep.subr.bf16.mxu0 0
      %2577 = vmatpush1.bf16.msra.mxu0 0
      %2578 = vmatprep.subr.bf16.mxu0 0
      %2579 = vmatpush1.bf16.msra.mxu0 0
      %2580 = vmatprep.subr.bf16.mxu0 0
      %2581 = vmatpush1.bf16.msra.mxu0 %v2498
      %2582 = vmatprep.subr.bf16.mxu0 0
      %2583 = vmatpush1.bf16.msra.mxu0 %v2497
      %2584 = vmatprep.subr.bf16.mxu0 0
      %2585 = vmatpush1.bf16.msra.mxu0 %v2496
      %2586 = vmatprep.subr.bf16.mxu0 0
      %2587 = vmatpush1.bf16.msra.mxu0 %v2495
      %2588 = vmatprep.subr.bf16.mxu0 0
      %2589 = vmatpush1.bf16.msra.mxu0 %v2494
      %2590 = vmatprep.subr.bf16.mxu0 0
      %2591 = vmatpush1.bf16.msra.mxu0 %v2493
      %2592 = vmatprep.subr.bf16.mxu0 0
      %2593 = vmatpush2.bf16.msra.mxu0 0
      %2594 = vmatprep.subr.bf16.mxu0 0
      %2595 = vmatpush2.bf16.msra.mxu0 0
      %2596 = vmatprep.subr.bf16.mxu0 0
      %2597 = vmatpush2.bf16.msra.mxu0 0
      %2598 = vmatprep.subr.bf16.mxu0 0
      %2599 = vmatpush2.bf16.msra.mxu0 0
      %2600 = vmatprep.subr.bf16.mxu0 0
      %2601 = vmatpush2.bf16.msra.mxu0 0
      %2602 = vmatprep.subr.bf16.mxu0 0
      %2603 = vmatpush2.bf16.msra.mxu0 0
      %2604 = vmatprep.subr.bf16.mxu0 0
      %2605 = vmatpush2.bf16.msra.mxu0 0
      %2606 = vmatprep.subr.bf16.mxu0 0
      %2607 = vmatpush2.bf16.msra.mxu0 0
      %2608 = vmatprep.mubr.bf16.mxu0 0
      %2609 = vmatmul.mubr.bf16.gmra.mxu0 %v2522
      %v2610 = vpop.f32.mrf.mxu0
      %v2611 = vadd.f32 %v2562, %v2610
      %v2612 = vpop.f32.mrf.mxu0
      %v2613 = vpop.f32.mrf.mxu0
      %v2614 = vadd.f32 %v2565, %v2613
      %v2615 = vpop.f32.mrf.mxu0
      %2616 = vmatprep.mubr.bf16.mxu0 0
      %2617 = vmatmul.mubr.bf16.gmra.mxu0 %v2525
      %v2618 = vpop.f32.mrf.mxu0
      %v2619 = vadd.f32 %v2570, %v2618
      %v2620 = vpop.f32.mrf.mxu0
      %v2621 = vpop.f32.mrf.mxu0
      %v2622 = vadd.f32 %v2573, %v2621
      %v2623 = vpop.f32.mrf.mxu0
      %2624 = vdwg.mxu0
      %v2625 = vmax.f32 %v2611, 0.0
      %v2626 = vmax.f32 %v2614, 0.0
      %v2627 = vmax.f32 %v2619, 0.0
      %v2628 = vmax.f32 %v2622, 0.0
      %v2629 = vld [vmem:[%s3 + $0x40] sm:$0xf]
      %v2630 = vld [vmem:[%s3 + $0x44] sm:$0xf]
      %v2631 = vld [vmem:[%s3 + $0x48] sm:$0xf]
      %v2632 = vld [vmem:[%s3 + $0x4c] sm:$0xf]
      %v2633 = vld [vmem:[%s3 + $0x50] sm:$0xf]
      %v2634 = vld [vmem:[%s3 + $0x54] sm:$0xf]
      %v2635 = vld [vmem:[%s3 + $0x58] sm:$0xf]
      %v2636 = vld [vmem:[%s3 + $0x5c] sm:$0xf]
      %v2637 = vpack.c.bf16 %v2626, %v2625
      %v2638 = vpack.c.bf16 %v2628, %v2627
      %v2639 = vld [vmem:[%s5 + $0x2] sm:$0x1]
      %v2640 = vlaneseq
      %v2641 = vshrl.u32 %v2640, 7
      %v2642 = vsub.s32 0, %v2641
      %v2643 = vrot.slane %v2639, %v2642
      %v2652 = vunpack.c.l.b16 %v2629
      %v2653 = vunpack.c.l.b16 %v2630
      %v2654 = vunpack.c.l.b16 %v2631
      %v2655 = vunpack.c.l.b16 %v2632
      %v2656 = vunpack.c.l.b16 %v2633
      %v2657 = vunpack.c.l.b16 %v2634
      %v2658 = vunpack.c.l.b16 %v2635
      %v2659 = vunpack.c.l.b16 %v2636
      %v2660 = vpack.c.b16 %v2653, %v2652
      %v2661 = vpack.c.b16 %v2655, %v2654
      %v2662 = vpack.c.b16 %v2657, %v2656
      %v2663 = vpack.c.b16 %v2659, %v2658
      %v2669 = vsel %vm733, %v2637, 0
      %v2672 = vsel %vm733, %v2638, 0
      %2674 = vmatprep.subr.bf16.mxu0 0
      %2675 = vmatpush1.bf16.msra.mxu0 0
      %2676 = vmatprep.subr.bf16.mxu0 0
      %2677 = vmatpush1.bf16.msra.mxu0 0
      %2678 = vmatprep.subr.bf16.mxu0 0
      %2679 = vmatpush1.bf16.msra.mxu0 0
      %2680 = vmatprep.subr.bf16.mxu0 0
      %2681 = vmatpush1.bf16.msra.mxu0 0
      %2682 = vmatprep.subr.bf16.mxu0 0
      %2683 = vmatpush1.bf16.msra.mxu0 %v2663
      %2684 = vmatprep.subr.bf16.mxu0 0
      %2685 = vmatpush1.bf16.msra.mxu0 %v2662
      %2686 = vmatprep.subr.bf16.mxu0 0
      %2687 = vmatpush1.bf16.msra.mxu0 %v2661
      %2688 = vmatprep.subr.bf16.mxu0 0
      %2689 = vmatpush1.bf16.msra.mxu0 %v2660
      %2690 = vmatprep.subr.bf16.mxu0 0
      %2691 = vmatpush2.bf16.msra.mxu0 0
      %2692 = vmatprep.subr.bf16.mxu0 0
      %2693 = vmatpush2.bf16.msra.mxu0 0
      %2694 = vmatprep.subr.bf16.mxu0 0
      %2695 = vmatpush2.bf16.msra.mxu0 0
      %2696 = vmatprep.subr.bf16.mxu0 0
      %2697 = vmatpush2.bf16.msra.mxu0 0
      %2698 = vmatprep.subr.bf16.mxu0 0
      %2699 = vmatpush2.bf16.msra.mxu0 0
      %2700 = vmatprep.subr.bf16.mxu0 0
      %2701 = vmatpush2.bf16.msra.mxu0 0
      %2702 = vmatprep.subr.bf16.mxu0 0
      %2703 = vmatpush2.bf16.msra.mxu0 0
      %2704 = vmatprep.subr.bf16.mxu0 0
      %2705 = vmatpush2.bf16.msra.mxu0 0
      %2706 = vmatprep.mubr.bf16.mxu0 0
      %2707 = vmatmul.mubr.bf16.gmra.mxu0 %v2669
      %v2708 = vpop.f32.mrf.mxu0
      %v2709 = vadd.f32 %v2643, %v2708
      %v2710 = vpop.f32.mrf.mxu0
      %v2711 = vpop.f32.mrf.mxu0
      %v2712 = vadd.f32 %v2643, %v2711
      %v2713 = vpop.f32.mrf.mxu0
      %2714 = vmatprep.mubr.bf16.mxu0 0
      %2715 = vmatmul.mubr.bf16.gmra.mxu0 %v2672
      %v2716 = vpop.f32.mrf.mxu0
      %v2717 = vadd.f32 %v2643, %v2716
      %v2718 = vpop.f32.mrf.mxu0
      %v2719 = vpop.f32.mrf.mxu0
      %v2720 = vadd.f32 %v2643, %v2719
      %v2721 = vpop.f32.mrf.mxu0
      %2722 = vdwg.mxu0
      %v2723 = vmax.f32 %v2709, 0.0
      %v2724 = vmax.f32 %v2712, 0.0
      %v2725 = vmax.f32 %v2717, 0.0
      %v2726 = vmax.f32 %v2720, 0.0
      %v2727 = vld [vmem:[%s2 + $0x190] sm:$0xf]
      %v2728 = vld [vmem:[%s2 + $0x194] sm:$0xf]
      %v2729 = vld [vmem:[%s2 + $0x198] sm:$0xf]
      %v2730 = vld [vmem:[%s2 + $0x19c] sm:$0xf]
      %v2731 = vld [vmem:[%s2 + $0x1a0] sm:$0xf]
      %v2732 = vld [vmem:[%s2 + $0x1a4] sm:$0xf]
      %v2733 = vld [vmem:[%s2 + $0x1a8] sm:$0xf]
      %v2734 = vld [vmem:[%s2 + $0x1ac] sm:$0xf]
      %v2735 = vld [vmem:[%s2 + $0x1b0] sm:$0xf]
      %v2736 = vld [vmem:[%s2 + $0x1b4] sm:$0xf]
      %v2737 = vld [vmem:[%s2 + $0x1b8] sm:$0xf]
      %v2738 = vld [vmem:[%s2 + $0x1bc] sm:$0xf]
      %v2739 = vld [vmem:[%s2 + $0x1c0] sm:$0xf]
      %v2740 = vld [vmem:[%s2 + $0x1c4] sm:$0xf]
      %v2741 = vld [vmem:[%s2 + $0x1c8] sm:$0xf]
      %v2742 = vld [vmem:[%s2 + $0x1cc] sm:$0xf]
      %v2743 = vld [vmem:[%s2 + $0x1d0] sm:$0xf]
      %v2744 = vld [vmem:[%s2 + $0x1d4] sm:$0xf]
      %v2745 = vld [vmem:[%s2 + $0x1d8] sm:$0xf]
      %v2746 = vld [vmem:[%s2 + $0x1dc] sm:$0xf]
      %v2747 = vld [vmem:[%s4 + $0x3] sm:$0x1]
      %v2748 = vlaneseq
      %v2749 = vshrl.u32 %v2748, 7
      %v2750 = vsub.s32 0, %v2749
      %v2751 = vrot.slane %v2747, %v2750
      %v2772 = vunpack.c.l.b16 %v2727
      %v2773 = vunpack.c.l.b16 %v2728
      %v2774 = vunpack.c.l.b16 %v2729
      %v2775 = vunpack.c.l.b16 %v2730
      %v2776 = vunpack.c.l.b16 %v2731
      %v2777 = vunpack.c.l.b16 %v2732
      %v2778 = vunpack.c.l.b16 %v2733
      %v2779 = vunpack.c.l.b16 %v2734
      %v2780 = vunpack.c.l.b16 %v2735
      %v2781 = vunpack.c.l.b16 %v2736
      %v2782 = vunpack.c.l.b16 %v2737
      %v2783 = vunpack.c.l.b16 %v2738
      %v2784 = vunpack.c.l.b16 %v2739
      %v2785 = vunpack.c.l.b16 %v2740
      %v2786 = vunpack.c.l.b16 %v2741
      %v2787 = vunpack.c.l.b16 %v2742
      %v2788 = vunpack.c.l.b16 %v2743
      %v2789 = vunpack.c.l.b16 %v2744
      %v2790 = vunpack.c.l.b16 %v2745
      %v2791 = vunpack.c.l.b16 %v2746
      %v2792 = vpack.c.b16 %v2773, %v2772
      %v2793 = vpack.c.b16 %v2775, %v2774
      %v2794 = vpack.c.b16 %v2777, %v2776
      %v2795 = vpack.c.b16 %v2779, %v2778
      %v2796 = vpack.c.b16 %v2781, %v2780
      %v2797 = vpack.c.b16 %v2783, %v2782
      %v2798 = vpack.c.b16 %v2785, %v2784
      %v2799 = vpack.c.b16 %v2787, %v2786
      %v2800 = vpack.c.b16 %v2789, %v2788
      %v2801 = vpack.c.b16 %v2791, %v2790
      %v2813 = vsel %vm281, %v2097, 0
      %v2816 = vsel %vm281, %v2099, 0
      %2818 = vmatprep.subr.bf16.mxu0 0
      %2819 = vmatpush1.bf16.msra.mxu0 %v2799
      %2820 = vmatprep.subr.bf16.mxu0 0
      %2821 = vmatpush1.bf16.msra.mxu0 %v2798
      %2822 = vmatprep.subr.bf16.mxu0 0
      %2823 = vmatpush1.bf16.msra.mxu0 %v2797
      %2824 = vmatprep.subr.bf16.mxu0 0
      %2825 = vmatpush1.bf16.msra.mxu0 %v2796
      %2826 = vmatprep.subr.bf16.mxu0 0
      %2827 = vmatpush1.bf16.msra.mxu0 %v2795
      %2828 = vmatprep.subr.bf16.mxu0 0
      %2829 = vmatpush1.bf16.msra.mxu0 %v2794
      %2830 = vmatprep.subr.bf16.mxu0 0
      %2831 = vmatpush1.bf16.msra.mxu0 %v2793
      %2832 = vmatprep.subr.bf16.mxu0 0
      %2833 = vmatpush1.bf16.msra.mxu0 %v2792
      %2834 = vmatprep.subr.bf16.mxu0 0
      %2835 = vmatpush2.bf16.msra.mxu0 0
      %2836 = vmatprep.subr.bf16.mxu0 0
      %2837 = vmatpush2.bf16.msra.mxu0 0
      %2838 = vmatprep.subr.bf16.mxu0 0
      %2839 = vmatpush2.bf16.msra.mxu0 0
      %2840 = vmatprep.subr.bf16.mxu0 0
      %2841 = vmatpush2.bf16.msra.mxu0 0
      %2842 = vmatprep.subr.bf16.mxu0 0
      %2843 = vmatpush2.bf16.msra.mxu0 0
      %2844 = vmatprep.subr.bf16.mxu0 0
      %2845 = vmatpush2.bf16.msra.mxu0 0
      %2846 = vmatprep.subr.bf16.mxu0 0
      %2847 = vmatpush2.bf16.msra.mxu0 %v2801
      %2848 = vmatprep.subr.bf16.mxu0 0
      %2849 = vmatpush2.bf16.msra.mxu0 %v2800
      %2850 = vmatprep.mubr.bf16.mxu0 %v2813
      %2851 = vmatmul.mubr.bf16.gmra.mxu0 %v2096
      %v2852 = vpop.f32.mrf.mxu0
      %v2853 = vadd.f32 %v2751, %v2852
      %v2854 = vpop.f32.mrf.mxu0
      %v2855 = vpop.f32.mrf.mxu0
      %v2856 = vadd.f32 %v2751, %v2855
      %v2857 = vpop.f32.mrf.mxu0
      %2858 = vmatprep.mubr.bf16.mxu0 %v2816
      %2859 = vmatmul.mubr.bf16.gmra.mxu0 %v2098
      %v2860 = vpop.f32.mrf.mxu0
      %v2861 = vadd.f32 %v2751, %v2860
      %v2862 = vpop.f32.mrf.mxu0
      %v2863 = vpop.f32.mrf.mxu0
      %v2864 = vadd.f32 %v2751, %v2863
      %v2865 = vpop.f32.mrf.mxu0
      %2866 = vdwg.mxu0
      %v2867 = vmax.f32 %v2853, 0.0
      %v2868 = vmax.f32 %v2856, 0.0
      %v2869 = vmax.f32 %v2861, 0.0
      %v2870 = vmax.f32 %v2864, 0.0
      %v2871 = vld [vmem:[%s3 + $0x60] sm:$0xf]
      %v2872 = vld [vmem:[%s3 + $0x64] sm:$0xf]
      %v2873 = vld [vmem:[%s3 + $0x68] sm:$0xf]
      %v2874 = vld [vmem:[%s3 + $0x6c] sm:$0xf]
      %v2875 = vld [vmem:[%s3 + $0x70] sm:$0xf]
      %v2876 = vld [vmem:[%s3 + $0x74] sm:$0xf]
      %v2877 = vld [vmem:[%s3 + $0x78] sm:$0xf]
      %v2878 = vld [vmem:[%s3 + $0x7c] sm:$0xf]
      %v2879 = vpack.c.bf16 %v2868, %v2867
      %v2880 = vpack.c.bf16 %v2870, %v2869
      %v2881 = vld [vmem:[%s5 + $0x3] sm:$0x1]
      %v2882 = vlaneseq
      %v2883 = vshrl.u32 %v2882, 7
      %v2884 = vsub.s32 0, %v2883
      %v2885 = vrot.slane %v2881, %v2884
      %v2894 = vunpack.c.l.b16 %v2871
      %v2895 = vunpack.c.l.b16 %v2872
      %v2896 = vunpack.c.l.b16 %v2873
      %v2897 = vunpack.c.l.b16 %v2874
      %v2898 = vunpack.c.l.b16 %v2875
      %v2899 = vunpack.c.l.b16 %v2876
      %v2900 = vunpack.c.l.b16 %v2877
      %v2901 = vunpack.c.l.b16 %v2878
      %v2902 = vpack.c.b16 %v2895, %v2894
      %v2903 = vpack.c.b16 %v2897, %v2896
      %v2904 = vpack.c.b16 %v2899, %v2898
      %v2905 = vpack.c.b16 %v2901, %v2900
      %v2911 = vsel %vm733, %v2879, 0
      %v2914 = vsel %vm733, %v2880, 0
      %2916 = vmatprep.subr.bf16.mxu0 0
      %2917 = vmatpush1.bf16.msra.mxu0 0
      %2918 = vmatprep.subr.bf16.mxu0 0
      %2919 = vmatpush1.bf16.msra.mxu0 0
      %2920 = vmatprep.subr.bf16.mxu0 0
      %2921 = vmatpush1.bf16.msra.mxu0 0
      %2922 = vmatprep.subr.bf16.mxu0 0
      %2923 = vmatpush1.bf16.msra.mxu0 0
      %2924 = vmatprep.subr.bf16.mxu0 0
      %2925 = vmatpush1.bf16.msra.mxu0 %v2905
      %2926 = vmatprep.subr.bf16.mxu0 0
      %2927 = vmatpush1.bf16.msra.mxu0 %v2904
      %2928 = vmatprep.subr.bf16.mxu0 0
      %2929 = vmatpush1.bf16.msra.mxu0 %v2903
      %2930 = vmatprep.subr.bf16.mxu0 0
      %2931 = vmatpush1.bf16.msra.mxu0 %v2902
      %2932 = vmatprep.subr.bf16.mxu0 0
      %2933 = vmatpush2.bf16.msra.mxu0 0
      %2934 = vmatprep.subr.bf16.mxu0 0
      %2935 = vmatpush2.bf16.msra.mxu0 0
      %2936 = vmatprep.subr.bf16.mxu0 0
      %2937 = vmatpush2.bf16.msra.mxu0 0
      %2938 = vmatprep.subr.bf16.mxu0 0
      %2939 = vmatpush2.bf16.msra.mxu0 0
      %2940 = vmatprep.subr.bf16.mxu0 0
      %2941 = vmatpush2.bf16.msra.mxu0 0
      %2942 = vmatprep.subr.bf16.mxu0 0
      %2943 = vmatpush2.bf16.msra.mxu0 0
      %2944 = vmatprep.subr.bf16.mxu0 0
      %2945 = vmatpush2.bf16.msra.mxu0 0
      %2946 = vmatprep.subr.bf16.mxu0 0
      %2947 = vmatpush2.bf16.msra.mxu0 0
      %2948 = vmatprep.mubr.bf16.mxu0 0
      %2949 = vmatmul.mubr.bf16.gmra.mxu0 %v2911
      %v2950 = vpop.f32.mrf.mxu0
      %v2951 = vadd.f32 %v2885, %v2950
      %v2952 = vpop.f32.mrf.mxu0
      %v2953 = vpop.f32.mrf.mxu0
      %v2954 = vadd.f32 %v2885, %v2953
      %v2955 = vpop.f32.mrf.mxu0
      %2956 = vmatprep.mubr.bf16.mxu0 0
      %2957 = vmatmul.mubr.bf16.gmra.mxu0 %v2914
      %v2958 = vpop.f32.mrf.mxu0
      %v2959 = vadd.f32 %v2885, %v2958
      %v2960 = vpop.f32.mrf.mxu0
      %v2961 = vpop.f32.mrf.mxu0
      %v2962 = vadd.f32 %v2885, %v2961
      %v2963 = vpop.f32.mrf.mxu0
      %2964 = vdwg.mxu0
      %v2965 = vmax.f32 %v2951, 0.0
      %v2966 = vmax.f32 %v2954, 0.0
      %v2967 = vmax.f32 %v2959, 0.0
      %v2968 = vmax.f32 %v2962, 0.0
      %v2969 = vld [vmem:[%s3 + $0x80] sm:$0xf]
      %v2970 = vld [vmem:[%s3 + $0x84] sm:$0xf]
      %v2971 = vld [vmem:[%s3 + $0x88] sm:$0xf]
      %v2972 = vld [vmem:[%s3 + $0x8c] sm:$0xf]
      %v2973 = vld [vmem:[%s3 + $0x90] sm:$0xf]
      %v2974 = vld [vmem:[%s3 + $0x94] sm:$0xf]
      %v2975 = vld [vmem:[%s3 + $0x98] sm:$0xf]
      %v2976 = vld [vmem:[%s3 + $0x9c] sm:$0xf]
      %2981 = vrot.lane.b32.xlu0 %v2723, 32
      %v2982 = vpop.permute.xlu0 %2981
      %2983 = vrot.lane.b32.xlu0 %v2724, 32
      %v2984 = vpop.permute.xlu0 %2983
      %2985 = vrot.lane.b32.xlu0 %v2725, 32
      %v2986 = vpop.permute.xlu0 %2985
      %2987 = vrot.lane.b32.xlu0 %v2726, 32
      %v2988 = vpop.permute.xlu0 %2987
      %v2993 = vsel %vm281, %v1130, %v2982
      %v2994 = vsel %vm281, %v1131, %v2984
      %v2995 = vsel %vm281, %v1132, %v2986
      %v2996 = vsel %vm281, %v1133, %v2988
      %v2997 = vpack.c.bf16 %v2994, %v2993
      %v2998 = vpack.c.bf16 %v2996, %v2995
      %v2999 = vld [vmem:[%s5 + $0x4] sm:$0x1]
      %v3000 = vlaneseq
      %v3001 = vshrl.u32 %v3000, 7
      %v3002 = vsub.s32 0, %v3001
      %v3003 = vrot.slane %v2999, %v3002
      %v3012 = vunpack.c.l.b16 %v2969
      %v3013 = vunpack.c.l.b16 %v2970
      %v3014 = vunpack.c.l.b16 %v2971
      %v3015 = vunpack.c.l.b16 %v2972
      %v3016 = vunpack.c.l.b16 %v2973
      %v3017 = vunpack.c.l.b16 %v2974
      %v3018 = vunpack.c.l.b16 %v2975
      %v3019 = vunpack.c.l.b16 %v2976
      %v3020 = vpack.c.b16 %v3013, %v3012
      %v3021 = vpack.c.b16 %v3015, %v3014
      %v3022 = vpack.c.b16 %v3017, %v3016
      %v3023 = vpack.c.b16 %v3019, %v3018
      %v3029 = vsel %vm733, %v2997, 0
      %v3032 = vsel %vm733, %v2998, 0
      %3034 = vmatprep.subr.bf16.mxu0 0
      %3035 = vmatpush1.bf16.msra.mxu0 0
      %3036 = vmatprep.subr.bf16.mxu0 0
      %3037 = vmatpush1.bf16.msra.mxu0 0
      %3038 = vmatprep.subr.bf16.mxu0 0
      %3039 = vmatpush1.bf16.msra.mxu0 0
      %3040 = vmatprep.subr.bf16.mxu0 0
      %3041 = vmatpush1.bf16.msra.mxu0 0
      %3042 = vmatprep.subr.bf16.mxu0 0
      %3043 = vmatpush1.bf16.msra.mxu0 %v3023
      %3044 = vmatprep.subr.bf16.mxu0 0
      %3045 = vmatpush1.bf16.msra.mxu0 %v3022
      %3046 = vmatprep.subr.bf16.mxu0 0
      %3047 = vmatpush1.bf16.msra.mxu0 %v3021
      %3048 = vmatprep.subr.bf16.mxu0 0
      %3049 = vmatpush1.bf16.msra.mxu0 %v3020
      %3050 = vmatprep.subr.bf16.mxu0 0
      %3051 = vmatpush2.bf16.msra.mxu0 0
      %3052 = vmatprep.subr.bf16.mxu0 0
      %3053 = vmatpush2.bf16.msra.mxu0 0
      %3054 = vmatprep.subr.bf16.mxu0 0
      %3055 = vmatpush2.bf16.msra.mxu0 0
      %3056 = vmatprep.subr.bf16.mxu0 0
      %3057 = vmatpush2.bf16.msra.mxu0 0
      %3058 = vmatprep.subr.bf16.mxu0 0
      %3059 = vmatpush2.bf16.msra.mxu0 0
      %3060 = vmatprep.subr.bf16.mxu0 0
      %3061 = vmatpush2.bf16.msra.mxu0 0
      %3062 = vmatprep.subr.bf16.mxu0 0
      %3063 = vmatpush2.bf16.msra.mxu0 0
      %3064 = vmatprep.subr.bf16.mxu0 0
      %3065 = vmatpush2.bf16.msra.mxu0 0
      %3066 = vmatprep.mubr.bf16.mxu0 0
      %3067 = vmatmul.mubr.bf16.gmra.mxu0 %v3029
      %v3068 = vpop.f32.mrf.mxu0
      %v3069 = vadd.f32 %v3003, %v3068
      %v3070 = vpop.f32.mrf.mxu0
      %v3071 = vpop.f32.mrf.mxu0
      %v3072 = vadd.f32 %v3003, %v3071
      %v3073 = vpop.f32.mrf.mxu0
      %3074 = vmatprep.mubr.bf16.mxu0 0
      %3075 = vmatmul.mubr.bf16.gmra.mxu0 %v3032
      %v3076 = vpop.f32.mrf.mxu0
      %v3077 = vadd.f32 %v3003, %v3076
      %v3078 = vpop.f32.mrf.mxu0
      %v3079 = vpop.f32.mrf.mxu0
      %v3080 = vadd.f32 %v3003, %v3079
      %v3081 = vpop.f32.mrf.mxu0
      %3082 = vdwg.mxu0
      %v3083 = vmax.f32 %v3069, 0.0
      %v3084 = vmax.f32 %v3072, 0.0
      %v3085 = vmax.f32 %v3077, 0.0
      %v3086 = vmax.f32 %v3080, 0.0
      %v3087 = vadd.f32 %v253, %v1448
      %v3088 = vadd.f32 %v254, %v1449
      %v3089 = vadd.f32 %v255, %v1450
      %v3090 = vadd.f32 %v256, %v1451
      %v3091 = vadd.f32 %v257, %v3083
      %v3092 = vadd.f32 %v258, %v3084
      %v3093 = vadd.f32 %v259, %v3085
      %v3094 = vadd.f32 %v260, %v3086
      %v3095 = vadd.f32 %v261, %v2965
      %v3096 = vadd.f32 %v262, %v2966
      %v3097 = vadd.f32 %v263, %v2967
      %v3098 = vadd.f32 %v264, %v2968
      %3099 = vst.msk [vmem:[%s251] sm:$0xff] %vm281, %v3087
      %3100 = vst.msk [vmem:[%s251 + $0x8] sm:$0xff] %vm281, %v3088
      %3101 = vst.msk [vmem:[%s251 + $0x10] sm:$0xff] %vm281, %v3089
      %3102 = vst.msk [vmem:[%s251 + $0x18] sm:$0xff] %vm281, %v3090
      %3103 = vst.msk [vmem:[%s251 + $0x20] sm:$0xff] %vm281, %v3091
      %3104 = vst.msk [vmem:[%s251 + $0x28] sm:$0xff] %vm281, %v3092
      %3105 = vst.msk [vmem:[%s251 + $0x30] sm:$0xff] %vm281, %v3093
      %3106 = vst.msk [vmem:[%s251 + $0x38] sm:$0xff] %vm281, %v3094
      %3107 = vst.msk [vmem:[%s251 + $0x40] sm:$0xff] %vm281, %v3095
      %3108 = vst.msk [vmem:[%s251 + $0x48] sm:$0xff] %vm281, %v3096
      %3109 = vst.msk [vmem:[%s251 + $0x50] sm:$0xff] %vm281, %v3097
      %3110 = vst.msk [vmem:[%s251 + $0x58] sm:$0xff] %vm281, %v3098
      %p3111 = scmp.lt.s32.totalorder %s17, 1
      %s3112 = scalar_select %p3111, %s17, 1
      %s3113 = smul.addr %s3112, 12
      %s3114 = smul.addr %s3113, 8
      %s3115 = scalar_lea.vmem %s6, %s3114
      // Predicated region
      $region45: #{forward.1} parent=43 // pred_check
        %p3116 = pneg %p166
      $region46: #{forward.1} parent=43 // pred_check_branch
        %3118 = sbr.rel (%p3116) target = $region48
      $region47: #{forward.1} parent=43 // pred_region
        _
      $region48: #{forward.1} parent=43 // pred_fallthru
        _
    $region44: #{forward.1} parent=5 // pred_fallthru
      _
    %p3119 = scmp.le.s32.totalorder 2, %s12
    // Predicated region
    $region49: #{forward.1} parent=5 // pred_check
      %p3120 = pneg %p3119
    $region50: #{forward.1} parent=5 // pred_check_branch
      %3122 = sbr.rel (%p3120) target = $region52
    $region51: #{forward.1} parent=5 // pred_region
      %s3123 = ssub.s32 %s12, 2
      // Predicated region
      $region53: #{forward.1} parent=51 // pred_check
        %p3124 = pneg %p172
      $region54: #{forward.1} parent=51 // pred_check_branch
        %3126 = sbr.rel (%p3124) target = $region56
      $region55: #{forward.1} parent=51 // pred_region
        %p3127 = scmp.lt.s32.totalorder %s18, 1
        %s3128 = scalar_select %p3127, %s18, 1
        %s3129 = smul.addr %s3128, 12
        %s3130 = smul.addr %s3129, 8
        %s3131 = scalar_lea.vmem %s6, %s3130
      $region56: #{forward.1} parent=51 // pred_fallthru
        _
    $region52: #{forward.1} parent=5 // pred_fallthru
      _
  $region6: #{forward.1} parent=0 // loop_footer
    %s16 = sadd.s32 1, %s12
  $region7: #{forward.1} parent=0 // loop_footer_branch
    %11 = sbr.rel target = $region3
  $region8: #{forward.1} parent=0 // loop_exit
    _

</llo_original>
